<compile_context>
chip_gen: v7x
topology: tpu7x:2x2x1
jax: 0.10.0
libtpu: 0.0.40
codegen_flags: <defaults>
</compile_context>

<pallas_src>
import functools

import jax
import jax.numpy as jnp
from jax import lax
from jax.experimental import pallas as pl
from jax.experimental.pallas import tpu as pltpu

_EPS = 1e-5


# ----------------------------------------------------------------------------
# The single fused kernel
# ----------------------------------------------------------------------------
def _make_kernel(b, s, f, L, H, scale_val):
    dh = f // H
    s1 = s + 1

    def layer_norm(x, g, beta):
        mu = jnp.mean(x, axis=-1, keepdims=True)
        var = jnp.mean((x - mu) ** 2, axis=-1, keepdims=True)
        return (x - mu) * lax.rsqrt(var + _EPS) * g + beta

    def mha(q, k, v, bias, colmasks):
        """Multi-head attention on 2-D row-major activations.

        Heads are selected by masking feature columns (no reshape/transpose),
        cross-batch attention is removed with the additive block mask `bias`.
        q:(Rq,f)  k,v:(Rk,f)  bias:(Rq,Rk)  ->  (Rq,f)
        """
        out = jnp.zeros(q.shape, jnp.float32)
        for cm in colmasks:
            sc = lax.dot_general(q * cm, k, (((1,), (1,)), ((), ())),
                                 preferred_element_type=jnp.float32)
            sc = sc * scale_val + bias
            m = jnp.max(sc, axis=-1, keepdims=True)
            p = jnp.exp(sc - m)
            denom = jnp.sum(p, axis=-1, keepdims=True)
            p = p * pl.reciprocal(denom, approx=True)
            out = out + jnp.dot(p, v * cm, preferred_element_type=jnp.float32)
        return out

    def kernel(*refs):
        (xs_ref, dc_ref, w3_ref, encb_ref, selfb_ref, crossb_ref,
         e_wq, e_wk, e_wv, e_bq, e_bk, e_bv,
         e_wo, e_bo, e_l1g, e_l1b,
         e_w1, e_b1, e_w2, e_b2,
         e_l2g, e_l2b,
         s_wq, s_wk, s_wv, s_bq, s_bk, s_bv,
         s_wo, s_bo, d_l1g, d_l1b,
         c_wq, c_wk, c_wv, c_bq, c_bk, c_bv,
         c_wo, c_bo, d_l2g, d_l2b,
         d_w1, d_b1, d_w2, d_b2,
         d_l3g, d_l3b,
         out_ref, state_ref) = refs

        # per-head feature-column masks, hoisted out of every loop
        ci = lax.broadcasted_iota(jnp.int32, (1, f), 1)
        colmasks = [((ci >= h * dh) & (ci < (h + 1) * dh)).astype(jnp.float32)
                    for h in range(H)]

        # ----------------------- encoder (runs once) -----------------------
        xe = xs_ref[...]                                                   # (b*s, f)
        q = jnp.dot(xe, e_wq[...], preferred_element_type=jnp.float32) + e_bq[...]
        k = jnp.dot(xe, e_wk[...], preferred_element_type=jnp.float32) + e_bk[...]
        v = jnp.dot(xe, e_wv[...], preferred_element_type=jnp.float32) + e_bv[...]
        a = mha(q, k, v, encb_ref[...], colmasks)
        a = jnp.dot(a, e_wo[...], preferred_element_type=jnp.float32) + e_bo[...]
        xe = layer_norm(xe + a, e_l1g[...], e_l1b[...])
        h = jnp.dot(xe, e_w1[...], preferred_element_type=jnp.float32) + e_b1[...]
        h = jnp.maximum(h, 0.0)
        h = jnp.dot(h, e_w2[...], preferred_element_type=jnp.float32) + e_b2[...]
        mem = layer_norm(xe + h, e_l2g[...], e_l2b[...])                   # (b*s, f)

        # cross-attention K/V cache: encoder memory is constant across decode steps
        kc = jnp.dot(mem, c_wk[...], preferred_element_type=jnp.float32) + c_bk[...]
        vc = jnp.dot(mem, c_wv[...], preferred_element_type=jnp.float32) + c_bv[...]

        # hoist loop-invariant decoder weights / masks (stay VMEM/vreg resident)
        self_bias, cross_bias = selfb_ref[...], crossb_ref[...]
        swq, swk, swv = s_wq[...], s_wk[...], s_wv[...]
        sbq, sbk, sbv = s_bq[...], s_bk[...], s_bv[...]
        swo, sbo = s_wo[...], s_bo[...]
        l1g, l1b = d_l1g[...], d_l1b[...]
        cwq, cbq = c_wq[...], c_bq[...]
        cwo, cbo = c_wo[...], c_bo[...]
        l2g, l2b = d_l2g[...], d_l2b[...]
        w1, b1, w2, b2 = d_w1[...], d_b1[...], d_w2[...], d_b2[...]
        l3g, l3b = d_l3g[...], d_l3b[...]
        w3 = w3_ref[...]                                                   # (L, f, s+1)

        # autoregressive state, time-major rows: row = t*b + bi  == prev_seq[bi,:,t]
        state_ref[...] = jnp.zeros_like(state_ref)

        def decode_step(t, carry):
            x = state_ref[...]                                             # (L*b, f)

            # decoder self-attention over the full zero-padded prev_seq
            q = jnp.dot(x, swq, preferred_element_type=jnp.float32) + sbq
            k = jnp.dot(x, swk, preferred_element_type=jnp.float32) + sbk
            v = jnp.dot(x, swv, preferred_element_type=jnp.float32) + sbv
            a = mha(q, k, v, self_bias, colmasks)
            a = jnp.dot(a, swo, preferred_element_type=jnp.float32) + sbo
            x = layer_norm(x + a, l1g, l1b)

            # cross-attention against cached encoder K/V
            qc = jnp.dot(x, cwq, preferred_element_type=jnp.float32) + cbq
            a = mha(qc, kc, vc, cross_bias, colmasks)
            a = jnp.dot(a, cwo, preferred_element_type=jnp.float32) + cbo
            x = layer_norm(x + a, l2g, l2b)

            # feed-forward
            hh = jnp.dot(x, w1, preferred_element_type=jnp.float32) + b1
            hh = jnp.maximum(hh, 0.0)
            hh = jnp.dot(hh, w2, preferred_element_type=jnp.float32) + b2
            x = layer_norm(x + hh, l3g, l3b)                               # (L*b, f)

            # output head:  Flatten(b, f, L) @ W_out  ==  sum_t  X_t @ w3[t]
            new_out = jnp.zeros((b, s1), jnp.float32)
            for t3 in range(L):
                new_out = new_out + jnp.dot(x[t3 * b:(t3 + 1) * b, :], w3[t3],
                                            preferred_element_type=jnp.float32)
            out_ref[t] = new_out                                           # (b, s+1)

            # argmax (first maximal index, torch.argmax semantics) as a one-hot
            m = jnp.max(new_out, axis=-1, keepdims=True)
            colf = lax.broadcasted_iota(jnp.int32, (b, s1), 1).astype(jnp.float32)
            cand = jnp.where(new_out >= m, colf, jnp.float32(s1 + 1))
            idx = jnp.min(cand, axis=-1, keepdims=True)                    # (b, 1)
            onehot = (colf == idx).astype(jnp.float32)                     # (b, s+1)

            # prev_seq[bi, :, t] = decoder_choices[bi, :, argmax_bi]
            for bi in range(b):
                row = jnp.dot(onehot[bi:bi + 1, :], dc_ref[bi],
                              preferred_element_type=jnp.float32)          # (1, f)
                state_ref[pl.ds(t * b + bi, 1), :] = row
            return carry

        lax.fori_loop(0, L, decode_step, 0)

    return kernel


# ----------------------------------------------------------------------------
# Wrapper: layout plumbing in XLA, single pallas_call for the whole forward
# ----------------------------------------------------------------------------
@functools.partial(jax.jit, static_argnames=("nb_heads", "max_seq_len", "scale"))
def auto_reg_transformer_fwd(xs, params, *, nb_heads, max_seq_len, scale):
    """xs: (b, f, s) -> outputs: (b, max_seq_len + 1, s + 1)."""
    b, f, s = xs.shape
    L = max_seq_len + 1
    s1 = s + 1
    dh = f // nb_heads
    scale_val = (1.0 / (dh ** 0.5)) if scale else 1.0

    # channel-first (b, f, s) -> row-major (b*s, f)
    xs2d = jnp.transpose(xs, (0, 2, 1)).reshape(b * s, f)

    # decoder_choices[:, :, :-1] = xs ; [:, :, -1] = -1   -> (b, s+1, f)
    dc = jnp.concatenate([xs, -jnp.ones((b, f, 1), xs.dtype)], axis=-1)
    dc3d = jnp.transpose(dc, (0, 2, 1))

    # output weight (f*L, s+1) rearranged so  new_out = sum_t X_t @ w3[t]
    w3 = jnp.transpose(params["w_out"].reshape(f, L, s1), (1, 0, 2))       # (L, f, s+1)

    # additive batch-block masks (keep each query inside its own batch)
    neg = jnp.float32(-1e30)
    enc_rows = jnp.arange(b * s) // s          # encoder rows: batch-major
    dec_rows = jnp.arange(L * b) % b           # decoder rows: time-major
    enc_bias = jnp.where(enc_rows[:, None] == enc_rows[None, :], 0.0, neg)
    self_bias = jnp.where(dec_rows[:, None] == dec_rows[None, :], 0.0, neg)
    cross_bias = jnp.where(dec_rows[:, None] == enc_rows[None, :], 0.0, neg)

    enc, dec = params["encoder"], params["decoder"]
    ea, sa, ca = enc["attn"], dec["self_attn"], dec["cross_attn"]

    inputs = [
        xs2d, dc3d, w3, enc_bias, self_bias, cross_bias,
        ea["wq"], ea["wk"], ea["wv"], ea["bq"], ea["bk"], ea["bv"],
        ea["wo"], ea["bo"], enc["ln1_g"], enc["ln1_b"],
        enc["ffn_w1"], enc["ffn_b1"], enc["ffn_w2"], enc["ffn_b2"],
        enc["ln2_g"], enc["ln2_b"],
        sa["wq"], sa["wk"], sa["wv"], sa["bq"], sa["bk"], sa["bv"],
        sa["wo"], sa["bo"], dec["ln1_g"], dec["ln1_b"],
        ca["wq"], ca["wk"], ca["wv"], ca["bq"], ca["bk"], ca["bv"],
        ca["wo"], ca["bo"], dec["ln2_g"], dec["ln2_b"],
        dec["ffn_w1"], dec["ffn_b1"], dec["ffn_w2"], dec["ffn_b2"],
        dec["ln3_g"], dec["ln3_b"],
    ]
    inputs = [jnp.asarray(a, jnp.float32) for a in inputs]

    in_specs = [pl.BlockSpec(a.shape, lambda i, _nd=a.ndim: (0,) * _nd) for a in inputs]

    # advisory cost estimate (helps XLA schedule around the fused custom call)
    dff = enc["ffn_w1"].shape[1]
    mm = lambda m, k, n: 2 * m * k * n
    re_, rd_ = b * s, L * b
    enc_fl = (4 * mm(re_, f, f) + nb_heads * (mm(re_, f, re_) + mm(re_, re_, f))
              + mm(re_, f, dff) + mm(re_, dff, f))
    dec_fl = (6 * mm(rd_, f, f)
              + nb_heads * (mm(rd_, f, rd_) + mm(rd_, rd_, f)
                            + mm(rd_, f, re_) + mm(rd_, re_, f))
              + mm(rd_, f, dff) + mm(rd_, dff, f) + L * mm(b, f, s1) + b * mm(1, s1, f))
    cost = pl.CostEstimate(
        flops=int(enc_fl + 2 * mm(re_, f, f) + L * dec_fl),
        transcendentals=int(nb_heads * (re_ * re_ + L * (rd_ * rd_ + rd_ * re_))),
        bytes_accessed=int(sum(int(a.size) * 4 for a in inputs) + L * b * s1 * 4),
    )

    out = pl.pallas_call(
        _make_kernel(b, s, f, L, nb_heads, scale_val),
        grid=(1,),
        out_shape=jax.ShapeDtypeStruct((L, b, s1), jnp.float32),
        in_specs=in_specs,
        out_specs=pl.BlockSpec((L, b, s1), lambda i: (0, 0, 0)),
        scratch_shapes=[pltpu.VMEM((L * b, f), jnp.float32)],
        compiler_params=pltpu.CompilerParams(dimension_semantics=("arbitrary",)),
        cost_estimate=cost,
    )(*inputs)                                                             # (L, b, s+1)

    return jnp.transpose(out, (1, 0, 2))                                   # (b, L, s+1)


# ----------------------------------------------------------------------------
# Deterministic parameter init
# ----------------------------------------------------------------------------
def _attn_params(key, f):
    ks = jax.random.split(key, 4)
    std = 0.2
    zb = jnp.zeros((1, f), jnp.float32)
    return {
        "wq": jax.random.normal(ks[0], (f, f), jnp.float32) * std, "bq": zb,
        "wk": jax.random.normal(ks[1], (f, f), jnp.float32) * std, "bk": zb,
        "wv": jax.random.normal(ks[2], (f, f), jnp.float32) * std, "bv": zb,
        "wo": jax.random.normal(ks[3], (f, f), jnp.float32) * std, "bo": zb,
    }


def init_params(key, f, s, L, d_ff):
    k_enc, k_dec_sa, k_dec_ca, k_e1, k_e2, k_d1, k_d2, k_out = jax.random.split(key, 8)
    std = 0.2
    ones = jnp.ones((1, f), jnp.float32)
    zeros = jnp.zeros((1, f), jnp.float32)
    return {
        "encoder": {
            "attn": _attn_params(k_enc, f),
            "ln1_g": ones, "ln1_b": zeros,
            "ffn_w1": jax.random.normal(k_e1, (f, d_ff), jnp.float32) * std,
            "ffn_b1": jnp.zeros((1, d_ff), jnp.float32),
            "ffn_w2": jax.random.normal(k_e2, (d_ff, f), jnp.float32) * std,
            "ffn_b2": zeros,
            "ln2_g": ones, "ln2_b": zeros,
        },
        "decoder": {
            "self_attn": _attn_params(k_dec_sa, f),
            "ln1_g": ones, "ln1_b": zeros,
            "cross_attn": _attn_params(k_dec_ca, f),
            "ln2_g": ones, "ln2_b": zeros,
            "ffn_w1": jax.random.normal(k_d1, (f, d_ff), jnp.float32) * std,
            "ffn_b1": jnp.zeros((1, d_ff), jnp.float32),
            "ffn_w2": jax.random.normal(k_d2, (d_ff, f), jnp.float32) * std,
            "ffn_b2": zeros,
            "ln3_g": ones, "ln3_b": zeros,
        },
        # nn.Linear(f * L, s + 1, bias=False), stored as (in_features, out_features)
        "w_out": jax.random.normal(k_out, (f * L, s + 1), jnp.float32) * std,
    }


# ----------------------------------------------------------------------------
if __name__ == "__main__":
    key = jax.random.PRNGKey(0)
    b, f, s = 2, 8, 8              # input_shape = (f, s) = (8, 8)
    nb_heads = 2
    max_seq_len = 4                # module runs max_seq_len + 1 = 5 decode steps
    scale = True
    # dropout = 0.0 -> identity in eval mode (no kernel needed)

    k_x, k_p = jax.random.split(key)
    xs = jax.random.normal(k_x, (b, f, s), jnp.float32)
    params = init_params(k_p, f, s, max_seq_len + 1, d_ff=2 * f)

    out = auto_reg_transformer_fwd(
        xs, params, nb_heads=nb_heads, max_seq_len=max_seq_len, scale=scale)
    out = jax.block_until_ready(out)
    assert out.shape == (b, max_seq_len + 1, s + 1), out.shape
    assert bool(jnp.all(jnp.isfinite(out)))
    print("KERNEL_OK")
</pallas_src>

<mosaic_0001>
module attributes {stable_mosaic.version = 11 : i64} {
  func.func @kernel(%arg0: i32, %arg1: memref<16x8xf32, #tpu.memory_space<vmem>>, %arg2: memref<2x9x8xf32, #tpu.memory_space<vmem>>, %arg3: memref<5x8x9xf32, #tpu.memory_space<vmem>>, %arg4: memref<16x16xf32, #tpu.memory_space<vmem>>, %arg5: memref<10x10xf32, #tpu.memory_space<vmem>>, %arg6: memref<10x16xf32, #tpu.memory_space<vmem>>, %arg7: memref<8x8xf32, #tpu.memory_space<vmem>>, %arg8: memref<8x8xf32, #tpu.memory_space<vmem>>, %arg9: memref<8x8xf32, #tpu.memory_space<vmem>>, %arg10: memref<1x8xf32, #tpu.memory_space<vmem>>, %arg11: memref<1x8xf32, #tpu.memory_space<vmem>>, %arg12: memref<1x8xf32, #tpu.memory_space<vmem>>, %arg13: memref<8x8xf32, #tpu.memory_space<vmem>>, %arg14: memref<1x8xf32, #tpu.memory_space<vmem>>, %arg15: memref<1x8xf32, #tpu.memory_space<vmem>>, %arg16: memref<1x8xf32, #tpu.memory_space<vmem>>, %arg17: memref<8x16xf32, #tpu.memory_space<vmem>>, %arg18: memref<1x16xf32, #tpu.memory_space<vmem>>, %arg19: memref<16x8xf32, #tpu.memory_space<vmem>>, %arg20: memref<1x8xf32, #tpu.memory_space<vmem>>, %arg21: memref<1x8xf32, #tpu.memory_space<vmem>>, %arg22: memref<1x8xf32, #tpu.memory_space<vmem>>, %arg23: memref<8x8xf32, #tpu.memory_space<vmem>>, %arg24: memref<8x8xf32, #tpu.memory_space<vmem>>, %arg25: memref<8x8xf32, #tpu.memory_space<vmem>>, %arg26: memref<1x8xf32, #tpu.memory_space<vmem>>, %arg27: memref<1x8xf32, #tpu.memory_space<vmem>>, %arg28: memref<1x8xf32, #tpu.memory_space<vmem>>, %arg29: memref<8x8xf32, #tpu.memory_space<vmem>>, %arg30: memref<1x8xf32, #tpu.memory_space<vmem>>, %arg31: memref<1x8xf32, #tpu.memory_space<vmem>>, %arg32: memref<1x8xf32, #tpu.memory_space<vmem>>, %arg33: memref<8x8xf32, #tpu.memory_space<vmem>>, %arg34: memref<8x8xf32, #tpu.memory_space<vmem>>, %arg35: memref<8x8xf32, #tpu.memory_space<vmem>>, %arg36: memref<1x8xf32, #tpu.memory_space<vmem>>, %arg37: memref<1x8xf32, #tpu.memory_space<vmem>>, %arg38: memref<1x8xf32, #tpu.memory_space<vmem>>, %arg39: memref<8x8xf32, #tpu.memory_space<vmem>>, %arg40: memref<1x8xf32, #tpu.memory_space<vmem>>, %arg41: memref<1x8xf32, #tpu.memory_space<vmem>>, %arg42: memref<1x8xf32, #tpu.memory_space<vmem>>, %arg43: memref<8x16xf32, #tpu.memory_space<vmem>>, %arg44: memref<1x16xf32, #tpu.memory_space<vmem>>, %arg45: memref<16x8xf32, #tpu.memory_space<vmem>>, %arg46: memref<1x8xf32, #tpu.memory_space<vmem>>, %arg47: memref<1x8xf32, #tpu.memory_space<vmem>>, %arg48: memref<1x8xf32, #tpu.memory_space<vmem>>, %arg49: memref<5x2x9xf32, #tpu.memory_space<vmem>>, %arg50: memref<10x8xf32, #tpu.memory_space<vmem>>) attributes {dimension_semantics = [#tpu.dimension_semantics<arbitrary>], iteration_bounds = array<i64: 1>, scalar_prefetch = 0 : i64, scratch_operands = 1 : i64, tpu.core_type = #tpu.core_type<tc>, window_params = [{pipeline_mode = #tpu.pipeline_mode<synchronous>, transform_indices = @transform_0, window_bounds = array<i64: 16, 8>}, {pipeline_mode = #tpu.pipeline_mode<synchronous>, transform_indices = @transform_1, window_bounds = array<i64: 2, 9, 8>}, {pipeline_mode = #tpu.pipeline_mode<synchronous>, transform_indices = @transform_2, window_bounds = array<i64: 5, 8, 9>}, {pipeline_mode = #tpu.pipeline_mode<synchronous>, transform_indices = @transform_3, window_bounds = array<i64: 16, 16>}, {pipeline_mode = #tpu.pipeline_mode<synchronous>, transform_indices = @transform_4, window_bounds = array<i64: 10, 10>}, {pipeline_mode = #tpu.pipeline_mode<synchronous>, transform_indices = @transform_5, window_bounds = array<i64: 10, 16>}, {pipeline_mode = #tpu.pipeline_mode<synchronous>, transform_indices = @transform_6, window_bounds = array<i64: 8, 8>}, {pipeline_mode = #tpu.pipeline_mode<synchronous>, transform_indices = @transform_7, window_bounds = array<i64: 8, 8>}, {pipeline_mode = #tpu.pipeline_mode<synchronous>, transform_indices = @transform_8, window_bounds = array<i64: 8, 8>}, {pipeline_mode = #tpu.pipeline_mode<synchronous>, transform_indices = @transform_9, window_bounds = array<i64: 1, 8>}, {pipeline_mode = #tpu.pipeline_mode<synchronous>, transform_indices = @transform_10, window_bounds = array<i64: 1, 8>}, {pipeline_mode = #tpu.pipeline_mode<synchronous>, transform_indices = @transform_11, window_bounds = array<i64: 1, 8>}, {pipeline_mode = #tpu.pipeline_mode<synchronous>, transform_indices = @transform_12, window_bounds = array<i64: 8, 8>}, {pipeline_mode = #tpu.pipeline_mode<synchronous>, transform_indices = @transform_13, window_bounds = array<i64: 1, 8>}, {pipeline_mode = #tpu.pipeline_mode<synchronous>, transform_indices = @transform_14, window_bounds = array<i64: 1, 8>}, {pipeline_mode = #tpu.pipeline_mode<synchronous>, transform_indices = @transform_15, window_bounds = array<i64: 1, 8>}, {pipeline_mode = #tpu.pipeline_mode<synchronous>, transform_indices = @transform_16, window_bounds = array<i64: 8, 16>}, {pipeline_mode = #tpu.pipeline_mode<synchronous>, transform_indices = @transform_17, window_bounds = array<i64: 1, 16>}, {pipeline_mode = #tpu.pipeline_mode<synchronous>, transform_indices = @transform_18, window_bounds = array<i64: 16, 8>}, {pipeline_mode = #tpu.pipeline_mode<synchronous>, transform_indices = @transform_19, window_bounds = array<i64: 1, 8>}, {pipeline_mode = #tpu.pipeline_mode<synchronous>, transform_indices = @transform_20, window_bounds = array<i64: 1, 8>}, {pipeline_mode = #tpu.pipeline_mode<synchronous>, transform_indices = @transform_21, window_bounds = array<i64: 1, 8>}, {pipeline_mode = #tpu.pipeline_mode<synchronous>, transform_indices = @transform_22, window_bounds = array<i64: 8, 8>}, {pipeline_mode = #tpu.pipeline_mode<synchronous>, transform_indices = @transform_23, window_bounds = array<i64: 8, 8>}, {pipeline_mode = #tpu.pipeline_mode<synchronous>, transform_indices = @transform_24, window_bounds = array<i64: 8, 8>}, {pipeline_mode = #tpu.pipeline_mode<synchronous>, transform_indices = @transform_25, window_bounds = array<i64: 1, 8>}, {pipeline_mode = #tpu.pipeline_mode<synchronous>, transform_indices = @transform_26, window_bounds = array<i64: 1, 8>}, {pipeline_mode = #tpu.pipeline_mode<synchronous>, transform_indices = @transform_27, window_bounds = array<i64: 1, 8>}, {pipeline_mode = #tpu.pipeline_mode<synchronous>, transform_indices = @transform_28, window_bounds = array<i64: 8, 8>}, {pipeline_mode = #tpu.pipeline_mode<synchronous>, transform_indices = @transform_29, window_bounds = array<i64: 1, 8>}, {pipeline_mode = #tpu.pipeline_mode<synchronous>, transform_indices = @transform_30, window_bounds = array<i64: 1, 8>}, {pipeline_mode = #tpu.pipeline_mode<synchronous>, transform_indices = @transform_31, window_bounds = array<i64: 1, 8>}, {pipeline_mode = #tpu.pipeline_mode<synchronous>, transform_indices = @transform_32, window_bounds = array<i64: 8, 8>}, {pipeline_mode = #tpu.pipeline_mode<synchronous>, transform_indices = @transform_33, window_bounds = array<i64: 8, 8>}, {pipeline_mode = #tpu.pipeline_mode<synchronous>, transform_indices = @transform_34, window_bounds = array<i64: 8, 8>}, {pipeline_mode = #tpu.pipeline_mode<synchronous>, transform_indices = @transform_35, window_bounds = array<i64: 1, 8>}, {pipeline_mode = #tpu.pipeline_mode<synchronous>, transform_indices = @transform_36, window_bounds = array<i64: 1, 8>}, {pipeline_mode = #tpu.pipeline_mode<synchronous>, transform_indices = @transform_37, window_bounds = array<i64: 1, 8>}, {pipeline_mode = #tpu.pipeline_mode<synchronous>, transform_indices = @transform_38, window_bounds = array<i64: 8, 8>}, {pipeline_mode = #tpu.pipeline_mode<synchronous>, transform_indices = @transform_39, window_bounds = array<i64: 1, 8>}, {pipeline_mode = #tpu.pipeline_mode<synchronous>, transform_indices = @transform_40, window_bounds = array<i64: 1, 8>}, {pipeline_mode = #tpu.pipeline_mode<synchronous>, transform_indices = @transform_41, window_bounds = array<i64: 1, 8>}, {pipeline_mode = #tpu.pipeline_mode<synchronous>, transform_indices = @transform_42, window_bounds = array<i64: 8, 16>}, {pipeline_mode = #tpu.pipeline_mode<synchronous>, transform_indices = @transform_43, window_bounds = array<i64: 1, 16>}, {pipeline_mode = #tpu.pipeline_mode<synchronous>, transform_indices = @transform_44, window_bounds = array<i64: 16, 8>}, {pipeline_mode = #tpu.pipeline_mode<synchronous>, transform_indices = @transform_45, window_bounds = array<i64: 1, 8>}, {pipeline_mode = #tpu.pipeline_mode<synchronous>, transform_indices = @transform_46, window_bounds = array<i64: 1, 8>}, {pipeline_mode = #tpu.pipeline_mode<synchronous>, transform_indices = @transform_47, window_bounds = array<i64: 1, 8>}, {pipeline_mode = #tpu.pipeline_mode<synchronous>, transform_indices = @transform_48, window_bounds = array<i64: 5, 2, 9>}]} {
    %0 = tpu.iota {dimensions = array<i32: 1>} : vector<1x8xi32>
    %c0_i32 = arith.constant 0 : i32
    %1 = vector.broadcast %c0_i32 : i32 to vector<1x8xi32>
    %2 = arith.cmpi sge, %0, %1 : vector<1x8xi32>
    %c4_i32 = arith.constant 4 : i32
    %3 = vector.broadcast %c4_i32 : i32 to vector<1x8xi32>
    %4 = arith.cmpi slt, %0, %3 : vector<1x8xi32>
    %5 = arith.andi %2, %4 : vector<1x8xi1>
    %6 = arith.extui %5 : vector<1x8xi1> to vector<1x8xi32>
    %7 = arith.sitofp %6 : vector<1x8xi32> to vector<1x8xf32>
    %c4_i32_0 = arith.constant 4 : i32
    %8 = vector.broadcast %c4_i32_0 : i32 to vector<1x8xi32>
    %9 = arith.cmpi sge, %0, %8 : vector<1x8xi32>
    %c8_i32 = arith.constant 8 : i32
    %10 = vector.broadcast %c8_i32 : i32 to vector<1x8xi32>
    %11 = arith.cmpi slt, %0, %10 : vector<1x8xi32>
    %12 = arith.andi %9, %11 : vector<1x8xi1>
    %13 = arith.extui %12 : vector<1x8xi1> to vector<1x8xi32>
    %14 = arith.sitofp %13 : vector<1x8xi32> to vector<1x8xf32>
    %c0 = arith.constant 0 : index
    %c0_1 = arith.constant 0 : index
    %15 = vector.load %arg1[%c0, %c0_1] : memref<16x8xf32, #tpu.memory_space<vmem>>, vector<16x8xf32>
    %c0_2 = arith.constant 0 : index
    %c0_3 = arith.constant 0 : index
    %16 = vector.load %arg7[%c0_2, %c0_3] : memref<8x8xf32, #tpu.memory_space<vmem>>, vector<8x8xf32>
    %cst = arith.constant dense<0.000000e+00> : vector<16x8xf32>
    %17 = tpu.matmul %15, %16, %cst {dimension_numbers = #tpu.dot_dimension_numbers<[1], [0], [0], [1], [0, 0, 1, 1], [], []>} : vector<16x8xf32>, vector<8x8xf32>, vector<16x8xf32> -> vector<16x8xf32>
    %c0_4 = arith.constant 0 : index
    %c0_5 = arith.constant 0 : index
    %18 = vector.load %arg10[%c0_4, %c0_5] : memref<1x8xf32, #tpu.memory_space<vmem>>, vector<1x8xf32>
    %19 = vector.broadcast %18 : vector<1x8xf32> to vector<16x8xf32>
    %20 = arith.addf %17, %19 : vector<16x8xf32>
    %c0_6 = arith.constant 0 : index
    %c0_7 = arith.constant 0 : index
    %21 = vector.load %arg8[%c0_6, %c0_7] : memref<8x8xf32, #tpu.memory_space<vmem>>, vector<8x8xf32>
    %cst_8 = arith.constant dense<0.000000e+00> : vector<16x8xf32>
    %22 = tpu.matmul %15, %21, %cst_8 {dimension_numbers = #tpu.dot_dimension_numbers<[1], [0], [0], [1], [0, 0, 1, 1], [], []>} : vector<16x8xf32>, vector<8x8xf32>, vector<16x8xf32> -> vector<16x8xf32>
    %c0_9 = arith.constant 0 : index
    %c0_10 = arith.constant 0 : index
    %23 = vector.load %arg11[%c0_9, %c0_10] : memref<1x8xf32, #tpu.memory_space<vmem>>, vector<1x8xf32>
    %24 = vector.broadcast %23 : vector<1x8xf32> to vector<16x8xf32>
    %25 = arith.addf %22, %24 : vector<16x8xf32>
    %c0_11 = arith.constant 0 : index
    %c0_12 = arith.constant 0 : index
    %26 = vector.load %arg9[%c0_11, %c0_12] : memref<8x8xf32, #tpu.memory_space<vmem>>, vector<8x8xf32>
    %cst_13 = arith.constant dense<0.000000e+00> : vector<16x8xf32>
    %27 = tpu.matmul %15, %26, %cst_13 {dimension_numbers = #tpu.dot_dimension_numbers<[1], [0], [0], [1], [0, 0, 1, 1], [], []>} : vector<16x8xf32>, vector<8x8xf32>, vector<16x8xf32> -> vector<16x8xf32>
    %c0_14 = arith.constant 0 : index
    %c0_15 = arith.constant 0 : index
    %28 = vector.load %arg12[%c0_14, %c0_15] : memref<1x8xf32, #tpu.memory_space<vmem>>, vector<1x8xf32>
    %29 = vector.broadcast %28 : vector<1x8xf32> to vector<16x8xf32>
    %30 = arith.addf %27, %29 : vector<16x8xf32>
    %c0_16 = arith.constant 0 : index
    %c0_17 = arith.constant 0 : index
    %31 = vector.load %arg4[%c0_16, %c0_17] : memref<16x16xf32, #tpu.memory_space<vmem>>, vector<16x16xf32>
    %cst_18 = arith.constant 0.000000e+00 : f32
    %32 = vector.broadcast %cst_18 : f32 to vector<16x8xf32>
    %33 = vector.broadcast %7 : vector<1x8xf32> to vector<16x8xf32>
    %34 = arith.mulf %20, %33 : vector<16x8xf32>
    %cst_19 = arith.constant dense<0.000000e+00> : vector<16x16xf32>
    %35 = tpu.matmul %34, %25, %cst_19 {dimension_numbers = #tpu.dot_dimension_numbers<[1], [1], [0], [0], [0, 0, 1, 0], [], []>} : vector<16x8xf32>, vector<16x8xf32>, vector<16x16xf32> -> vector<16x16xf32>
    %cst_20 = arith.constant 5.000000e-01 : f32
    %36 = vector.broadcast %cst_20 : f32 to vector<16x16xf32>
    %37 = arith.mulf %35, %36 : vector<16x16xf32>
    %38 = arith.addf %37, %31 : vector<16x16xf32>
    %cst_21 = arith.constant dense<0xFF800000> : vector<16xf32>
    %39 = vector.multi_reduction <maximumf>, %38, %cst_21 [1] : vector<16x16xf32> to vector<16xf32>
    %40 = vector.shape_cast %39 : vector<16xf32> to vector<16x1xf32>
    %41 = vector.broadcast %40 : vector<16x1xf32> to vector<16x16xf32>
    %42 = arith.subf %38, %41 : vector<16x16xf32>
    %43 = math.exp %42 : vector<16x16xf32>
    %cst_22 = arith.constant dense<0.000000e+00> : vector<16xf32>
    %44 = vector.multi_reduction <add>, %43, %cst_22 [1] : vector<16x16xf32> to vector<16xf32>
    %45 = vector.shape_cast %44 : vector<16xf32> to vector<16x1xf32>
    %46 = tpu.reciprocal %45 {approx = true} : vector<16x1xf32> -> vector<16x1xf32>
    %47 = vector.broadcast %46 : vector<16x1xf32> to vector<16x16xf32>
    %48 = arith.mulf %43, %47 : vector<16x16xf32>
    %49 = vector.broadcast %7 : vector<1x8xf32> to vector<16x8xf32>
    %50 = arith.mulf %30, %49 : vector<16x8xf32>
    %cst_23 = arith.constant dense<0.000000e+00> : vector<16x8xf32>
    %51 = tpu.matmul %48, %50, %cst_23 {dimension_numbers = #tpu.dot_dimension_numbers<[1], [0], [0], [1], [0, 0, 1, 1], [], []>} : vector<16x16xf32>, vector<16x8xf32>, vector<16x8xf32> -> vector<16x8xf32>
    %52 = arith.addf %32, %51 : vector<16x8xf32>
    %53 = vector.broadcast %14 : vector<1x8xf32> to vector<16x8xf32>
    %54 = arith.mulf %20, %53 : vector<16x8xf32>
    %cst_24 = arith.constant dense<0.000000e+00> : vector<16x16xf32>
    %55 = tpu.matmul %54, %25, %cst_24 {dimension_numbers = #tpu.dot_dimension_numbers<[1], [1], [0], [0], [0, 0, 1, 0], [], []>} : vector<16x8xf32>, vector<16x8xf32>, vector<16x16xf32> -> vector<16x16xf32>
    %cst_25 = arith.constant 5.000000e-01 : f32
    %56 = vector.broadcast %cst_25 : f32 to vector<16x16xf32>
    %57 = arith.mulf %55, %56 : vector<16x16xf32>
    %58 = arith.addf %57, %31 : vector<16x16xf32>
    %cst_26 = arith.constant dense<0xFF800000> : vector<16xf32>
    %59 = vector.multi_reduction <maximumf>, %58, %cst_26 [1] : vector<16x16xf32> to vector<16xf32>
    %60 = vector.shape_cast %59 : vector<16xf32> to vector<16x1xf32>
    %61 = vector.broadcast %60 : vector<16x1xf32> to vector<16x16xf32>
    %62 = arith.subf %58, %61 : vector<16x16xf32>
    %63 = math.exp %62 : vector<16x16xf32>
    %cst_27 = arith.constant dense<0.000000e+00> : vector<16xf32>
    %64 = vector.multi_reduction <add>, %63, %cst_27 [1] : vector<16x16xf32> to vector<16xf32>
    %65 = vector.shape_cast %64 : vector<16xf32> to vector<16x1xf32>
    %66 = tpu.reciprocal %65 {approx = true} : vector<16x1xf32> -> vector<16x1xf32>
    %67 = vector.broadcast %66 : vector<16x1xf32> to vector<16x16xf32>
    %68 = arith.mulf %63, %67 : vector<16x16xf32>
    %69 = vector.broadcast %14 : vector<1x8xf32> to vector<16x8xf32>
    %70 = arith.mulf %30, %69 : vector<16x8xf32>
    %cst_28 = arith.constant dense<0.000000e+00> : vector<16x8xf32>
    %71 = tpu.matmul %68, %70, %cst_28 {dimension_numbers = #tpu.dot_dimension_numbers<[1], [0], [0], [1], [0, 0, 1, 1], [], []>} : vector<16x16xf32>, vector<16x8xf32>, vector<16x8xf32> -> vector<16x8xf32>
    %72 = arith.addf %52, %71 : vector<16x8xf32>
    %c0_29 = arith.constant 0 : index
    %c0_30 = arith.constant 0 : index
    %73 = vector.load %arg13[%c0_29, %c0_30] : memref<8x8xf32, #tpu.memory_space<vmem>>, vector<8x8xf32>
    %cst_31 = arith.constant dense<0.000000e+00> : vector<16x8xf32>
    %74 = tpu.matmul %72, %73, %cst_31 {dimension_numbers = #tpu.dot_dimension_numbers<[1], [0], [0], [1], [0, 0, 1, 1], [], []>} : vector<16x8xf32>, vector<8x8xf32>, vector<16x8xf32> -> vector<16x8xf32>
    %c0_32 = arith.constant 0 : index
    %c0_33 = arith.constant 0 : index
    %75 = vector.load %arg14[%c0_32, %c0_33] : memref<1x8xf32, #tpu.memory_space<vmem>>, vector<1x8xf32>
    %76 = vector.broadcast %75 : vector<1x8xf32> to vector<16x8xf32>
    %77 = arith.addf %74, %76 : vector<16x8xf32>
    %78 = arith.addf %15, %77 : vector<16x8xf32>
    %c0_34 = arith.constant 0 : index
    %c0_35 = arith.constant 0 : index
    %79 = vector.load %arg15[%c0_34, %c0_35] : memref<1x8xf32, #tpu.memory_space<vmem>>, vector<1x8xf32>
    %c0_36 = arith.constant 0 : index
    %c0_37 = arith.constant 0 : index
    %80 = vector.load %arg16[%c0_36, %c0_37] : memref<1x8xf32, #tpu.memory_space<vmem>>, vector<1x8xf32>
    %cst_38 = arith.constant dense<0.000000e+00> : vector<16xf32>
    %81 = vector.multi_reduction <add>, %78, %cst_38 [1] : vector<16x8xf32> to vector<16xf32>
    %82 = vector.shape_cast %81 : vector<16xf32> to vector<16x1xf32>
    %cst_39 = arith.constant 8.000000e+00 : f32
    %83 = vector.broadcast %cst_39 : f32 to vector<16x1xf32>
    %84 = arith.divf %82, %83 : vector<16x1xf32>
    %85 = vector.broadcast %84 : vector<16x1xf32> to vector<16x8xf32>
    %86 = arith.subf %78, %85 : vector<16x8xf32>
    %87 = arith.mulf %86, %86 : vector<16x8xf32>
    %cst_40 = arith.constant dense<0.000000e+00> : vector<16xf32>
    %88 = vector.multi_reduction <add>, %87, %cst_40 [1] : vector<16x8xf32> to vector<16xf32>
    %89 = vector.shape_cast %88 : vector<16xf32> to vector<16x1xf32>
    %cst_41 = arith.constant 8.000000e+00 : f32
    %90 = vector.broadcast %cst_41 : f32 to vector<16x1xf32>
    %91 = arith.divf %89, %90 : vector<16x1xf32>
    %92 = vector.broadcast %84 : vector<16x1xf32> to vector<16x8xf32>
    %93 = arith.subf %78, %92 : vector<16x8xf32>
    %cst_42 = arith.constant 9.99999974E-6 : f32
    %94 = vector.broadcast %cst_42 : f32 to vector<16x1xf32>
    %95 = arith.addf %91, %94 : vector<16x1xf32>
    %96 = math.rsqrt %95 : vector<16x1xf32>
    %97 = vector.broadcast %96 : vector<16x1xf32> to vector<16x8xf32>
    %98 = arith.mulf %93, %97 : vector<16x8xf32>
    %99 = vector.broadcast %79 : vector<1x8xf32> to vector<16x8xf32>
    %100 = arith.mulf %98, %99 : vector<16x8xf32>
    %101 = vector.broadcast %80 : vector<1x8xf32> to vector<16x8xf32>
    %102 = arith.addf %100, %101 : vector<16x8xf32>
    %c0_43 = arith.constant 0 : index
    %c0_44 = arith.constant 0 : index
    %103 = vector.load %arg17[%c0_43, %c0_44] : memref<8x16xf32, #tpu.memory_space<vmem>>, vector<8x16xf32>
    %cst_45 = arith.constant dense<0.000000e+00> : vector<16x16xf32>
    %104 = tpu.matmul %102, %103, %cst_45 {dimension_numbers = #tpu.dot_dimension_numbers<[1], [0], [0], [1], [0, 0, 1, 1], [], []>} : vector<16x8xf32>, vector<8x16xf32>, vector<16x16xf32> -> vector<16x16xf32>
    %c0_46 = arith.constant 0 : index
    %c0_47 = arith.constant 0 : index
    %105 = vector.load %arg18[%c0_46, %c0_47] : memref<1x16xf32, #tpu.memory_space<vmem>>, vector<1x16xf32>
    %106 = vector.broadcast %105 : vector<1x16xf32> to vector<16x16xf32>
    %107 = arith.addf %104, %106 : vector<16x16xf32>
    %cst_48 = arith.constant 0.000000e+00 : f32
    %108 = vector.broadcast %cst_48 : f32 to vector<16x16xf32>
    %109 = arith.maximumf %107, %108 : vector<16x16xf32>
    %c0_49 = arith.constant 0 : index
    %c0_50 = arith.constant 0 : index
    %110 = vector.load %arg19[%c0_49, %c0_50] : memref<16x8xf32, #tpu.memory_space<vmem>>, vector<16x8xf32>
    %cst_51 = arith.constant dense<0.000000e+00> : vector<16x8xf32>
    %111 = tpu.matmul %109, %110, %cst_51 {dimension_numbers = #tpu.dot_dimension_numbers<[1], [0], [0], [1], [0, 0, 1, 1], [], []>} : vector<16x16xf32>, vector<16x8xf32>, vector<16x8xf32> -> vector<16x8xf32>
    %c0_52 = arith.constant 0 : index
    %c0_53 = arith.constant 0 : index
    %112 = vector.load %arg20[%c0_52, %c0_53] : memref<1x8xf32, #tpu.memory_space<vmem>>, vector<1x8xf32>
    %113 = vector.broadcast %112 : vector<1x8xf32> to vector<16x8xf32>
    %114 = arith.addf %111, %113 : vector<16x8xf32>
    %115 = arith.addf %102, %114 : vector<16x8xf32>
    %c0_54 = arith.constant 0 : index
    %c0_55 = arith.constant 0 : index
    %116 = vector.load %arg21[%c0_54, %c0_55] : memref<1x8xf32, #tpu.memory_space<vmem>>, vector<1x8xf32>
    %c0_56 = arith.constant 0 : index
    %c0_57 = arith.constant 0 : index
    %117 = vector.load %arg22[%c0_56, %c0_57] : memref<1x8xf32, #tpu.memory_space<vmem>>, vector<1x8xf32>
    %cst_58 = arith.constant dense<0.000000e+00> : vector<16xf32>
    %118 = vector.multi_reduction <add>, %115, %cst_58 [1] : vector<16x8xf32> to vector<16xf32>
    %119 = vector.shape_cast %118 : vector<16xf32> to vector<16x1xf32>
    %cst_59 = arith.constant 8.000000e+00 : f32
    %120 = vector.broadcast %cst_59 : f32 to vector<16x1xf32>
    %121 = arith.divf %119, %120 : vector<16x1xf32>
    %122 = vector.broadcast %121 : vector<16x1xf32> to vector<16x8xf32>
    %123 = arith.subf %115, %122 : vector<16x8xf32>
    %124 = arith.mulf %123, %123 : vector<16x8xf32>
    %cst_60 = arith.constant dense<0.000000e+00> : vector<16xf32>
    %125 = vector.multi_reduction <add>, %124, %cst_60 [1] : vector<16x8xf32> to vector<16xf32>
    %126 = vector.shape_cast %125 : vector<16xf32> to vector<16x1xf32>
    %cst_61 = arith.constant 8.000000e+00 : f32
    %127 = vector.broadcast %cst_61 : f32 to vector<16x1xf32>
    %128 = arith.divf %126, %127 : vector<16x1xf32>
    %129 = vector.broadcast %121 : vector<16x1xf32> to vector<16x8xf32>
    %130 = arith.subf %115, %129 : vector<16x8xf32>
    %cst_62 = arith.constant 9.99999974E-6 : f32
    %131 = vector.broadcast %cst_62 : f32 to vector<16x1xf32>
    %132 = arith.addf %128, %131 : vector<16x1xf32>
    %133 = math.rsqrt %132 : vector<16x1xf32>
    %134 = vector.broadcast %133 : vector<16x1xf32> to vector<16x8xf32>
    %135 = arith.mulf %130, %134 : vector<16x8xf32>
    %136 = vector.broadcast %116 : vector<1x8xf32> to vector<16x8xf32>
    %137 = arith.mulf %135, %136 : vector<16x8xf32>
    %138 = vector.broadcast %117 : vector<1x8xf32> to vector<16x8xf32>
    %139 = arith.addf %137, %138 : vector<16x8xf32>
    %c0_63 = arith.constant 0 : index
    %c0_64 = arith.constant 0 : index
    %140 = vector.load %arg34[%c0_63, %c0_64] : memref<8x8xf32, #tpu.memory_space<vmem>>, vector<8x8xf32>
    %cst_65 = arith.constant dense<0.000000e+00> : vector<16x8xf32>
    %141 = tpu.matmul %139, %140, %cst_65 {dimension_numbers = #tpu.dot_dimension_numbers<[1], [0], [0], [1], [0, 0, 1, 1], [], []>} : vector<16x8xf32>, vector<8x8xf32>, vector<16x8xf32> -> vector<16x8xf32>
    %c0_66 = arith.constant 0 : index
    %c0_67 = arith.constant 0 : index
    %142 = vector.load %arg37[%c0_66, %c0_67] : memref<1x8xf32, #tpu.memory_space<vmem>>, vector<1x8xf32>
    %143 = vector.broadcast %142 : vector<1x8xf32> to vector<16x8xf32>
    %144 = arith.addf %141, %143 : vector<16x8xf32>
    %c0_68 = arith.constant 0 : index
    %c0_69 = arith.constant 0 : index
    %145 = vector.load %arg35[%c0_68, %c0_69] : memref<8x8xf32, #tpu.memory_space<vmem>>, vector<8x8xf32>
    %cst_70 = arith.constant dense<0.000000e+00> : vector<16x8xf32>
    %146 = tpu.matmul %139, %145, %cst_70 {dimension_numbers = #tpu.dot_dimension_numbers<[1], [0], [0], [1], [0, 0, 1, 1], [], []>} : vector<16x8xf32>, vector<8x8xf32>, vector<16x8xf32> -> vector<16x8xf32>
    %c0_71 = arith.constant 0 : index
    %c0_72 = arith.constant 0 : index
    %147 = vector.load %arg38[%c0_71, %c0_72] : memref<1x8xf32, #tpu.memory_space<vmem>>, vector<1x8xf32>
    %148 = vector.broadcast %147 : vector<1x8xf32> to vector<16x8xf32>
    %149 = arith.addf %146, %148 : vector<16x8xf32>
    %c0_73 = arith.constant 0 : index
    %c0_74 = arith.constant 0 : index
    %150 = vector.load %arg5[%c0_73, %c0_74] : memref<10x10xf32, #tpu.memory_space<vmem>>, vector<10x10xf32>
    %c0_75 = arith.constant 0 : index
    %c0_76 = arith.constant 0 : index
    %151 = vector.load %arg6[%c0_75, %c0_76] : memref<10x16xf32, #tpu.memory_space<vmem>>, vector<10x16xf32>
    %c0_77 = arith.constant 0 : index
    %c0_78 = arith.constant 0 : index
    %152 = vector.load %arg23[%c0_77, %c0_78] : memref<8x8xf32, #tpu.memory_space<vmem>>, vector<8x8xf32>
    %c0_79 = arith.constant 0 : index
    %c0_80 = arith.constant 0 : index
    %153 = vector.load %arg24[%c0_79, %c0_80] : memref<8x8xf32, #tpu.memory_space<vmem>>, vector<8x8xf32>
    %c0_81 = arith.constant 0 : index
    %c0_82 = arith.constant 0 : index
    %154 = vector.load %arg25[%c0_81, %c0_82] : memref<8x8xf32, #tpu.memory_space<vmem>>, vector<8x8xf32>
    %c0_83 = arith.constant 0 : index
    %c0_84 = arith.constant 0 : index
    %155 = vector.load %arg26[%c0_83, %c0_84] : memref<1x8xf32, #tpu.memory_space<vmem>>, vector<1x8xf32>
    %c0_85 = arith.constant 0 : index
    %c0_86 = arith.constant 0 : index
    %156 = vector.load %arg27[%c0_85, %c0_86] : memref<1x8xf32, #tpu.memory_space<vmem>>, vector<1x8xf32>
    %c0_87 = arith.constant 0 : index
    %c0_88 = arith.constant 0 : index
    %157 = vector.load %arg28[%c0_87, %c0_88] : memref<1x8xf32, #tpu.memory_space<vmem>>, vector<1x8xf32>
    %c0_89 = arith.constant 0 : index
    %c0_90 = arith.constant 0 : index
    %158 = vector.load %arg29[%c0_89, %c0_90] : memref<8x8xf32, #tpu.memory_space<vmem>>, vector<8x8xf32>
    %c0_91 = arith.constant 0 : index
    %c0_92 = arith.constant 0 : index
    %159 = vector.load %arg30[%c0_91, %c0_92] : memref<1x8xf32, #tpu.memory_space<vmem>>, vector<1x8xf32>
    %c0_93 = arith.constant 0 : index
    %c0_94 = arith.constant 0 : index
    %160 = vector.load %arg31[%c0_93, %c0_94] : memref<1x8xf32, #tpu.memory_space<vmem>>, vector<1x8xf32>
    %c0_95 = arith.constant 0 : index
    %c0_96 = arith.constant 0 : index
    %161 = vector.load %arg32[%c0_95, %c0_96] : memref<1x8xf32, #tpu.memory_space<vmem>>, vector<1x8xf32>
    %c0_97 = arith.constant 0 : index
    %c0_98 = arith.constant 0 : index
    %162 = vector.load %arg33[%c0_97, %c0_98] : memref<8x8xf32, #tpu.memory_space<vmem>>, vector<8x8xf32>
    %c0_99 = arith.constant 0 : index
    %c0_100 = arith.constant 0 : index
    %163 = vector.load %arg36[%c0_99, %c0_100] : memref<1x8xf32, #tpu.memory_space<vmem>>, vector<1x8xf32>
    %c0_101 = arith.constant 0 : index
    %c0_102 = arith.constant 0 : index
    %164 = vector.load %arg39[%c0_101, %c0_102] : memref<8x8xf32, #tpu.memory_space<vmem>>, vector<8x8xf32>
    %c0_103 = arith.constant 0 : index
    %c0_104 = arith.constant 0 : index
    %165 = vector.load %arg40[%c0_103, %c0_104] : memref<1x8xf32, #tpu.memory_space<vmem>>, vector<1x8xf32>
    %c0_105 = arith.constant 0 : index
    %c0_106 = arith.constant 0 : index
    %166 = vector.load %arg41[%c0_105, %c0_106] : memref<1x8xf32, #tpu.memory_space<vmem>>, vector<1x8xf32>
    %c0_107 = arith.constant 0 : index
    %c0_108 = arith.constant 0 : index
    %167 = vector.load %arg42[%c0_107, %c0_108] : memref<1x8xf32, #tpu.memory_space<vmem>>, vector<1x8xf32>
    %c0_109 = arith.constant 0 : index
    %c0_110 = arith.constant 0 : index
    %168 = vector.load %arg43[%c0_109, %c0_110] : memref<8x16xf32, #tpu.memory_space<vmem>>, vector<8x16xf32>
    %c0_111 = arith.constant 0 : index
    %c0_112 = arith.constant 0 : index
    %169 = vector.load %arg44[%c0_111, %c0_112] : memref<1x16xf32, #tpu.memory_space<vmem>>, vector<1x16xf32>
    %c0_113 = arith.constant 0 : index
    %c0_114 = arith.constant 0 : index
    %170 = vector.load %arg45[%c0_113, %c0_114] : memref<16x8xf32, #tpu.memory_space<vmem>>, vector<16x8xf32>
    %c0_115 = arith.constant 0 : index
    %c0_116 = arith.constant 0 : index
    %171 = vector.load %arg46[%c0_115, %c0_116] : memref<1x8xf32, #tpu.memory_space<vmem>>, vector<1x8xf32>
    %c0_117 = arith.constant 0 : index
    %c0_118 = arith.constant 0 : index
    %172 = vector.load %arg47[%c0_117, %c0_118] : memref<1x8xf32, #tpu.memory_space<vmem>>, vector<1x8xf32>
    %c0_119 = arith.constant 0 : index
    %c0_120 = arith.constant 0 : index
    %173 = vector.load %arg48[%c0_119, %c0_120] : memref<1x8xf32, #tpu.memory_space<vmem>>, vector<1x8xf32>
    %c0_121 = arith.constant 0 : index
    %c0_122 = arith.constant 0 : index
    %c0_123 = arith.constant 0 : index
    %174 = vector.load %arg3[%c0_121, %c0_122, %c0_123] : memref<5x8x9xf32, #tpu.memory_space<vmem>>, vector<5x8x9xf32>
    %cst_124 = arith.constant 0.000000e+00 : f32
    %175 = vector.broadcast %cst_124 : f32 to vector<10x8xf32>
    %c0_125 = arith.constant 0 : index
    %c0_126 = arith.constant 0 : index
    %176 = vector.load %arg50[%c0_125, %c0_126] : memref<10x8xf32, #tpu.memory_space<vmem>>, vector<10x8xf32>
    tpu.vector_store %arg50[%c0_125, %c0_126], %175 {strides = array<i32>} : memref<10x8xf32, #tpu.memory_space<vmem>>, vector<10x8xf32>,
    %c0_i32_127 = arith.constant 0 : i32
    %c5_i32 = arith.constant 5 : i32
    %177 = arith.addi %c0_i32_127, %c5_i32 : i32
    %c1_i32 = arith.constant 1 : i32
    scf.for %arg51 = %c0_i32_127 to %177 step %c1_i32  : i32 {
      %c0_129 = arith.constant 0 : index
      %c0_130 = arith.constant 0 : index
      %178 = vector.load %arg50[%c0_129, %c0_130] : memref<10x8xf32, #tpu.memory_space<vmem>>, vector<10x8xf32>
      %cst_131 = arith.constant dense<0.000000e+00> : vector<10x8xf32>
      %179 = tpu.matmul %178, %152, %cst_131 {dimension_numbers = #tpu.dot_dimension_numbers<[1], [0], [0], [1], [0, 0, 1, 1], [], []>} : vector<10x8xf32>, vector<8x8xf32>, vector<10x8xf32> -> vector<10x8xf32>
      %180 = vector.broadcast %155 : vector<1x8xf32> to vector<10x8xf32>
      %181 = arith.addf %179, %180 : vector<10x8xf32>
      %cst_132 = arith.constant dense<0.000000e+00> : vector<10x8xf32>
      %182 = tpu.matmul %178, %153, %cst_132 {dimension_numbers = #tpu.dot_dimension_numbers<[1], [0], [0], [1], [0, 0, 1, 1], [], []>} : vector<10x8xf32>, vector<8x8xf32>, vector<10x8xf32> -> vector<10x8xf32>
      %183 = vector.broadcast %156 : vector<1x8xf32> to vector<10x8xf32>
      %184 = arith.addf %182, %183 : vector<10x8xf32>
      %cst_133 = arith.constant dense<0.000000e+00> : vector<10x8xf32>
      %185 = tpu.matmul %178, %154, %cst_133 {dimension_numbers = #tpu.dot_dimension_numbers<[1], [0], [0], [1], [0, 0, 1, 1], [], []>} : vector<10x8xf32>, vector<8x8xf32>, vector<10x8xf32> -> vector<10x8xf32>
      %186 = vector.broadcast %157 : vector<1x8xf32> to vector<10x8xf32>
      %187 = arith.addf %185, %186 : vector<10x8xf32>
      %cst_134 = arith.constant 0.000000e+00 : f32
      %188 = vector.broadcast %cst_134 : f32 to vector<10x8xf32>
      %189 = vector.broadcast %7 : vector<1x8xf32> to vector<10x8xf32>
      %190 = arith.mulf %181, %189 : vector<10x8xf32>
      %cst_135 = arith.constant dense<0.000000e+00> : vector<10x10xf32>
      %191 = tpu.matmul %190, %184, %cst_135 {dimension_numbers = #tpu.dot_dimension_numbers<[1], [1], [0], [0], [0, 0, 1, 0], [], []>} : vector<10x8xf32>, vector<10x8xf32>, vector<10x10xf32> -> vector<10x10xf32>
      %cst_136 = arith.constant 5.000000e-01 : f32
      %192 = vector.broadcast %cst_136 : f32 to vector<10x10xf32>
      %193 = arith.mulf %191, %192 : vector<10x10xf32>
      %194 = arith.addf %193, %150 : vector<10x10xf32>
      %cst_137 = arith.constant dense<0xFF800000> : vector<10xf32>
      %195 = vector.multi_reduction <maximumf>, %194, %cst_137 [1] : vector<10x10xf32> to vector<10xf32>
      %196 = vector.shape_cast %195 : vector<10xf32> to vector<10x1xf32>
      %197 = vector.broadcast %196 : vector<10x1xf32> to vector<10x10xf32>
      %198 = arith.subf %194, %197 : vector<10x10xf32>
      %199 = math.exp %198 : vector<10x10xf32>
      %cst_138 = arith.constant dense<0.000000e+00> : vector<10xf32>
      %200 = vector.multi_reduction <add>, %199, %cst_138 [1] : vector<10x10xf32> to vector<10xf32>
      %201 = vector.shape_cast %200 : vector<10xf32> to vector<10x1xf32>
      %202 = tpu.reciprocal %201 {approx = true} : vector<10x1xf32> -> vector<10x1xf32>
      %203 = vector.broadcast %202 : vector<10x1xf32> to vector<10x10xf32>
      %204 = arith.mulf %199, %203 : vector<10x10xf32>
      %205 = vector.broadcast %7 : vector<1x8xf32> to vector<10x8xf32>
      %206 = arith.mulf %187, %205 : vector<10x8xf32>
      %cst_139 = arith.constant dense<0.000000e+00> : vector<10x8xf32>
      %207 = tpu.matmul %204, %206, %cst_139 {dimension_numbers = #tpu.dot_dimension_numbers<[1], [0], [0], [1], [0, 0, 1, 1], [], []>} : vector<10x10xf32>, vector<10x8xf32>, vector<10x8xf32> -> vector<10x8xf32>
      %208 = arith.addf %188, %207 : vector<10x8xf32>
      %209 = vector.broadcast %14 : vector<1x8xf32> to vector<10x8xf32>
      %210 = arith.mulf %181, %209 : vector<10x8xf32>
      %cst_140 = arith.constant dense<0.000000e+00> : vector<10x10xf32>
      %211 = tpu.matmul %210, %184, %cst_140 {dimension_numbers = #tpu.dot_dimension_numbers<[1], [1], [0], [0], [0, 0, 1, 0], [], []>} : vector<10x8xf32>, vector<10x8xf32>, vector<10x10xf32> -> vector<10x10xf32>
      %cst_141 = arith.constant 5.000000e-01 : f32
      %212 = vector.broadcast %cst_141 : f32 to vector<10x10xf32>
      %213 = arith.mulf %211, %212 : vector<10x10xf32>
      %214 = arith.addf %213, %150 : vector<10x10xf32>
      %cst_142 = arith.constant dense<0xFF800000> : vector<10xf32>
      %215 = vector.multi_reduction <maximumf>, %214, %cst_142 [1] : vector<10x10xf32> to vector<10xf32>
      %216 = vector.shape_cast %215 : vector<10xf32> to vector<10x1xf32>
      %217 = vector.broadcast %216 : vector<10x1xf32> to vector<10x10xf32>
      %218 = arith.subf %214, %217 : vector<10x10xf32>
      %219 = math.exp %218 : vector<10x10xf32>
      %cst_143 = arith.constant dense<0.000000e+00> : vector<10xf32>
      %220 = vector.multi_reduction <add>, %219, %cst_143 [1] : vector<10x10xf32> to vector<10xf32>
      %221 = vector.shape_cast %220 : vector<10xf32> to vector<10x1xf32>
      %222 = tpu.reciprocal %221 {approx = true} : vector<10x1xf32> -> vector<10x1xf32>
      %223 = vector.broadcast %222 : vector<10x1xf32> to vector<10x10xf32>
      %224 = arith.mulf %219, %223 : vector<10x10xf32>
      %225 = vector.broadcast %14 : vector<1x8xf32> to vector<10x8xf32>
      %226 = arith.mulf %187, %225 : vector<10x8xf32>
      %cst_144 = arith.constant dense<0.000000e+00> : vector<10x8xf32>
      %227 = tpu.matmul %224, %226, %cst_144 {dimension_numbers = #tpu.dot_dimension_numbers<[1], [0], [0], [1], [0, 0, 1, 1], [], []>} : vector<10x10xf32>, vector<10x8xf32>, vector<10x8xf32> -> vector<10x8xf32>
      %228 = arith.addf %208, %227 : vector<10x8xf32>
      %cst_145 = arith.constant dense<0.000000e+00> : vector<10x8xf32>
      %229 = tpu.matmul %228, %158, %cst_145 {dimension_numbers = #tpu.dot_dimension_numbers<[1], [0], [0], [1], [0, 0, 1, 1], [], []>} : vector<10x8xf32>, vector<8x8xf32>, vector<10x8xf32> -> vector<10x8xf32>
      %230 = vector.broadcast %159 : vector<1x8xf32> to vector<10x8xf32>
      %231 = arith.addf %229, %230 : vector<10x8xf32>
      %232 = arith.addf %178, %231 : vector<10x8xf32>
      %cst_146 = arith.constant dense<0.000000e+00> : vector<10xf32>
      %233 = vector.multi_reduction <add>, %232, %cst_146 [1] : vector<10x8xf32> to vector<10xf32>
      %234 = vector.shape_cast %233 : vector<10xf32> to vector<10x1xf32>
      %cst_147 = arith.constant 8.000000e+00 : f32
      %235 = vector.broadcast %cst_147 : f32 to vector<10x1xf32>
      %236 = arith.divf %234, %235 : vector<10x1xf32>
      %237 = vector.broadcast %236 : vector<10x1xf32> to vector<10x8xf32>
      %238 = arith.subf %232, %237 : vector<10x8xf32>
      %239 = arith.mulf %238, %238 : vector<10x8xf32>
      %cst_148 = arith.constant dense<0.000000e+00> : vector<10xf32>
      %240 = vector.multi_reduction <add>, %239, %cst_148 [1] : vector<10x8xf32> to vector<10xf32>
      %241 = vector.shape_cast %240 : vector<10xf32> to vector<10x1xf32>
      %cst_149 = arith.constant 8.000000e+00 : f32
      %242 = vector.broadcast %cst_149 : f32 to vector<10x1xf32>
      %243 = arith.divf %241, %242 : vector<10x1xf32>
      %244 = vector.broadcast %236 : vector<10x1xf32> to vector<10x8xf32>
      %245 = arith.subf %232, %244 : vector<10x8xf32>
      %cst_150 = arith.constant 9.99999974E-6 : f32
      %246 = vector.broadcast %cst_150 : f32 to vector<10x1xf32>
      %247 = arith.addf %243, %246 : vector<10x1xf32>
      %248 = math.rsqrt %247 : vector<10x1xf32>
      %249 = vector.broadcast %248 : vector<10x1xf32> to vector<10x8xf32>
      %250 = arith.mulf %245, %249 : vector<10x8xf32>
      %251 = vector.broadcast %160 : vector<1x8xf32> to vector<10x8xf32>
      %252 = arith.mulf %250, %251 : vector<10x8xf32>
      %253 = vector.broadcast %161 : vector<1x8xf32> to vector<10x8xf32>
      %254 = arith.addf %252, %253 : vector<10x8xf32>
      %cst_151 = arith.constant dense<0.000000e+00> : vector<10x8xf32>
      %255 = tpu.matmul %254, %162, %cst_151 {dimension_numbers = #tpu.dot_dimension_numbers<[1], [0], [0], [1], [0, 0, 1, 1], [], []>} : vector<10x8xf32>, vector<8x8xf32>, vector<10x8xf32> -> vector<10x8xf32>
      %256 = vector.broadcast %163 : vector<1x8xf32> to vector<10x8xf32>
      %257 = arith.addf %255, %256 : vector<10x8xf32>
      %cst_152 = arith.constant 0.000000e+00 : f32
      %258 = vector.broadcast %cst_152 : f32 to vector<10x8xf32>
      %259 = vector.broadcast %7 : vector<1x8xf32> to vector<10x8xf32>
      %260 = arith.mulf %257, %259 : vector<10x8xf32>
      %cst_153 = arith.constant dense<0.000000e+00> : vector<10x16xf32>
      %261 = tpu.matmul %260, %144, %cst_153 {dimension_numbers = #tpu.dot_dimension_numbers<[1], [1], [0], [0], [0, 0, 1, 0], [], []>} : vector<10x8xf32>, vector<16x8xf32>, vector<10x16xf32> -> vector<10x16xf32>
      %cst_154 = arith.constant 5.000000e-01 : f32
      %262 = vector.broadcast %cst_154 : f32 to vector<10x16xf32>
      %263 = arith.mulf %261, %262 : vector<10x16xf32>
      %264 = arith.addf %263, %151 : vector<10x16xf32>
      %cst_155 = arith.constant dense<0xFF800000> : vector<10xf32>
      %265 = vector.multi_reduction <maximumf>, %264, %cst_155 [1] : vector<10x16xf32> to vector<10xf32>
      %266 = vector.shape_cast %265 : vector<10xf32> to vector<10x1xf32>
      %267 = vector.broadcast %266 : vector<10x1xf32> to vector<10x16xf32>
      %268 = arith.subf %264, %267 : vector<10x16xf32>
      %269 = math.exp %268 : vector<10x16xf32>
      %cst_156 = arith.constant dense<0.000000e+00> : vector<10xf32>
      %270 = vector.multi_reduction <add>, %269, %cst_156 [1] : vector<10x16xf32> to vector<10xf32>
      %271 = vector.shape_cast %270 : vector<10xf32> to vector<10x1xf32>
      %272 = tpu.reciprocal %271 {approx = true} : vector<10x1xf32> -> vector<10x1xf32>
      %273 = vector.broadcast %272 : vector<10x1xf32> to vector<10x16xf32>
      %274 = arith.mulf %269, %273 : vector<10x16xf32>
      %275 = vector.broadcast %7 : vector<1x8xf32> to vector<16x8xf32>
      %276 = arith.mulf %149, %275 : vector<16x8xf32>
      %cst_157 = arith.constant dense<0.000000e+00> : vector<10x8xf32>
      %277 = tpu.matmul %274, %276, %cst_157 {dimension_numbers = #tpu.dot_dimension_numbers<[1], [0], [0], [1], [0, 0, 1, 1], [], []>} : vector<10x16xf32>, vector<16x8xf32>, vector<10x8xf32> -> vector<10x8xf32>
      %278 = arith.addf %258, %277 : vector<10x8xf32>
      %279 = vector.broadcast %14 : vector<1x8xf32> to vector<10x8xf32>
      %280 = arith.mulf %257, %279 : vector<10x8xf32>
      %cst_158 = arith.constant dense<0.000000e+00> : vector<10x16xf32>
      %281 = tpu.matmul %280, %144, %cst_158 {dimension_numbers = #tpu.dot_dimension_numbers<[1], [1], [0], [0], [0, 0, 1, 0], [], []>} : vector<10x8xf32>, vector<16x8xf32>, vector<10x16xf32> -> vector<10x16xf32>
      %cst_159 = arith.constant 5.000000e-01 : f32
      %282 = vector.broadcast %cst_159 : f32 to vector<10x16xf32>
      %283 = arith.mulf %281, %282 : vector<10x16xf32>
      %284 = arith.addf %283, %151 : vector<10x16xf32>
      %cst_160 = arith.constant dense<0xFF800000> : vector<10xf32>
      %285 = vector.multi_reduction <maximumf>, %284, %cst_160 [1] : vector<10x16xf32> to vector<10xf32>
      %286 = vector.shape_cast %285 : vector<10xf32> to vector<10x1xf32>
      %287 = vector.broadcast %286 : vector<10x1xf32> to vector<10x16xf32>
      %288 = arith.subf %284, %287 : vector<10x16xf32>
      %289 = math.exp %288 : vector<10x16xf32>
      %cst_161 = arith.constant dense<0.000000e+00> : vector<10xf32>
      %290 = vector.multi_reduction <add>, %289, %cst_161 [1] : vector<10x16xf32> to vector<10xf32>
      %291 = vector.shape_cast %290 : vector<10xf32> to vector<10x1xf32>
      %292 = tpu.reciprocal %291 {approx = true} : vector<10x1xf32> -> vector<10x1xf32>
      %293 = vector.broadcast %292 : vector<10x1xf32> to vector<10x16xf32>
      %294 = arith.mulf %289, %293 : vector<10x16xf32>
      %295 = vector.broadcast %14 : vector<1x8xf32> to vector<16x8xf32>
      %296 = arith.mulf %149, %295 : vector<16x8xf32>
      %cst_162 = arith.constant dense<0.000000e+00> : vector<10x8xf32>
      %297 = tpu.matmul %294, %296, %cst_162 {dimension_numbers = #tpu.dot_dimension_numbers<[1], [0], [0], [1], [0, 0, 1, 1], [], []>} : vector<10x16xf32>, vector<16x8xf32>, vector<10x8xf32> -> vector<10x8xf32>
      %298 = arith.addf %278, %297 : vector<10x8xf32>
      %cst_163 = arith.constant dense<0.000000e+00> : vector<10x8xf32>
      %299 = tpu.matmul %298, %164, %cst_163 {dimension_numbers = #tpu.dot_dimension_numbers<[1], [0], [0], [1], [0, 0, 1, 1], [], []>} : vector<10x8xf32>, vector<8x8xf32>, vector<10x8xf32> -> vector<10x8xf32>
      %300 = vector.broadcast %165 : vector<1x8xf32> to vector<10x8xf32>
      %301 = arith.addf %299, %300 : vector<10x8xf32>
      %302 = arith.addf %254, %301 : vector<10x8xf32>
      %cst_164 = arith.constant dense<0.000000e+00> : vector<10xf32>
      %303 = vector.multi_reduction <add>, %302, %cst_164 [1] : vector<10x8xf32> to vector<10xf32>
      %304 = vector.shape_cast %303 : vector<10xf32> to vector<10x1xf32>
      %cst_165 = arith.constant 8.000000e+00 : f32
      %305 = vector.broadcast %cst_165 : f32 to vector<10x1xf32>
      %306 = arith.divf %304, %305 : vector<10x1xf32>
      %307 = vector.broadcast %306 : vector<10x1xf32> to vector<10x8xf32>
      %308 = arith.subf %302, %307 : vector<10x8xf32>
      %309 = arith.mulf %308, %308 : vector<10x8xf32>
      %cst_166 = arith.constant dense<0.000000e+00> : vector<10xf32>
      %310 = vector.multi_reduction <add>, %309, %cst_166 [1] : vector<10x8xf32> to vector<10xf32>
      %311 = vector.shape_cast %310 : vector<10xf32> to vector<10x1xf32>
      %cst_167 = arith.constant 8.000000e+00 : f32
      %312 = vector.broadcast %cst_167 : f32 to vector<10x1xf32>
      %313 = arith.divf %311, %312 : vector<10x1xf32>
      %314 = vector.broadcast %306 : vector<10x1xf32> to vector<10x8xf32>
      %315 = arith.subf %302, %314 : vector<10x8xf32>
      %cst_168 = arith.constant 9.99999974E-6 : f32
      %316 = vector.broadcast %cst_168 : f32 to vector<10x1xf32>
      %317 = arith.addf %313, %316 : vector<10x1xf32>
      %318 = math.rsqrt %317 : vector<10x1xf32>
      %319 = vector.broadcast %318 : vector<10x1xf32> to vector<10x8xf32>
      %320 = arith.mulf %315, %319 : vector<10x8xf32>
      %321 = vector.broadcast %166 : vector<1x8xf32> to vector<10x8xf32>
      %322 = arith.mulf %320, %321 : vector<10x8xf32>
      %323 = vector.broadcast %167 : vector<1x8xf32> to vector<10x8xf32>
      %324 = arith.addf %322, %323 : vector<10x8xf32>
      %cst_169 = arith.constant dense<0.000000e+00> : vector<10x16xf32>
      %325 = tpu.matmul %324, %168, %cst_169 {dimension_numbers = #tpu.dot_dimension_numbers<[1], [0], [0], [1], [0, 0, 1, 1], [], []>} : vector<10x8xf32>, vector<8x16xf32>, vector<10x16xf32> -> vector<10x16xf32>
      %326 = vector.broadcast %169 : vector<1x16xf32> to vector<10x16xf32>
      %327 = arith.addf %325, %326 : vector<10x16xf32>
      %cst_170 = arith.constant 0.000000e+00 : f32
      %328 = vector.broadcast %cst_170 : f32 to vector<10x16xf32>
      %329 = arith.maximumf %327, %328 : vector<10x16xf32>
      %cst_171 = arith.constant dense<0.000000e+00> : vector<10x8xf32>
      %330 = tpu.matmul %329, %170, %cst_171 {dimension_numbers = #tpu.dot_dimension_numbers<[1], [0], [0], [1], [0, 0, 1, 1], [], []>} : vector<10x16xf32>, vector<16x8xf32>, vector<10x8xf32> -> vector<10x8xf32>
      %331 = vector.broadcast %171 : vector<1x8xf32> to vector<10x8xf32>
      %332 = arith.addf %330, %331 : vector<10x8xf32>
      %333 = arith.addf %324, %332 : vector<10x8xf32>
      %cst_172 = arith.constant dense<0.000000e+00> : vector<10xf32>
      %334 = vector.multi_reduction <add>, %333, %cst_172 [1] : vector<10x8xf32> to vector<10xf32>
      %335 = vector.shape_cast %334 : vector<10xf32> to vector<10x1xf32>
      %cst_173 = arith.constant 8.000000e+00 : f32
      %336 = vector.broadcast %cst_173 : f32 to vector<10x1xf32>
      %337 = arith.divf %335, %336 : vector<10x1xf32>
      %338 = vector.broadcast %337 : vector<10x1xf32> to vector<10x8xf32>
      %339 = arith.subf %333, %338 : vector<10x8xf32>
      %340 = arith.mulf %339, %339 : vector<10x8xf32>
      %cst_174 = arith.constant dense<0.000000e+00> : vector<10xf32>
      %341 = vector.multi_reduction <add>, %340, %cst_174 [1] : vector<10x8xf32> to vector<10xf32>
      %342 = vector.shape_cast %341 : vector<10xf32> to vector<10x1xf32>
      %cst_175 = arith.constant 8.000000e+00 : f32
      %343 = vector.broadcast %cst_175 : f32 to vector<10x1xf32>
      %344 = arith.divf %342, %343 : vector<10x1xf32>
      %345 = vector.broadcast %337 : vector<10x1xf32> to vector<10x8xf32>
      %346 = arith.subf %333, %345 : vector<10x8xf32>
      %cst_176 = arith.constant 9.99999974E-6 : f32
      %347 = vector.broadcast %cst_176 : f32 to vector<10x1xf32>
      %348 = arith.addf %344, %347 : vector<10x1xf32>
      %349 = math.rsqrt %348 : vector<10x1xf32>
      %350 = vector.broadcast %349 : vector<10x1xf32> to vector<10x8xf32>
      %351 = arith.mulf %346, %350 : vector<10x8xf32>
      %352 = vector.broadcast %172 : vector<1x8xf32> to vector<10x8xf32>
      %353 = arith.mulf %351, %352 : vector<10x8xf32>
      %354 = vector.broadcast %173 : vector<1x8xf32> to vector<10x8xf32>
      %355 = arith.addf %353, %354 : vector<10x8xf32>
      %cst_177 = arith.constant 0.000000e+00 : f32
      %356 = vector.broadcast %cst_177 : f32 to vector<2x9xf32>
      %357 = vector.extract_strided_slice %355 {offsets = [0, 0], sizes = [2, 8], strides = [1, 1]} : vector<10x8xf32> to vector<2x8xf32>
      %358 = vector.extract_strided_slice %174 {offsets = [0, 0, 0], sizes = [1, 8, 9], strides = [1, 1, 1]} : vector<5x8x9xf32> to vector<1x8x9xf32>
      %359 = vector.shape_cast %358 : vector<1x8x9xf32> to vector<8x9xf32>
      %cst_178 = arith.constant dense<0.000000e+00> : vector<2x9xf32>
      %360 = tpu.matmul %357, %359, %cst_178 {dimension_numbers = #tpu.dot_dimension_numbers<[1], [0], [0], [1], [0, 0, 1, 1], [], []>} : vector<2x8xf32>, vector<8x9xf32>, vector<2x9xf32> -> vector<2x9xf32>
      %361 = arith.addf %356, %360 : vector<2x9xf32>
      %362 = vector.extract_strided_slice %355 {offsets = [2, 0], sizes = [2, 8], strides = [1, 1]} : vector<10x8xf32> to vector<2x8xf32>
      %363 = vector.extract_strided_slice %174 {offsets = [1, 0, 0], sizes = [1, 8, 9], strides = [1, 1, 1]} : vector<5x8x9xf32> to vector<1x8x9xf32>
      %364 = vector.shape_cast %363 : vector<1x8x9xf32> to vector<8x9xf32>
      %cst_179 = arith.constant dense<0.000000e+00> : vector<2x9xf32>
      %365 = tpu.matmul %362, %364, %cst_179 {dimension_numbers = #tpu.dot_dimension_numbers<[1], [0], [0], [1], [0, 0, 1, 1], [], []>} : vector<2x8xf32>, vector<8x9xf32>, vector<2x9xf32> -> vector<2x9xf32>
      %366 = arith.addf %361, %365 : vector<2x9xf32>
      %367 = vector.extract_strided_slice %355 {offsets = [4, 0], sizes = [2, 8], strides = [1, 1]} : vector<10x8xf32> to vector<2x8xf32>
      %368 = vector.extract_strided_slice %174 {offsets = [2, 0, 0], sizes = [1, 8, 9], strides = [1, 1, 1]} : vector<5x8x9xf32> to vector<1x8x9xf32>
      %369 = vector.shape_cast %368 : vector<1x8x9xf32> to vector<8x9xf32>
      %cst_180 = arith.constant dense<0.000000e+00> : vector<2x9xf32>
      %370 = tpu.matmul %367, %369, %cst_180 {dimension_numbers = #tpu.dot_dimension_numbers<[1], [0], [0], [1], [0, 0, 1, 1], [], []>} : vector<2x8xf32>, vector<8x9xf32>, vector<2x9xf32> -> vector<2x9xf32>
      %371 = arith.addf %366, %370 : vector<2x9xf32>
      %372 = vector.extract_strided_slice %355 {offsets = [6, 0], sizes = [2, 8], strides = [1, 1]} : vector<10x8xf32> to vector<2x8xf32>
      %373 = vector.extract_strided_slice %174 {offsets = [3, 0, 0], sizes = [1, 8, 9], strides = [1, 1, 1]} : vector<5x8x9xf32> to vector<1x8x9xf32>
      %374 = vector.shape_cast %373 : vector<1x8x9xf32> to vector<8x9xf32>
      %cst_181 = arith.constant dense<0.000000e+00> : vector<2x9xf32>
      %375 = tpu.matmul %372, %374, %cst_181 {dimension_numbers = #tpu.dot_dimension_numbers<[1], [0], [0], [1], [0, 0, 1, 1], [], []>} : vector<2x8xf32>, vector<8x9xf32>, vector<2x9xf32> -> vector<2x9xf32>
      %376 = arith.addf %371, %375 : vector<2x9xf32>
      %377 = vector.extract_strided_slice %355 {offsets = [8, 0], sizes = [2, 8], strides = [1, 1]} : vector<10x8xf32> to vector<2x8xf32>
      %378 = vector.extract_strided_slice %174 {offsets = [4, 0, 0], sizes = [1, 8, 9], strides = [1, 1, 1]} : vector<5x8x9xf32> to vector<1x8x9xf32>
      %379 = vector.shape_cast %378 : vector<1x8x9xf32> to vector<8x9xf32>
      %cst_182 = arith.constant dense<0.000000e+00> : vector<2x9xf32>
      %380 = tpu.matmul %377, %379, %cst_182 {dimension_numbers = #tpu.dot_dimension_numbers<[1], [0], [0], [1], [0, 0, 1, 1], [], []>} : vector<2x8xf32>, vector<8x9xf32>, vector<2x9xf32> -> vector<2x9xf32>
      %381 = arith.addf %376, %380 : vector<2x9xf32>
      %382 = arith.index_cast %arg51 : i32 to index
      %c0_183 = arith.constant 0 : index
      %c0_184 = arith.constant 0 : index
      %383 = vector.load %arg49[%382, %c0_183, %c0_184] : memref<5x2x9xf32, #tpu.memory_space<vmem>>, vector<1x2x9xf32>
      %384 = vector.shape_cast %383 : vector<1x2x9xf32> to vector<2x9xf32>
      %385 = vector.shape_cast %381 : vector<2x9xf32> to vector<1x2x9xf32>
      tpu.vector_store %arg49[%382, %c0_183, %c0_184], %385 {strides = array<i32>} : memref<5x2x9xf32, #tpu.memory_space<vmem>>, vector<1x2x9xf32>,
      %cst_185 = arith.constant dense<0xFF800000> : vector<2xf32>
      %386 = vector.multi_reduction <maximumf>, %381, %cst_185 [1] : vector<2x9xf32> to vector<2xf32>
      %387 = vector.shape_cast %386 : vector<2xf32> to vector<2x1xf32>
      %388 = tpu.iota {dimensions = array<i32: 1>} : vector<2x9xi32>
      %389 = arith.sitofp %388 : vector<2x9xi32> to vector<2x9xf32>
      %390 = vector.broadcast %387 : vector<2x1xf32> to vector<2x9xf32>
      %391 = arith.cmpf oge, %381, %390 : vector<2x9xf32>
      %cst_186 = arith.constant 1.000000e+01 : f32
      %392 = vector.broadcast %cst_186 : f32 to vector<2x9xf32>
      %393 = arith.select %391, %389, %392 : vector<2x9xi1>, vector<2x9xf32>
      %cst_187 = arith.constant dense<0x7F800000> : vector<2xf32>
      %394 = vector.multi_reduction <minimumf>, %393, %cst_187 [1] : vector<2x9xf32> to vector<2xf32>
      %395 = vector.shape_cast %394 : vector<2xf32> to vector<2x1xf32>
      %396 = vector.broadcast %395 : vector<2x1xf32> to vector<2x9xf32>
      %397 = arith.cmpf oeq, %389, %396 : vector<2x9xf32>
      %398 = arith.extui %397 : vector<2x9xi1> to vector<2x9xi32>
      %399 = arith.sitofp %398 : vector<2x9xi32> to vector<2x9xf32>
      %400 = vector.extract_strided_slice %399 {offsets = [0, 0], sizes = [1, 9], strides = [1, 1]} : vector<2x9xf32> to vector<1x9xf32>
      %c0_188 = arith.constant 0 : index
      %c0_189 = arith.constant 0 : index
      %c0_190 = arith.constant 0 : index
      %401 = vector.load %arg2[%c0_188, %c0_189, %c0_190] : memref<2x9x8xf32, #tpu.memory_space<vmem>>, vector<1x9x8xf32>
      %402 = vector.shape_cast %401 : vector<1x9x8xf32> to vector<9x8xf32>
      %cst_191 = arith.constant dense<0.000000e+00> : vector<1x8xf32>
      %403 = tpu.matmul %400, %402, %cst_191 {dimension_numbers = #tpu.dot_dimension_numbers<[1], [0], [0], [1], [0, 0, 1, 1], [], []>} : vector<1x9xf32>, vector<9x8xf32>, vector<1x8xf32> -> vector<1x8xf32>
      %c2_i32 = arith.constant 2 : i32
      %404 = arith.muli %arg51, %c2_i32 : i32
      %c0_i32_192 = arith.constant 0 : i32
      %405 = arith.addi %404, %c0_i32_192 : i32
      %406 = arith.index_cast %405 : i32 to index
      %c0_193 = arith.constant 0 : index
      %407 = vector.load %arg50[%406, %c0_193] : memref<10x8xf32, #tpu.memory_space<vmem>>, vector<1x8xf32>
      tpu.vector_store %arg50[%406, %c0_193], %403 {strides = array<i32>} : memref<10x8xf32, #tpu.memory_space<vmem>>, vector<1x8xf32>,
      %408 = vector.extract_strided_slice %399 {offsets = [1, 0], sizes = [1, 9], strides = [1, 1]} : vector<2x9xf32> to vector<1x9xf32>
      %c1 = arith.constant 1 : index
      %c0_194 = arith.constant 0 : index
      %c0_195 = arith.constant 0 : index
      %409 = vector.load %arg2[%c1, %c0_194, %c0_195] : memref<2x9x8xf32, #tpu.memory_space<vmem>>, vector<1x9x8xf32>
      %410 = vector.shape_cast %409 : vector<1x9x8xf32> to vector<9x8xf32>
      %cst_196 = arith.constant dense<0.000000e+00> : vector<1x8xf32>
      %411 = tpu.matmul %408, %410, %cst_196 {dimension_numbers = #tpu.dot_dimension_numbers<[1], [0], [0], [1], [0, 0, 1, 1], [], []>} : vector<1x9xf32>, vector<9x8xf32>, vector<1x8xf32> -> vector<1x8xf32>
      %c2_i32_197 = arith.constant 2 : i32
      %412 = arith.muli %arg51, %c2_i32_197 : i32
      %c1_i32_198 = arith.constant 1 : i32
      %413 = arith.addi %412, %c1_i32_198 : i32
      %414 = arith.index_cast %413 : i32 to index
      %c0_199 = arith.constant 0 : index
      %415 = vector.load %arg50[%414, %c0_199] : memref<10x8xf32, #tpu.memory_space<vmem>>, vector<1x8xf32>
      tpu.vector_store %arg50[%414, %c0_199], %411 {strides = array<i32>} : memref<10x8xf32, #tpu.memory_space<vmem>>, vector<1x8xf32>,
    }
    %c5_i32_128 = arith.constant 5 : i32
    return
  }
  func.func @transform_0(%arg0: i32) -> (i32, i32) {
    %c0_i32 = arith.constant 0 : i32
    %c0_i32_0 = arith.constant 0 : i32
    %c0_i32_1 = arith.constant 0 : i32
    return %c0_i32, %c0_i32_0 : i32, i32
  }
  func.func @transform_1(%arg0: i32) -> (i32, i32, i32) {
    %c0_i32 = arith.constant 0 : i32
    %c0_i32_0 = arith.constant 0 : i32
    %c0_i32_1 = arith.constant 0 : i32
    %c0_i32_2 = arith.constant 0 : i32
    return %c0_i32, %c0_i32_0, %c0_i32_1 : i32, i32, i32
  }
  func.func @transform_2(%arg0: i32) -> (i32, i32, i32) {
    %c0_i32 = arith.constant 0 : i32
    %c0_i32_0 = arith.constant 0 : i32
    %c0_i32_1 = arith.constant 0 : i32
    %c0_i32_2 = arith.constant 0 : i32
    return %c0_i32, %c0_i32_0, %c0_i32_1 : i32, i32, i32
  }
  func.func @transform_3(%arg0: i32) -> (i32, i32) {
    %c0_i32 = arith.constant 0 : i32
    %c0_i32_0 = arith.constant 0 : i32
    %c0_i32_1 = arith.constant 0 : i32
    return %c0_i32, %c0_i32_0 : i32, i32
  }
  func.func @transform_4(%arg0: i32) -> (i32, i32) {
    %c0_i32 = arith.constant 0 : i32
    %c0_i32_0 = arith.constant 0 : i32
    %c0_i32_1 = arith.constant 0 : i32
    return %c0_i32, %c0_i32_0 : i32, i32
  }
  func.func @transform_5(%arg0: i32) -> (i32, i32) {
    %c0_i32 = arith.constant 0 : i32
    %c0_i32_0 = arith.constant 0 : i32
    %c0_i32_1 = arith.constant 0 : i32
    return %c0_i32, %c0_i32_0 : i32, i32
  }
  func.func @transform_6(%arg0: i32) -> (i32, i32) {
    %c0_i32 = arith.constant 0 : i32
    %c0_i32_0 = arith.constant 0 : i32
    %c0_i32_1 = arith.constant 0 : i32
    return %c0_i32, %c0_i32_0 : i32, i32
  }
  func.func @transform_7(%arg0: i32) -> (i32, i32) {
    %c0_i32 = arith.constant 0 : i32
    %c0_i32_0 = arith.constant 0 : i32
    %c0_i32_1 = arith.constant 0 : i32
    return %c0_i32, %c0_i32_0 : i32, i32
  }
  func.func @transform_8(%arg0: i32) -> (i32, i32) {
    %c0_i32 = arith.constant 0 : i32
    %c0_i32_0 = arith.constant 0 : i32
    %c0_i32_1 = arith.constant 0 : i32
    return %c0_i32, %c0_i32_0 : i32, i32
  }
  func.func @transform_9(%arg0: i32) -> (i32, i32) {
    %c0_i32 = arith.constant 0 : i32
    %c0_i32_0 = arith.constant 0 : i32
    %c0_i32_1 = arith.constant 0 : i32
    return %c0_i32, %c0_i32_0 : i32, i32
  }
  func.func @transform_10(%arg0: i32) -> (i32, i32) {
    %c0_i32 = arith.constant 0 : i32
    %c0_i32_0 = arith.constant 0 : i32
    %c0_i32_1 = arith.constant 0 : i32
    return %c0_i32, %c0_i32_0 : i32, i32
  }
  func.func @transform_11(%arg0: i32) -> (i32, i32) {
    %c0_i32 = arith.constant 0 : i32
    %c0_i32_0 = arith.constant 0 : i32
    %c0_i32_1 = arith.constant 0 : i32
    return %c0_i32, %c0_i32_0 : i32, i32
  }
  func.func @transform_12(%arg0: i32) -> (i32, i32) {
    %c0_i32 = arith.constant 0 : i32
    %c0_i32_0 = arith.constant 0 : i32
    %c0_i32_1 = arith.constant 0 : i32
    return %c0_i32, %c0_i32_0 : i32, i32
  }
  func.func @transform_13(%arg0: i32) -> (i32, i32) {
    %c0_i32 = arith.constant 0 : i32
    %c0_i32_0 = arith.constant 0 : i32
    %c0_i32_1 = arith.constant 0 : i32
    return %c0_i32, %c0_i32_0 : i32, i32
  }
  func.func @transform_14(%arg0: i32) -> (i32, i32) {
    %c0_i32 = arith.constant 0 : i32
    %c0_i32_0 = arith.constant 0 : i32
    %c0_i32_1 = arith.constant 0 : i32
    return %c0_i32, %c0_i32_0 : i32, i32
  }
  func.func @transform_15(%arg0: i32) -> (i32, i32) {
    %c0_i32 = arith.constant 0 : i32
    %c0_i32_0 = arith.constant 0 : i32
    %c0_i32_1 = arith.constant 0 : i32
    return %c0_i32, %c0_i32_0 : i32, i32
  }
  func.func @transform_16(%arg0: i32) -> (i32, i32) {
    %c0_i32 = arith.constant 0 : i32
    %c0_i32_0 = arith.constant 0 : i32
    %c0_i32_1 = arith.constant 0 : i32
    return %c0_i32, %c0_i32_0 : i32, i32
  }
  func.func @transform_17(%arg0: i32) -> (i32, i32) {
    %c0_i32 = arith.constant 0 : i32
    %c0_i32_0 = arith.constant 0 : i32
    %c0_i32_1 = arith.constant 0 : i32
    return %c0_i32, %c0_i32_0 : i32, i32
  }
  func.func @transform_18(%arg0: i32) -> (i32, i32) {
    %c0_i32 = arith.constant 0 : i32
    %c0_i32_0 = arith.constant 0 : i32
    %c0_i32_1 = arith.constant 0 : i32
    return %c0_i32, %c0_i32_0 : i32, i32
  }
  func.func @transform_19(%arg0: i32) -> (i32, i32) {
    %c0_i32 = arith.constant 0 : i32
    %c0_i32_0 = arith.constant 0 : i32
    %c0_i32_1 = arith.constant 0 : i32
    return %c0_i32, %c0_i32_0 : i32, i32
  }
  func.func @transform_20(%arg0: i32) -> (i32, i32) {
    %c0_i32 = arith.constant 0 : i32
    %c0_i32_0 = arith.constant 0 : i32
    %c0_i32_1 = arith.constant 0 : i32
    return %c0_i32, %c0_i32_0 : i32, i32
  }
  func.func @transform_21(%arg0: i32) -> (i32, i32) {
    %c0_i32 = arith.constant 0 : i32
    %c0_i32_0 = arith.constant 0 : i32
    %c0_i32_1 = arith.constant 0 : i32
    return %c0_i32, %c0_i32_0 : i32, i32
  }
  func.func @transform_22(%arg0: i32) -> (i32, i32) {
    %c0_i32 = arith.constant 0 : i32
    %c0_i32_0 = arith.constant 0 : i32
    %c0_i32_1 = arith.constant 0 : i32
    return %c0_i32, %c0_i32_0 : i32, i32
  }
  func.func @transform_23(%arg0: i32) -> (i32, i32) {
    %c0_i32 = arith.constant 0 : i32
    %c0_i32_0 = arith.constant 0 : i32
    %c0_i32_1 = arith.constant 0 : i32
    return %c0_i32, %c0_i32_0 : i32, i32
  }
  func.func @transform_24(%arg0: i32) -> (i32, i32) {
    %c0_i32 = arith.constant 0 : i32
    %c0_i32_0 = arith.constant 0 : i32
    %c0_i32_1 = arith.constant 0 : i32
    return %c0_i32, %c0_i32_0 : i32, i32
  }
  func.func @transform_25(%arg0: i32) -> (i32, i32) {
    %c0_i32 = arith.constant 0 : i32
    %c0_i32_0 = arith.constant 0 : i32
    %c0_i32_1 = arith.constant 0 : i32
    return %c0_i32, %c0_i32_0 : i32, i32
  }
  func.func @transform_26(%arg0: i32) -> (i32, i32) {
    %c0_i32 = arith.constant 0 : i32
    %c0_i32_0 = arith.constant 0 : i32
    %c0_i32_1 = arith.constant 0 : i32
    return %c0_i32, %c0_i32_0 : i32, i32
  }
  func.func @transform_27(%arg0: i32) -> (i32, i32) {
    %c0_i32 = arith.constant 0 : i32
    %c0_i32_0 = arith.constant 0 : i32
    %c0_i32_1 = arith.constant 0 : i32
    return %c0_i32, %c0_i32_0 : i32, i32
  }
  func.func @transform_28(%arg0: i32) -> (i32, i32) {
    %c0_i32 = arith.constant 0 : i32
    %c0_i32_0 = arith.constant 0 : i32
    %c0_i32_1 = arith.constant 0 : i32
    return %c0_i32, %c0_i32_0 : i32, i32
  }
  func.func @transform_29(%arg0: i32) -> (i32, i32) {
    %c0_i32 = arith.constant 0 : i32
    %c0_i32_0 = arith.constant 0 : i32
    %c0_i32_1 = arith.constant 0 : i32
    return %c0_i32, %c0_i32_0 : i32, i32
  }
  func.func @transform_30(%arg0: i32) -> (i32, i32) {
    %c0_i32 = arith.constant 0 : i32
    %c0_i32_0 = arith.constant 0 : i32
    %c0_i32_1 = arith.constant 0 : i32
    return %c0_i32, %c0_i32_0 : i32, i32
  }
  func.func @transform_31(%arg0: i32) -> (i32, i32) {
    %c0_i32 = arith.constant 0 : i32
    %c0_i32_0 = arith.constant 0 : i32
    %c0_i32_1 = arith.constant 0 : i32
    return %c0_i32, %c0_i32_0 : i32, i32
  }
  func.func @transform_32(%arg0: i32) -> (i32, i32) {
    %c0_i32 = arith.constant 0 : i32
    %c0_i32_0 = arith.constant 0 : i32
    %c0_i32_1 = arith.constant 0 : i32
    return %c0_i32, %c0_i32_0 : i32, i32
  }
  func.func @transform_33(%arg0: i32) -> (i32, i32) {
    %c0_i32 = arith.constant 0 : i32
    %c0_i32_0 = arith.constant 0 : i32
    %c0_i32_1 = arith.constant 0 : i32
    return %c0_i32, %c0_i32_0 : i32, i32
  }
  func.func @transform_34(%arg0: i32) -> (i32, i32) {
    %c0_i32 = arith.constant 0 : i32
    %c0_i32_0 = arith.constant 0 : i32
    %c0_i32_1 = arith.constant 0 : i32
    return %c0_i32, %c0_i32_0 : i32, i32
  }
  func.func @transform_35(%arg0: i32) -> (i32, i32) {
    %c0_i32 = arith.constant 0 : i32
    %c0_i32_0 = arith.constant 0 : i32
    %c0_i32_1 = arith.constant 0 : i32
    return %c0_i32, %c0_i32_0 : i32, i32
  }
  func.func @transform_36(%arg0: i32) -> (i32, i32) {
    %c0_i32 = arith.constant 0 : i32
    %c0_i32_0 = arith.constant 0 : i32
    %c0_i32_1 = arith.constant 0 : i32
    return %c0_i32, %c0_i32_0 : i32, i32
  }
  func.func @transform_37(%arg0: i32) -> (i32, i32) {
    %c0_i32 = arith.constant 0 : i32
    %c0_i32_0 = arith.constant 0 : i32
    %c0_i32_1 = arith.constant 0 : i32
    return %c0_i32, %c0_i32_0 : i32, i32
  }
  func.func @transform_38(%arg0: i32) -> (i32, i32) {
    %c0_i32 = arith.constant 0 : i32
    %c0_i32_0 = arith.constant 0 : i32
    %c0_i32_1 = arith.constant 0 : i32
    return %c0_i32, %c0_i32_0 : i32, i32
  }
  func.func @transform_39(%arg0: i32) -> (i32, i32) {
    %c0_i32 = arith.constant 0 : i32
    %c0_i32_0 = arith.constant 0 : i32
    %c0_i32_1 = arith.constant 0 : i32
    return %c0_i32, %c0_i32_0 : i32, i32
  }
  func.func @transform_40(%arg0: i32) -> (i32, i32) {
    %c0_i32 = arith.constant 0 : i32
    %c0_i32_0 = arith.constant 0 : i32
    %c0_i32_1 = arith.constant 0 : i32
    return %c0_i32, %c0_i32_0 : i32, i32
  }
  func.func @transform_41(%arg0: i32) -> (i32, i32) {
    %c0_i32 = arith.constant 0 : i32
    %c0_i32_0 = arith.constant 0 : i32
    %c0_i32_1 = arith.constant 0 : i32
    return %c0_i32, %c0_i32_0 : i32, i32
  }
  func.func @transform_42(%arg0: i32) -> (i32, i32) {
    %c0_i32 = arith.constant 0 : i32
    %c0_i32_0 = arith.constant 0 : i32
    %c0_i32_1 = arith.constant 0 : i32
    return %c0_i32, %c0_i32_0 : i32, i32
  }
  func.func @transform_43(%arg0: i32) -> (i32, i32) {
    %c0_i32 = arith.constant 0 : i32
    %c0_i32_0 = arith.constant 0 : i32
    %c0_i32_1 = arith.constant 0 : i32
    return %c0_i32, %c0_i32_0 : i32, i32
  }
  func.func @transform_44(%arg0: i32) -> (i32, i32) {
    %c0_i32 = arith.constant 0 : i32
    %c0_i32_0 = arith.constant 0 : i32
    %c0_i32_1 = arith.constant 0 : i32
    return %c0_i32, %c0_i32_0 : i32, i32
  }
  func.func @transform_45(%arg0: i32) -> (i32, i32) {
    %c0_i32 = arith.constant 0 : i32
    %c0_i32_0 = arith.constant 0 : i32
    %c0_i32_1 = arith.constant 0 : i32
    return %c0_i32, %c0_i32_0 : i32, i32
  }
  func.func @transform_46(%arg0: i32) -> (i32, i32) {
    %c0_i32 = arith.constant 0 : i32
    %c0_i32_0 = arith.constant 0 : i32
    %c0_i32_1 = arith.constant 0 : i32
    return %c0_i32, %c0_i32_0 : i32, i32
  }
  func.func @transform_47(%arg0: i32) -> (i32, i32) {
    %c0_i32 = arith.constant 0 : i32
    %c0_i32_0 = arith.constant 0 : i32
    %c0_i32_1 = arith.constant 0 : i32
    return %c0_i32, %c0_i32_0 : i32, i32
  }
  func.func @transform_48(%arg0: i32) -> (i32, i32, i32) {
    %c0_i32 = arith.constant 0 : i32
    %c0_i32_0 = arith.constant 0 : i32
    %c0_i32_1 = arith.constant 0 : i32
    %c0_i32_2 = arith.constant 0 : i32
    return %c0_i32, %c0_i32_0, %c0_i32_1 : i32, i32, i32
  }
}

</mosaic_0001>

<llo_original>
// kernel: auto_reg_transformer_fwd.1
$region0: #{auto_reg_transformer_fwd.1}
  #allocation0 [shape = 'u32[]', space=smem, size = 0x4, offset = 0x4, fixed_abs, tag = 'smem constant byte address 0x4 - core index']
  #allocation1 [shape = 'u32[144,128]{1,0:T(1,128)}', space=vmem, size = 0x12000, scoped, tag = 'internal scratch']
  #allocation2 [shape = 'f32[10,8]{1,0:T(8,128)}', space=vmem, size = 0x2000, scoped, tag = 'scratch operand']
  %s0 = inlined_call_operand.smem [shape: u32[49], index: -1, kind: input, shape index: {}]
  %s1 = sld [smem:[%s0]]
  %s2 = scalar_lea.smem %s0, 1
  %s3 = sld [smem:[%s2]]
  %s4 = scalar_lea.smem %s0, 2
  %s5 = sld [smem:[%s4]]
  %s6 = scalar_lea.smem %s0, 3
  %s7 = sld [smem:[%s6]]
  %s8 = scalar_lea.smem %s0, 4
  %s9 = sld [smem:[%s8]]
  %s10 = scalar_lea.smem %s0, 5
  %s11 = sld [smem:[%s10]]
  %s12 = scalar_lea.smem %s0, 6
  %s13 = sld [smem:[%s12]]
  %s14 = scalar_lea.smem %s0, 7
  %s15 = sld [smem:[%s14]]
  %s16 = scalar_lea.smem %s0, 8
  %s17 = sld [smem:[%s16]]
  %s18 = scalar_lea.smem %s0, 9
  %s19 = sld [smem:[%s18]]
  %s20 = scalar_lea.smem %s0, 10
  %s21 = sld [smem:[%s20]]
  %s22 = scalar_lea.smem %s0, 11
  %s23 = sld [smem:[%s22]]
  %s24 = scalar_lea.smem %s0, 12
  %s25 = sld [smem:[%s24]]
  %s26 = scalar_lea.smem %s0, 13
  %s27 = sld [smem:[%s26]]
  %s28 = scalar_lea.smem %s0, 14
  %s29 = sld [smem:[%s28]]
  %s30 = scalar_lea.smem %s0, 15
  %s31 = sld [smem:[%s30]]
  %s32 = scalar_lea.smem %s0, 16
  %s33 = sld [smem:[%s32]]
  %s34 = scalar_lea.smem %s0, 17
  %s35 = sld [smem:[%s34]]
  %s36 = scalar_lea.smem %s0, 18
  %s37 = sld [smem:[%s36]]
  %s38 = scalar_lea.smem %s0, 19
  %s39 = sld [smem:[%s38]]
  %s40 = scalar_lea.smem %s0, 20
  %s41 = sld [smem:[%s40]]
  %s42 = scalar_lea.smem %s0, 21
  %s43 = sld [smem:[%s42]]
  %s44 = scalar_lea.smem %s0, 22
  %s45 = sld [smem:[%s44]]
  %s46 = scalar_lea.smem %s0, 23
  %s47 = sld [smem:[%s46]]
  %s48 = scalar_lea.smem %s0, 24
  %s49 = sld [smem:[%s48]]
  %s50 = scalar_lea.smem %s0, 25
  %s51 = sld [smem:[%s50]]
  %s52 = scalar_lea.smem %s0, 26
  %s53 = sld [smem:[%s52]]
  %s54 = scalar_lea.smem %s0, 27
  %s55 = sld [smem:[%s54]]
  %s56 = scalar_lea.smem %s0, 28
  %s57 = sld [smem:[%s56]]
  %s58 = scalar_lea.smem %s0, 29
  %s59 = sld [smem:[%s58]]
  %s60 = scalar_lea.smem %s0, 30
  %s61 = sld [smem:[%s60]]
  %s62 = scalar_lea.smem %s0, 31
  %s63 = sld [smem:[%s62]]
  %s64 = scalar_lea.smem %s0, 32
  %s65 = sld [smem:[%s64]]
  %s66 = scalar_lea.smem %s0, 33
  %s67 = sld [smem:[%s66]]
  %s68 = scalar_lea.smem %s0, 34
  %s69 = sld [smem:[%s68]]
  %s70 = scalar_lea.smem %s0, 35
  %s71 = sld [smem:[%s70]]
  %s72 = scalar_lea.smem %s0, 36
  %s73 = sld [smem:[%s72]]
  %s74 = scalar_lea.smem %s0, 37
  %s75 = sld [smem:[%s74]]
  %s76 = scalar_lea.smem %s0, 38
  %s77 = sld [smem:[%s76]]
  %s78 = scalar_lea.smem %s0, 39
  %s79 = sld [smem:[%s78]]
  %s80 = scalar_lea.smem %s0, 40
  %s81 = sld [smem:[%s80]]
  %s82 = scalar_lea.smem %s0, 41
  %s83 = sld [smem:[%s82]]
  %s84 = scalar_lea.smem %s0, 42
  %s85 = sld [smem:[%s84]]
  %s86 = scalar_lea.smem %s0, 43
  %s87 = sld [smem:[%s86]]
  %s88 = scalar_lea.smem %s0, 44
  %s89 = sld [smem:[%s88]]
  %s90 = scalar_lea.smem %s0, 45
  %s91 = sld [smem:[%s90]]
  %s92 = scalar_lea.smem %s0, 46
  %s93 = sld [smem:[%s92]]
  %s94 = scalar_lea.smem %s0, 47
  %s95 = sld [smem:[%s94]]
  %s96 = scalar_lea.smem %s0, 48
  %s97 = sld [smem:[%s96]]
  %s98 = sld [smem:[#allocation0]]
  $region221: #{auto_reg_transformer_fwd.1} parent=0
    _
  %s100 = ssub.s32 1, %s98
  %s101 = scalar_select 0, %s100, %s98
  $region1: #{auto_reg_transformer_fwd.1} parent=0
    #allocation3 [shape = 'u8[512]{0}', space=vmem, size = 0x400, scoped, tag = 'input window, operand 45, single buffered']
    #allocation4 [shape = 's32[1]{0}', space=sflag, size = 0x4, scoped, tag = 'scoped memory for auto_reg_transformer_fwd.1']
    #allocation5 [shape = 's32[1]{0}', space=sflag, size = 0x4, scoped, tag = 'scoped memory for auto_reg_transformer_fwd.1']
    #allocation6 [shape = 'u8[512]{0}', space=vmem, size = 0x400, scoped, tag = 'input window, operand 46, single buffered']
    #allocation7 [shape = 's32[1]{0}', space=sflag, size = 0x4, scoped, tag = 'scoped memory for auto_reg_transformer_fwd.1']
    #allocation8 [shape = 'u8[512]{0}', space=vmem, size = 0x400, scoped, tag = 'input window, operand 47, single buffered']
    #allocation9 [shape = 'u8[5120]{0}', space=vmem, size = 0x1400, scoped, tag = 'output window, operand 0, single buffered']
    %102 = vsyncpa [#allocation4], 0
    %103 = vsyncpa [#allocation7], 0
    %104 = vsyncpa [#allocation5], 0
    // Predicated region
    $region2: #{auto_reg_transformer_fwd.1} parent=1 // pred_check
      _
    $region3: #{auto_reg_transformer_fwd.1} parent=1 // pred_check_branch
      %106 = sbr.rel (0) target = $region5
    $region4: #{auto_reg_transformer_fwd.1} parent=1 // pred_region
      _
    $region5: #{auto_reg_transformer_fwd.1} parent=1 // pred_fallthru
      _
    // Predicated region
    $region6: #{auto_reg_transformer_fwd.1} parent=1 // pred_check
      _
    $region7: #{auto_reg_transformer_fwd.1} parent=1 // pred_check_branch
      %108 = sbr.rel (0) target = $region9
    $region8: #{auto_reg_transformer_fwd.1} parent=1 // pred_region
      _
    $region9: #{auto_reg_transformer_fwd.1} parent=1 // pred_fallthru
      _
    // Predicated region
    $region10: #{auto_reg_transformer_fwd.1} parent=1 // pred_check
      _
    $region11: #{auto_reg_transformer_fwd.1} parent=1 // pred_check_branch
      %110 = sbr.rel (0) target = $region13
    $region12: #{auto_reg_transformer_fwd.1} parent=1 // pred_region
      _
    $region13: #{auto_reg_transformer_fwd.1} parent=1 // pred_fallthru
      _
    // Predicated region
    $region14: #{auto_reg_transformer_fwd.1} parent=1 // pred_check
      _
    $region15: #{auto_reg_transformer_fwd.1} parent=1 // pred_check_branch
      %112 = sbr.rel (0) target = $region17
    $region16: #{auto_reg_transformer_fwd.1} parent=1 // pred_region
      _
    $region17: #{auto_reg_transformer_fwd.1} parent=1 // pred_fallthru
      _
    // Predicated region
    $region18: #{auto_reg_transformer_fwd.1} parent=1 // pred_check
      _
    $region19: #{auto_reg_transformer_fwd.1} parent=1 // pred_check_branch
      %114 = sbr.rel (0) target = $region21
    $region20: #{auto_reg_transformer_fwd.1} parent=1 // pred_region
      _
    $region21: #{auto_reg_transformer_fwd.1} parent=1 // pred_fallthru
      _
    // Predicated region
    $region22: #{auto_reg_transformer_fwd.1} parent=1 // pred_check
      _
    $region23: #{auto_reg_transformer_fwd.1} parent=1 // pred_check_branch
      %116 = sbr.rel (0) target = $region25
    $region24: #{auto_reg_transformer_fwd.1} parent=1 // pred_region
      _
    $region25: #{auto_reg_transformer_fwd.1} parent=1 // pred_fallthru
      _
    // Predicated region
    $region26: #{auto_reg_transformer_fwd.1} parent=1 // pred_check
      _
    $region27: #{auto_reg_transformer_fwd.1} parent=1 // pred_check_branch
      %118 = sbr.rel (0) target = $region29
    $region28: #{auto_reg_transformer_fwd.1} parent=1 // pred_region
      _
    $region29: #{auto_reg_transformer_fwd.1} parent=1 // pred_fallthru
      _
    // Predicated region
    $region30: #{auto_reg_transformer_fwd.1} parent=1 // pred_check
      _
    $region31: #{auto_reg_transformer_fwd.1} parent=1 // pred_check_branch
      %120 = sbr.rel (0) target = $region33
    $region32: #{auto_reg_transformer_fwd.1} parent=1 // pred_region
      _
    $region33: #{auto_reg_transformer_fwd.1} parent=1 // pred_fallthru
      _
    // Predicated region
    $region34: #{auto_reg_transformer_fwd.1} parent=1 // pred_check
      _
    $region35: #{auto_reg_transformer_fwd.1} parent=1 // pred_check_branch
      %122 = sbr.rel (0) target = $region37
    $region36: #{auto_reg_transformer_fwd.1} parent=1 // pred_region
      _
    $region37: #{auto_reg_transformer_fwd.1} parent=1 // pred_fallthru
      _
    // Predicated region
    $region38: #{auto_reg_transformer_fwd.1} parent=1 // pred_check
      _
    $region39: #{auto_reg_transformer_fwd.1} parent=1 // pred_check_branch
      %124 = sbr.rel (0) target = $region41
    $region40: #{auto_reg_transformer_fwd.1} parent=1 // pred_region
      _
    $region41: #{auto_reg_transformer_fwd.1} parent=1 // pred_fallthru
      _
    // Predicated region
    $region42: #{auto_reg_transformer_fwd.1} parent=1 // pred_check
      _
    $region43: #{auto_reg_transformer_fwd.1} parent=1 // pred_check_branch
      %126 = sbr.rel (0) target = $region45
    $region44: #{auto_reg_transformer_fwd.1} parent=1 // pred_region
      _
    $region45: #{auto_reg_transformer_fwd.1} parent=1 // pred_fallthru
      _
    // Predicated region
    $region46: #{auto_reg_transformer_fwd.1} parent=1 // pred_check
      _
    $region47: #{auto_reg_transformer_fwd.1} parent=1 // pred_check_branch
      %128 = sbr.rel (0) target = $region49
    $region48: #{auto_reg_transformer_fwd.1} parent=1 // pred_region
      _
    $region49: #{auto_reg_transformer_fwd.1} parent=1 // pred_fallthru
      _
    // Predicated region
    $region50: #{auto_reg_transformer_fwd.1} parent=1 // pred_check
      _
    $region51: #{auto_reg_transformer_fwd.1} parent=1 // pred_check_branch
      %130 = sbr.rel (0) target = $region53
    $region52: #{auto_reg_transformer_fwd.1} parent=1 // pred_region
      _
    $region53: #{auto_reg_transformer_fwd.1} parent=1 // pred_fallthru
      _
    // Predicated region
    $region54: #{auto_reg_transformer_fwd.1} parent=1 // pred_check
      _
    $region55: #{auto_reg_transformer_fwd.1} parent=1 // pred_check_branch
      %132 = sbr.rel (0) target = $region57
    $region56: #{auto_reg_transformer_fwd.1} parent=1 // pred_region
      _
    $region57: #{auto_reg_transformer_fwd.1} parent=1 // pred_fallthru
      _
    // Predicated region
    $region58: #{auto_reg_transformer_fwd.1} parent=1 // pred_check
      _
    $region59: #{auto_reg_transformer_fwd.1} parent=1 // pred_check_branch
      %134 = sbr.rel (0) target = $region61
    $region60: #{auto_reg_transformer_fwd.1} parent=1 // pred_region
      _
    $region61: #{auto_reg_transformer_fwd.1} parent=1 // pred_fallthru
      _
    // Predicated region
    $region62: #{auto_reg_transformer_fwd.1} parent=1 // pred_check
      _
    $region63: #{auto_reg_transformer_fwd.1} parent=1 // pred_check_branch
      %136 = sbr.rel (0) target = $region65
    $region64: #{auto_reg_transformer_fwd.1} parent=1 // pred_region
      _
    $region65: #{auto_reg_transformer_fwd.1} parent=1 // pred_fallthru
      _
    // Predicated region
    $region66: #{auto_reg_transformer_fwd.1} parent=1 // pred_check
      _
    $region67: #{auto_reg_transformer_fwd.1} parent=1 // pred_check_branch
      %138 = sbr.rel (0) target = $region69
    $region68: #{auto_reg_transformer_fwd.1} parent=1 // pred_region
      _
    $region69: #{auto_reg_transformer_fwd.1} parent=1 // pred_fallthru
      _
    // Predicated region
    $region70: #{auto_reg_transformer_fwd.1} parent=1 // pred_check
      _
    $region71: #{auto_reg_transformer_fwd.1} parent=1 // pred_check_branch
      %140 = sbr.rel (0) target = $region73
    $region72: #{auto_reg_transformer_fwd.1} parent=1 // pred_region
      _
    $region73: #{auto_reg_transformer_fwd.1} parent=1 // pred_fallthru
      _
    // Predicated region
    $region74: #{auto_reg_transformer_fwd.1} parent=1 // pred_check
      _
    $region75: #{auto_reg_transformer_fwd.1} parent=1 // pred_check_branch
      %142 = sbr.rel (0) target = $region77
    $region76: #{auto_reg_transformer_fwd.1} parent=1 // pred_region
      _
    $region77: #{auto_reg_transformer_fwd.1} parent=1 // pred_fallthru
      _
    // Predicated region
    $region78: #{auto_reg_transformer_fwd.1} parent=1 // pred_check
      _
    $region79: #{auto_reg_transformer_fwd.1} parent=1 // pred_check_branch
      %144 = sbr.rel (0) target = $region81
    $region80: #{auto_reg_transformer_fwd.1} parent=1 // pred_region
      _
    $region81: #{auto_reg_transformer_fwd.1} parent=1 // pred_fallthru
      _
    // Predicated region
    $region82: #{auto_reg_transformer_fwd.1} parent=1 // pred_check
      _
    $region83: #{auto_reg_transformer_fwd.1} parent=1 // pred_check_branch
      %146 = sbr.rel (0) target = $region85
    $region84: #{auto_reg_transformer_fwd.1} parent=1 // pred_region
      _
    $region85: #{auto_reg_transformer_fwd.1} parent=1 // pred_fallthru
      _
    // Predicated region
    $region86: #{auto_reg_transformer_fwd.1} parent=1 // pred_check
      _
    $region87: #{auto_reg_transformer_fwd.1} parent=1 // pred_check_branch
      %148 = sbr.rel (0) target = $region89
    $region88: #{auto_reg_transformer_fwd.1} parent=1 // pred_region
      _
    $region89: #{auto_reg_transformer_fwd.1} parent=1 // pred_fallthru
      _
    // Predicated region
    $region90: #{auto_reg_transformer_fwd.1} parent=1 // pred_check
      _
    $region91: #{auto_reg_transformer_fwd.1} parent=1 // pred_check_branch
      %150 = sbr.rel (0) target = $region93
    $region92: #{auto_reg_transformer_fwd.1} parent=1 // pred_region
      _
    $region93: #{auto_reg_transformer_fwd.1} parent=1 // pred_fallthru
      _
    // Predicated region
    $region94: #{auto_reg_transformer_fwd.1} parent=1 // pred_check
      _
    $region95: #{auto_reg_transformer_fwd.1} parent=1 // pred_check_branch
      %152 = sbr.rel (0) target = $region97
    $region96: #{auto_reg_transformer_fwd.1} parent=1 // pred_region
      _
    $region97: #{auto_reg_transformer_fwd.1} parent=1 // pred_fallthru
      _
    // Predicated region
    $region98: #{auto_reg_transformer_fwd.1} parent=1 // pred_check
      _
    $region99: #{auto_reg_transformer_fwd.1} parent=1 // pred_check_branch
      %154 = sbr.rel (0) target = $region101
    $region100: #{auto_reg_transformer_fwd.1} parent=1 // pred_region
      _
    $region101: #{auto_reg_transformer_fwd.1} parent=1 // pred_fallthru
      _
    // Predicated region
    $region102: #{auto_reg_transformer_fwd.1} parent=1 // pred_check
      _
    $region103: #{auto_reg_transformer_fwd.1} parent=1 // pred_check_branch
      %156 = sbr.rel (0) target = $region105
    $region104: #{auto_reg_transformer_fwd.1} parent=1 // pred_region
      _
    $region105: #{auto_reg_transformer_fwd.1} parent=1 // pred_fallthru
      _
    // Predicated region
    $region106: #{auto_reg_transformer_fwd.1} parent=1 // pred_check
      _
    $region107: #{auto_reg_transformer_fwd.1} parent=1 // pred_check_branch
      %158 = sbr.rel (0) target = $region109
    $region108: #{auto_reg_transformer_fwd.1} parent=1 // pred_region
      _
    $region109: #{auto_reg_transformer_fwd.1} parent=1 // pred_fallthru
      _
    // Predicated region
    $region110: #{auto_reg_transformer_fwd.1} parent=1 // pred_check
      _
    $region111: #{auto_reg_transformer_fwd.1} parent=1 // pred_check_branch
      %160 = sbr.rel (0) target = $region113
    $region112: #{auto_reg_transformer_fwd.1} parent=1 // pred_region
      _
    $region113: #{auto_reg_transformer_fwd.1} parent=1 // pred_fallthru
      _
    // Predicated region
    $region114: #{auto_reg_transformer_fwd.1} parent=1 // pred_check
      _
    $region115: #{auto_reg_transformer_fwd.1} parent=1 // pred_check_branch
      %162 = sbr.rel (0) target = $region117
    $region116: #{auto_reg_transformer_fwd.1} parent=1 // pred_region
      _
    $region117: #{auto_reg_transformer_fwd.1} parent=1 // pred_fallthru
      _
    // Predicated region
    $region118: #{auto_reg_transformer_fwd.1} parent=1 // pred_check
      _
    $region119: #{auto_reg_transformer_fwd.1} parent=1 // pred_check_branch
      %164 = sbr.rel (0) target = $region121
    $region120: #{auto_reg_transformer_fwd.1} parent=1 // pred_region
      _
    $region121: #{auto_reg_transformer_fwd.1} parent=1 // pred_fallthru
      _
    // Predicated region
    $region122: #{auto_reg_transformer_fwd.1} parent=1 // pred_check
      _
    $region123: #{auto_reg_transformer_fwd.1} parent=1 // pred_check_branch
      %166 = sbr.rel (0) target = $region125
    $region124: #{auto_reg_transformer_fwd.1} parent=1 // pred_region
      _
    $region125: #{auto_reg_transformer_fwd.1} parent=1 // pred_fallthru
      _
    // Predicated region
    $region126: #{auto_reg_transformer_fwd.1} parent=1 // pred_check
      _
    $region127: #{auto_reg_transformer_fwd.1} parent=1 // pred_check_branch
      %168 = sbr.rel (0) target = $region129
    $region128: #{auto_reg_transformer_fwd.1} parent=1 // pred_region
      _
    $region129: #{auto_reg_transformer_fwd.1} parent=1 // pred_fallthru
      _
    // Predicated region
    $region130: #{auto_reg_transformer_fwd.1} parent=1 // pred_check
      _
    $region131: #{auto_reg_transformer_fwd.1} parent=1 // pred_check_branch
      %170 = sbr.rel (0) target = $region133
    $region132: #{auto_reg_transformer_fwd.1} parent=1 // pred_region
      _
    $region133: #{auto_reg_transformer_fwd.1} parent=1 // pred_fallthru
      _
    // Predicated region
    $region134: #{auto_reg_transformer_fwd.1} parent=1 // pred_check
      _
    $region135: #{auto_reg_transformer_fwd.1} parent=1 // pred_check_branch
      %172 = sbr.rel (0) target = $region137
    $region136: #{auto_reg_transformer_fwd.1} parent=1 // pred_region
      _
    $region137: #{auto_reg_transformer_fwd.1} parent=1 // pred_fallthru
      _
    // Predicated region
    $region138: #{auto_reg_transformer_fwd.1} parent=1 // pred_check
      _
    $region139: #{auto_reg_transformer_fwd.1} parent=1 // pred_check_branch
      %174 = sbr.rel (0) target = $region141
    $region140: #{auto_reg_transformer_fwd.1} parent=1 // pred_region
      _
    $region141: #{auto_reg_transformer_fwd.1} parent=1 // pred_fallthru
      _
    // Predicated region
    $region142: #{auto_reg_transformer_fwd.1} parent=1 // pred_check
      _
    $region143: #{auto_reg_transformer_fwd.1} parent=1 // pred_check_branch
      %176 = sbr.rel (0) target = $region145
    $region144: #{auto_reg_transformer_fwd.1} parent=1 // pred_region
      _
    $region145: #{auto_reg_transformer_fwd.1} parent=1 // pred_fallthru
      _
    // Predicated region
    $region146: #{auto_reg_transformer_fwd.1} parent=1 // pred_check
      _
    $region147: #{auto_reg_transformer_fwd.1} parent=1 // pred_check_branch
      %178 = sbr.rel (0) target = $region149
    $region148: #{auto_reg_transformer_fwd.1} parent=1 // pred_region
      _
    $region149: #{auto_reg_transformer_fwd.1} parent=1 // pred_fallthru
      _
    // Predicated region
    $region150: #{auto_reg_transformer_fwd.1} parent=1 // pred_check
      _
    $region151: #{auto_reg_transformer_fwd.1} parent=1 // pred_check_branch
      %180 = sbr.rel (0) target = $region153
    $region152: #{auto_reg_transformer_fwd.1} parent=1 // pred_region
      _
    $region153: #{auto_reg_transformer_fwd.1} parent=1 // pred_fallthru
      _
    // Predicated region
    $region154: #{auto_reg_transformer_fwd.1} parent=1 // pred_check
      _
    $region155: #{auto_reg_transformer_fwd.1} parent=1 // pred_check_branch
      %182 = sbr.rel (0) target = $region157
    $region156: #{auto_reg_transformer_fwd.1} parent=1 // pred_region
      _
    $region157: #{auto_reg_transformer_fwd.1} parent=1 // pred_fallthru
      _
    // Predicated region
    $region158: #{auto_reg_transformer_fwd.1} parent=1 // pred_check
      _
    $region159: #{auto_reg_transformer_fwd.1} parent=1 // pred_check_branch
      %184 = sbr.rel (0) target = $region161
    $region160: #{auto_reg_transformer_fwd.1} parent=1 // pred_region
      _
    $region161: #{auto_reg_transformer_fwd.1} parent=1 // pred_fallthru
      _
    // Predicated region
    $region162: #{auto_reg_transformer_fwd.1} parent=1 // pred_check
      _
    $region163: #{auto_reg_transformer_fwd.1} parent=1 // pred_check_branch
      %186 = sbr.rel (0) target = $region165
    $region164: #{auto_reg_transformer_fwd.1} parent=1 // pred_region
      _
    $region165: #{auto_reg_transformer_fwd.1} parent=1 // pred_fallthru
      _
    // Predicated region
    $region166: #{auto_reg_transformer_fwd.1} parent=1 // pred_check
      _
    $region167: #{auto_reg_transformer_fwd.1} parent=1 // pred_check_branch
      %188 = sbr.rel (0) target = $region169
    $region168: #{auto_reg_transformer_fwd.1} parent=1 // pred_region
      _
    $region169: #{auto_reg_transformer_fwd.1} parent=1 // pred_fallthru
      _
    // Predicated region
    $region170: #{auto_reg_transformer_fwd.1} parent=1 // pred_check
      _
    $region171: #{auto_reg_transformer_fwd.1} parent=1 // pred_check_branch
      %190 = sbr.rel (0) target = $region173
    $region172: #{auto_reg_transformer_fwd.1} parent=1 // pred_region
      _
    $region173: #{auto_reg_transformer_fwd.1} parent=1 // pred_fallthru
      _
    // Predicated region
    $region174: #{auto_reg_transformer_fwd.1} parent=1 // pred_check
      _
    $region175: #{auto_reg_transformer_fwd.1} parent=1 // pred_check_branch
      %192 = sbr.rel (0) target = $region177
    $region176: #{auto_reg_transformer_fwd.1} parent=1 // pred_region
      _
    $region177: #{auto_reg_transformer_fwd.1} parent=1 // pred_fallthru
      _
    // Predicated region
    $region178: #{auto_reg_transformer_fwd.1} parent=1 // pred_check
      _
    $region179: #{auto_reg_transformer_fwd.1} parent=1 // pred_check_branch
      %194 = sbr.rel (0) target = $region181
    $region180: #{auto_reg_transformer_fwd.1} parent=1 // pred_region
      _
    $region181: #{auto_reg_transformer_fwd.1} parent=1 // pred_fallthru
      _
    // Predicated region
    $region182: #{auto_reg_transformer_fwd.1} parent=1 // pred_check
      _
    $region183: #{auto_reg_transformer_fwd.1} parent=1 // pred_check_branch
      %196 = sbr.rel (0) target = $region185
    $region184: #{auto_reg_transformer_fwd.1} parent=1 // pred_region
      %s198 = ssub.s32 16, 16
      %199 = vsyncadd [#allocation4], %s198
      %s201 = sshll.u32 [#allocation3], 4
      %s202 = int_to_ptr.vmem [resolvable:$true] %s201
      %204 = dma.hbm_to_vmem [thread:$0]  %s91, 16, %s202, [#allocation4]
    $region185: #{auto_reg_transformer_fwd.1} parent=1 // pred_fallthru
      _
    // Predicated region
    $region186: #{auto_reg_transformer_fwd.1} parent=1 // pred_check
      _
    $region187: #{auto_reg_transformer_fwd.1} parent=1 // pred_check_branch
      %206 = sbr.rel (0) target = $region189
    $region188: #{auto_reg_transformer_fwd.1} parent=1 // pred_region
      %s208 = ssub.s32 16, 16
      %209 = vsyncadd [#allocation7], %s208
      %s211 = sshll.u32 [#allocation6], 4
      %s212 = int_to_ptr.vmem [resolvable:$true] %s211
      %214 = dma.hbm_to_vmem [thread:$0]  %s93, 16, %s212, [#allocation7]
    $region189: #{auto_reg_transformer_fwd.1} parent=1 // pred_fallthru
      _
    // Predicated region
    $region190: #{auto_reg_transformer_fwd.1} parent=1 // pred_check
      _
    $region191: #{auto_reg_transformer_fwd.1} parent=1 // pred_check_branch
      %216 = sbr.rel (0) target = $region193
    $region192: #{auto_reg_transformer_fwd.1} parent=1 // pred_region
      %s218 = ssub.s32 16, 16
      %219 = vsyncadd [#allocation7], %s218
      %s221 = sshll.u32 [#allocation8], 4
      %s222 = int_to_ptr.vmem [resolvable:$true] %s221
      %224 = dma.hbm_to_vmem [thread:$0]  %s95, 16, %s222, [#allocation7]
    $region193: #{auto_reg_transformer_fwd.1} parent=1 // pred_fallthru
      _
    // Predicated region
    $region194: #{auto_reg_transformer_fwd.1} parent=1 // pred_check
      _
    $region195: #{auto_reg_transformer_fwd.1} parent=1 // pred_check_branch
      %226 = sbr.rel (0) target = $region197
    $region196: #{auto_reg_transformer_fwd.1} parent=1 // pred_region
      %227 = dma.done [#allocation4], 16
    $region197: #{auto_reg_transformer_fwd.1} parent=1 // pred_fallthru
      _
    // Predicated region
    $region198: #{auto_reg_transformer_fwd.1} parent=1 // pred_check
      _
    $region199: #{auto_reg_transformer_fwd.1} parent=1 // pred_check_branch
      %229 = sbr.rel (0) target = $region201
    $region200: #{auto_reg_transformer_fwd.1} parent=1 // pred_region
      %230 = dma.done [#allocation7], 16
    $region201: #{auto_reg_transformer_fwd.1} parent=1 // pred_fallthru
      _
    // Predicated region
    $region202: #{auto_reg_transformer_fwd.1} parent=1 // pred_check
      _
    $region203: #{auto_reg_transformer_fwd.1} parent=1 // pred_check_branch
      %232 = sbr.rel (0) target = $region205
    $region204: #{auto_reg_transformer_fwd.1} parent=1 // pred_region
      %233 = dma.done [#allocation7], 16
    $region205: #{auto_reg_transformer_fwd.1} parent=1 // pred_fallthru
      _
    %v234 = vlaneseq
    %v235 = vand.u32 %v234, 127
    %vm236 = vcmp.ge.s32.totalorder %v235, 0
    %vm237 = vcmp.lt.s32.totalorder %v235, 4
    %vm238 = vmand %vm236, %vm237
    %v239 = vsel %vm238, 1, 0
    %v240 = vcvt.s32.f32 %v239
    %vm241 = vcmp.ge.s32.totalorder %v235, 4
    %vm242 = vcmp.lt.s32.totalorder %v235, 8
    %vm243 = vmand %vm241, %vm242
    %v244 = vsel %vm243, 1, 0
    %v245 = vcvt.s32.f32 %v244
    %v246 = vld [vmem:[%s1] sm:$0xff]
    %v247 = vld [vmem:[%s1 + $0x8] sm:$0xff]
    %v248 = vld [vmem:[%s13] sm:$0xff]
    %v249 = vld [vmem:[%s19] sm:$0x1]
    %v251 = vlaneseq
    %v252 = vshrl.u32 %v251, 7
    %v253 = vsub.s32 0, %v252
    %v254 = vrot.slane %v249, %v253
    %vm256 = vcmask 64512
    %v258 = vsel %vm256, %v246, 0
    %v261 = vsel %vm256, %v247, 0
    %263 = vmatprep.subr.mxu0 0.0
    %264 = vmatpush1.msra.mxu0 %v248
    %265 = vmatprep.subr.mxu0 0.0
    %266 = vmatpush1.msra.mxu0 0.0
    %267 = vmatprep.subr.mxu0 0.0
    %268 = vmatpush1.msra.mxu0 0.0
    %269 = vmatprep.subr.mxu0 0.0
    %270 = vmatpush1.msra.mxu0 0.0
    %271 = vmatprep.subr.mxu0 0.0
    %272 = vmatpush1.msra.mxu0 0.0
    %273 = vmatprep.subr.mxu0 0.0
    %274 = vmatpush1.msra.mxu0 0.0
    %275 = vmatprep.subr.mxu0 0.0
    %276 = vmatpush1.msra.mxu0 0.0
    %277 = vmatprep.subr.mxu0 0.0
    %278 = vmatpush1.msra.mxu0 0.0
    %279 = vmatprep.subr.mxu0 0.0
    %280 = vmatpush1.msra.mxu0 0.0
    %281 = vmatprep.subr.mxu0 0.0
    %282 = vmatpush1.msra.mxu0 0.0
    %283 = vmatprep.subr.mxu0 0.0
    %284 = vmatpush1.msra.mxu0 0.0
    %285 = vmatprep.subr.mxu0 0.0
    %286 = vmatpush1.msra.mxu0 0.0
    %287 = vmatprep.subr.mxu0 0.0
    %288 = vmatpush1.msra.mxu0 0.0
    %289 = vmatprep.subr.mxu0 0.0
    %290 = vmatpush1.msra.mxu0 0.0
    %291 = vmatprep.subr.mxu0 0.0
    %292 = vmatpush1.msra.mxu0 0.0
    %293 = vmatprep.subr.mxu0 0.0
    %294 = vmatpush1.msra.mxu0 0.0
    %295 = vmatprep.subr.mxu0 0.0
    %296 = vmatpush1.msra.mxu0 0.0
    %297 = vmatprep.subr.mxu0 0.0
    %298 = vmatpush1.msra.mxu0 0.0
    %299 = vmatprep.subr.mxu0 0.0
    %300 = vmatpush1.msra.mxu0 0.0
    %301 = vmatprep.subr.mxu0 0.0
    %302 = vmatpush1.msra.mxu0 0.0
    %303 = vmatprep.subr.mxu0 0.0
    %304 = vmatpush1.msra.mxu0 0.0
    %305 = vmatprep.subr.mxu0 0.0
    %306 = vmatpush1.msra.mxu0 0.0
    %307 = vmatprep.subr.mxu0 0.0
    %308 = vmatpush1.msra.mxu0 0.0
    %309 = vmatprep.subr.mxu0 0.0
    %310 = vmatpush1.msra.mxu0 0.0
    %311 = vmatprep.subr.mxu0 0.0
    %312 = vmatpush1.msra.mxu0 0.0
    %313 = vmatprep.subr.mxu0 0.0
    %314 = vmatpush1.msra.mxu0 0.0
    %315 = vmatprep.subr.mxu0 0.0
    %316 = vmatpush1.msra.mxu0 0.0
    %317 = vmatprep.subr.mxu0 0.0
    %318 = vmatpush1.msra.mxu0 0.0
    %319 = vmatprep.subr.mxu0 0.0
    %320 = vmatpush1.msra.mxu0 0.0
    %321 = vmatprep.subr.mxu0 0.0
    %322 = vmatpush1.msra.mxu0 0.0
    %323 = vmatprep.subr.mxu0 0.0
    %324 = vmatpush1.msra.mxu0 0.0
    %325 = vmatprep.subr.mxu0 0.0
    %326 = vmatpush1.msra.mxu0 0.0
    %327 = vmatprep.mubr.f32.mxu0 0.0
    %328 = vmatmul.mubr.f32.gmra.mrb[0].mxu0 %v258
    %v329 = vpop.f32.mrb[0].mxu0
    %v330 = vadd.f32 %v254, %v329
    %v331 = vpop.f32.mrb[0].mxu0
    %332 = vmatprep.mubr.f32.mxu0 0.0
    %333 = vmatmul.mubr.f32.gmra.mrb[0].mxu0 %v261
    %v334 = vpop.f32.mrb[0].mxu0
    %v335 = vadd.f32 %v254, %v334
    %v336 = vpop.f32.mrb[0].mxu0
    %337 = vdwg.mxu0
    %v338 = vld [vmem:[%s15] sm:$0xff]
    %v339 = vld [vmem:[%s21] sm:$0x1]
    %v341 = vlaneseq
    %v342 = vshrl.u32 %v341, 7
    %v343 = vsub.s32 0, %v342
    %v344 = vrot.slane %v339, %v343
    %346 = vmatprep.subr.mxu0 0.0
    %347 = vmatpush1.msra.mxu0 %v338
    %348 = vmatprep.subr.mxu0 0.0
    %349 = vmatpush1.msra.mxu0 0.0
    %350 = vmatprep.subr.mxu0 0.0
    %351 = vmatpush1.msra.mxu0 0.0
    %352 = vmatprep.subr.mxu0 0.0
    %353 = vmatpush1.msra.mxu0 0.0
    %354 = vmatprep.subr.mxu0 0.0
    %355 = vmatpush1.msra.mxu0 0.0
    %356 = vmatprep.subr.mxu0 0.0
    %357 = vmatpush1.msra.mxu0 0.0
    %358 = vmatprep.subr.mxu0 0.0
    %359 = vmatpush1.msra.mxu0 0.0
    %360 = vmatprep.subr.mxu0 0.0
    %361 = vmatpush1.msra.mxu0 0.0
    %362 = vmatprep.subr.mxu0 0.0
    %363 = vmatpush1.msra.mxu0 0.0
    %364 = vmatprep.subr.mxu0 0.0
    %365 = vmatpush1.msra.mxu0 0.0
    %366 = vmatprep.subr.mxu0 0.0
    %367 = vmatpush1.msra.mxu0 0.0
    %368 = vmatprep.subr.mxu0 0.0
    %369 = vmatpush1.msra.mxu0 0.0
    %370 = vmatprep.subr.mxu0 0.0
    %371 = vmatpush1.msra.mxu0 0.0
    %372 = vmatprep.subr.mxu0 0.0
    %373 = vmatpush1.msra.mxu0 0.0
    %374 = vmatprep.subr.mxu0 0.0
    %375 = vmatpush1.msra.mxu0 0.0
    %376 = vmatprep.subr.mxu0 0.0
    %377 = vmatpush1.msra.mxu0 0.0
    %378 = vmatprep.subr.mxu0 0.0
    %379 = vmatpush1.msra.mxu0 0.0
    %380 = vmatprep.subr.mxu0 0.0
    %381 = vmatpush1.msra.mxu0 0.0
    %382 = vmatprep.subr.mxu0 0.0
    %383 = vmatpush1.msra.mxu0 0.0
    %384 = vmatprep.subr.mxu0 0.0
    %385 = vmatpush1.msra.mxu0 0.0
    %386 = vmatprep.subr.mxu0 0.0
    %387 = vmatpush1.msra.mxu0 0.0
    %388 = vmatprep.subr.mxu0 0.0
    %389 = vmatpush1.msra.mxu0 0.0
    %390 = vmatprep.subr.mxu0 0.0
    %391 = vmatpush1.msra.mxu0 0.0
    %392 = vmatprep.subr.mxu0 0.0
    %393 = vmatpush1.msra.mxu0 0.0
    %394 = vmatprep.subr.mxu0 0.0
    %395 = vmatpush1.msra.mxu0 0.0
    %396 = vmatprep.subr.mxu0 0.0
    %397 = vmatpush1.msra.mxu0 0.0
    %398 = vmatprep.subr.mxu0 0.0
    %399 = vmatpush1.msra.mxu0 0.0
    %400 = vmatprep.subr.mxu0 0.0
    %401 = vmatpush1.msra.mxu0 0.0
    %402 = vmatprep.subr.mxu0 0.0
    %403 = vmatpush1.msra.mxu0 0.0
    %404 = vmatprep.subr.mxu0 0.0
    %405 = vmatpush1.msra.mxu0 0.0
    %406 = vmatprep.subr.mxu0 0.0
    %407 = vmatpush1.msra.mxu0 0.0
    %408 = vmatprep.subr.mxu0 0.0
    %409 = vmatpush1.msra.mxu0 0.0
    %410 = vmatprep.mubr.f32.mxu0 0.0
    %411 = vmatmul.mubr.f32.gmra.mrb[0].mxu0 %v258
    %v412 = vpop.f32.mrb[0].mxu0
    %v413 = vadd.f32 %v344, %v412
    %v414 = vpop.f32.mrb[0].mxu0
    %415 = vmatprep.mubr.f32.mxu0 0.0
    %416 = vmatmul.mubr.f32.gmra.mrb[0].mxu0 %v261
    %v417 = vpop.f32.mrb[0].mxu0
    %v418 = vadd.f32 %v344, %v417
    %v419 = vpop.f32.mrb[0].mxu0
    %420 = vdwg.mxu0
    %v421 = vld [vmem:[%s17] sm:$0xff]
    %v422 = vld [vmem:[%s23] sm:$0x1]
    %v424 = vlaneseq
    %v425 = vshrl.u32 %v424, 7
    %v426 = vsub.s32 0, %v425
    %v427 = vrot.slane %v422, %v426
    %429 = vmatprep.subr.mxu0 0.0
    %430 = vmatpush1.msra.mxu0 %v421
    %431 = vmatprep.subr.mxu0 0.0
    %432 = vmatpush1.msra.mxu0 0.0
    %433 = vmatprep.subr.mxu0 0.0
    %434 = vmatpush1.msra.mxu0 0.0
    %435 = vmatprep.subr.mxu0 0.0
    %436 = vmatpush1.msra.mxu0 0.0
    %437 = vmatprep.subr.mxu0 0.0
    %438 = vmatpush1.msra.mxu0 0.0
    %439 = vmatprep.subr.mxu0 0.0
    %440 = vmatpush1.msra.mxu0 0.0
    %441 = vmatprep.subr.mxu0 0.0
    %442 = vmatpush1.msra.mxu0 0.0
    %443 = vmatprep.subr.mxu0 0.0
    %444 = vmatpush1.msra.mxu0 0.0
    %445 = vmatprep.subr.mxu0 0.0
    %446 = vmatpush1.msra.mxu0 0.0
    %447 = vmatprep.subr.mxu0 0.0
    %448 = vmatpush1.msra.mxu0 0.0
    %449 = vmatprep.subr.mxu0 0.0
    %450 = vmatpush1.msra.mxu0 0.0
    %451 = vmatprep.subr.mxu0 0.0
    %452 = vmatpush1.msra.mxu0 0.0
    %453 = vmatprep.subr.mxu0 0.0
    %454 = vmatpush1.msra.mxu0 0.0
    %455 = vmatprep.subr.mxu0 0.0
    %456 = vmatpush1.msra.mxu0 0.0
    %457 = vmatprep.subr.mxu0 0.0
    %458 = vmatpush1.msra.mxu0 0.0
    %459 = vmatprep.subr.mxu0 0.0
    %460 = vmatpush1.msra.mxu0 0.0
    %461 = vmatprep.subr.mxu0 0.0
    %462 = vmatpush1.msra.mxu0 0.0
    %463 = vmatprep.subr.mxu0 0.0
    %464 = vmatpush1.msra.mxu0 0.0
    %465 = vmatprep.subr.mxu0 0.0
    %466 = vmatpush1.msra.mxu0 0.0
    %467 = vmatprep.subr.mxu0 0.0
    %468 = vmatpush1.msra.mxu0 0.0
    %469 = vmatprep.subr.mxu0 0.0
    %470 = vmatpush1.msra.mxu0 0.0
    %471 = vmatprep.subr.mxu0 0.0
    %472 = vmatpush1.msra.mxu0 0.0
    %473 = vmatprep.subr.mxu0 0.0
    %474 = vmatpush1.msra.mxu0 0.0
    %475 = vmatprep.subr.mxu0 0.0
    %476 = vmatpush1.msra.mxu0 0.0
    %477 = vmatprep.subr.mxu0 0.0
    %478 = vmatpush1.msra.mxu0 0.0
    %479 = vmatprep.subr.mxu0 0.0
    %480 = vmatpush1.msra.mxu0 0.0
    %481 = vmatprep.subr.mxu0 0.0
    %482 = vmatpush1.msra.mxu0 0.0
    %483 = vmatprep.subr.mxu0 0.0
    %484 = vmatpush1.msra.mxu0 0.0
    %485 = vmatprep.subr.mxu0 0.0
    %486 = vmatpush1.msra.mxu0 0.0
    %487 = vmatprep.subr.mxu0 0.0
    %488 = vmatpush1.msra.mxu0 0.0
    %489 = vmatprep.subr.mxu0 0.0
    %490 = vmatpush1.msra.mxu0 0.0
    %491 = vmatprep.subr.mxu0 0.0
    %492 = vmatpush1.msra.mxu0 0.0
    %493 = vmatprep.mubr.f32.mxu0 0.0
    %494 = vmatmul.mubr.f32.gmra.mrb[0].mxu0 %v258
    %v495 = vpop.f32.mrb[0].mxu0
    %v496 = vadd.f32 %v427, %v495
    %v497 = vpop.f32.mrb[0].mxu0
    %498 = vmatprep.mubr.f32.mxu0 0.0
    %499 = vmatmul.mubr.f32.gmra.mrb[0].mxu0 %v261
    %v500 = vpop.f32.mrb[0].mxu0
    %v501 = vadd.f32 %v427, %v500
    %v502 = vpop.f32.mrb[0].mxu0
    %503 = vdwg.mxu0
    %v504 = vld [vmem:[%s7] sm:$0xff]
    %v505 = vld [vmem:[%s7 + $0x8] sm:$0xff]
    %v506 = vmul.f32 %v330, %v240
    %v507 = vmul.f32 %v335, %v240
    %v509 = vsel %vm256, %v506, 0
    %v512 = vsel %vm256, %v507, 0
    %v515 = vsel %vm256, %v413, 0
    %v518 = vsel %vm256, %v418, 0
    %520 = vmatprep.subr.mxu0 0.0
    %521 = vmatpush1.xpose.msra.mxu0 %v515
    %522 = vmatprep.subr.mxu0 0.0
    %523 = vmatpush1.xpose.msra.mxu0 %v518
    %524 = vmatprep.subr.mxu0 0.0
    %525 = vmatpush1.xpose.msra.mxu0 0.0
    %526 = vmatprep.subr.mxu0 0.0
    %527 = vmatpush1.xpose.msra.mxu0 0.0
    %528 = vmatprep.subr.mxu0 0.0
    %529 = vmatpush1.xpose.msra.mxu0 0.0
    %530 = vmatprep.subr.mxu0 0.0
    %531 = vmatpush1.xpose.msra.mxu0 0.0
    %532 = vmatprep.subr.mxu0 0.0
    %533 = vmatpush1.xpose.msra.mxu0 0.0
    %534 = vmatprep.subr.mxu0 0.0
    %535 = vmatpush1.xpose.msra.mxu0 0.0
    %536 = vmatprep.subr.mxu0 0.0
    %537 = vmatpush1.xpose.msra.mxu0 0.0
    %538 = vmatprep.subr.mxu0 0.0
    %539 = vmatpush1.xpose.msra.mxu0 0.0
    %540 = vmatprep.subr.mxu0 0.0
    %541 = vmatpush1.xpose.msra.mxu0 0.0
    %542 = vmatprep.subr.mxu0 0.0
    %543 = vmatpush1.xpose.msra.mxu0 0.0
    %544 = vmatprep.subr.mxu0 0.0
    %545 = vmatpush1.xpose.msra.mxu0 0.0
    %546 = vmatprep.subr.mxu0 0.0
    %547 = vmatpush1.xpose.msra.mxu0 0.0
    %548 = vmatprep.subr.mxu0 0.0
    %549 = vmatpush1.xpose.msra.mxu0 0.0
    %550 = vmatprep.subr.mxu0 0.0
    %551 = vmatpush1.xpose.msra.mxu0 0.0
    %552 = vmatprep.subr.mxu0 0.0
    %553 = vmatpush1.xpose.msra.mxu0 0.0
    %554 = vmatprep.subr.mxu0 0.0
    %555 = vmatpush1.xpose.msra.mxu0 0.0
    %556 = vmatprep.subr.mxu0 0.0
    %557 = vmatpush1.xpose.msra.mxu0 0.0
    %558 = vmatprep.subr.mxu0 0.0
    %559 = vmatpush1.xpose.msra.mxu0 0.0
    %560 = vmatprep.subr.mxu0 0.0
    %561 = vmatpush1.xpose.msra.mxu0 0.0
    %562 = vmatprep.subr.mxu0 0.0
    %563 = vmatpush1.xpose.msra.mxu0 0.0
    %564 = vmatprep.subr.mxu0 0.0
    %565 = vmatpush1.xpose.msra.mxu0 0.0
    %566 = vmatprep.subr.mxu0 0.0
    %567 = vmatpush1.xpose.msra.mxu0 0.0
    %568 = vmatprep.subr.mxu0 0.0
    %569 = vmatpush1.xpose.msra.mxu0 0.0
    %570 = vmatprep.subr.mxu0 0.0
    %571 = vmatpush1.xpose.msra.mxu0 0.0
    %572 = vmatprep.subr.mxu0 0.0
    %573 = vmatpush1.xpose.msra.mxu0 0.0
    %574 = vmatprep.subr.mxu0 0.0
    %575 = vmatpush1.xpose.msra.mxu0 0.0
    %576 = vmatprep.subr.mxu0 0.0
    %577 = vmatpush1.xpose.msra.mxu0 0.0
    %578 = vmatprep.subr.mxu0 0.0
    %579 = vmatpush1.xpose.msra.mxu0 0.0
    %580 = vmatprep.subr.mxu0 0.0
    %581 = vmatpush1.xpose.msra.mxu0 0.0
    %582 = vmatprep.subr.mxu0 0.0
    %583 = vmatpush1.xpose.msra.mxu0 0.0
    %584 = vmatprep.mubr.f32.mxu0 0.0
    %585 = vmatmul.mubr.f32.gmra.mrb[0].mxu0 %v509
    %v586 = vpop.f32.mrb[0].mxu0
    %v587 = vadd.f32 0.0, %v586
    %v588 = vpop.f32.mrb[0].mxu0
    %589 = vmatprep.mubr.f32.mxu0 0.0
    %590 = vmatmul.mubr.f32.gmra.mrb[0].mxu0 %v512
    %v591 = vpop.f32.mrb[0].mxu0
    %v592 = vadd.f32 0.0, %v591
    %v593 = vpop.f32.mrb[0].mxu0
    %594 = vdwg.mxu0
    %v595 = vmul.f32 %v587, 0.5
    %v596 = vmul.f32 %v592, 0.5
    %v597 = vadd.f32 %v595, %v504
    %v598 = vadd.f32 %v596, %v505
    %vm599 = vcmask 130048
    %v600 = vsel %vm599, %v597, -inf
    %601 = vmax.xlane.f32.xlu0 %v600
    %v602 = vpop.xlane.xlu0 %601
    %v603 = vsel %vm599, %v598, -inf
    %604 = vmax.xlane.f32.xlu0 %v603
    %v605 = vpop.xlane.xlu0 %604
    %v606 = vsub.f32 %v597, %v602
    %v607 = vsub.f32 %v598, %v605
    %v608 = vmul.f32 %v606, 1.442695
    %v609 = vpow.pop %v608
    %v610 = vmul.f32 %v607, 1.442695
    %v611 = vpow.pop %v610
    %v612 = vsel %vm599, %v609, 0.0
    %613 = vadd.xlane.f32.xlu0 %v612
    %v614 = vpop.xlane.xlu0 %613
    %v615 = vsel %vm599, %v611, 0.0
    %616 = vadd.xlane.f32.xlu0 %v615
    %v617 = vpop.xlane.xlu0 %616
    %v618 = vrcp.pop %v614
    %v619 = vrcp.pop %v617
    %v620 = vmul.f32 %v609, %v618
    %v621 = vmul.f32 %v611, %v619
    %v622 = vmul.f32 %v496, %v240
    %v623 = vmul.f32 %v501, %v240
    %v624 = vmul.f32 %v330, %v245
    %v625 = vmul.f32 %v335, %v245
    %v627 = vsel %vm256, %v624, 0
    %v630 = vsel %vm256, %v625, 0
    %632 = vmatprep.subr.mxu0 0.0
    %633 = vmatpush1.xpose.msra.mxu0 %v515
    %634 = vmatprep.subr.mxu0 0.0
    %635 = vmatpush1.xpose.msra.mxu0 %v518
    %636 = vmatprep.subr.mxu0 0.0
    %637 = vmatpush1.xpose.msra.mxu0 0.0
    %638 = vmatprep.subr.mxu0 0.0
    %639 = vmatpush1.xpose.msra.mxu0 0.0
    %640 = vmatprep.subr.mxu0 0.0
    %641 = vmatpush1.xpose.msra.mxu0 0.0
    %642 = vmatprep.subr.mxu0 0.0
    %643 = vmatpush1.xpose.msra.mxu0 0.0
    %644 = vmatprep.subr.mxu0 0.0
    %645 = vmatpush1.xpose.msra.mxu0 0.0
    %646 = vmatprep.subr.mxu0 0.0
    %647 = vmatpush1.xpose.msra.mxu0 0.0
    %648 = vmatprep.subr.mxu0 0.0
    %649 = vmatpush1.xpose.msra.mxu0 0.0
    %650 = vmatprep.subr.mxu0 0.0
    %651 = vmatpush1.xpose.msra.mxu0 0.0
    %652 = vmatprep.subr.mxu0 0.0
    %653 = vmatpush1.xpose.msra.mxu0 0.0
    %654 = vmatprep.subr.mxu0 0.0
    %655 = vmatpush1.xpose.msra.mxu0 0.0
    %656 = vmatprep.subr.mxu0 0.0
    %657 = vmatpush1.xpose.msra.mxu0 0.0
    %658 = vmatprep.subr.mxu0 0.0
    %659 = vmatpush1.xpose.msra.mxu0 0.0
    %660 = vmatprep.subr.mxu0 0.0
    %661 = vmatpush1.xpose.msra.mxu0 0.0
    %662 = vmatprep.subr.mxu0 0.0
    %663 = vmatpush1.xpose.msra.mxu0 0.0
    %664 = vmatprep.subr.mxu0 0.0
    %665 = vmatpush1.xpose.msra.mxu0 0.0
    %666 = vmatprep.subr.mxu0 0.0
    %667 = vmatpush1.xpose.msra.mxu0 0.0
    %668 = vmatprep.subr.mxu0 0.0
    %669 = vmatpush1.xpose.msra.mxu0 0.0
    %670 = vmatprep.subr.mxu0 0.0
    %671 = vmatpush1.xpose.msra.mxu0 0.0
    %672 = vmatprep.subr.mxu0 0.0
    %673 = vmatpush1.xpose.msra.mxu0 0.0
    %674 = vmatprep.subr.mxu0 0.0
    %675 = vmatpush1.xpose.msra.mxu0 0.0
    %676 = vmatprep.subr.mxu0 0.0
    %677 = vmatpush1.xpose.msra.mxu0 0.0
    %678 = vmatprep.subr.mxu0 0.0
    %679 = vmatpush1.xpose.msra.mxu0 0.0
    %680 = vmatprep.subr.mxu0 0.0
    %681 = vmatpush1.xpose.msra.mxu0 0.0
    %682 = vmatprep.subr.mxu0 0.0
    %683 = vmatpush1.xpose.msra.mxu0 0.0
    %684 = vmatprep.subr.mxu0 0.0
    %685 = vmatpush1.xpose.msra.mxu0 0.0
    %686 = vmatprep.subr.mxu0 0.0
    %687 = vmatpush1.xpose.msra.mxu0 0.0
    %688 = vmatprep.subr.mxu0 0.0
    %689 = vmatpush1.xpose.msra.mxu0 0.0
    %690 = vmatprep.subr.mxu0 0.0
    %691 = vmatpush1.xpose.msra.mxu0 0.0
    %692 = vmatprep.subr.mxu0 0.0
    %693 = vmatpush1.xpose.msra.mxu0 0.0
    %694 = vmatprep.subr.mxu0 0.0
    %695 = vmatpush1.xpose.msra.mxu0 0.0
    %696 = vmatprep.mubr.f32.mxu0 0.0
    %697 = vmatmul.mubr.f32.gmra.mrb[0].mxu0 %v627
    %v698 = vpop.f32.mrb[0].mxu0
    %v699 = vadd.f32 0.0, %v698
    %v700 = vpop.f32.mrb[0].mxu0
    %701 = vmatprep.mubr.f32.mxu0 0.0
    %702 = vmatmul.mubr.f32.gmra.mrb[0].mxu0 %v630
    %v703 = vpop.f32.mrb[0].mxu0
    %v704 = vadd.f32 0.0, %v703
    %v705 = vpop.f32.mrb[0].mxu0
    %706 = vdwg.mxu0
    %v707 = vmul.f32 %v699, 0.5
    %v708 = vmul.f32 %v704, 0.5
    %v709 = vadd.f32 %v707, %v504
    %v710 = vadd.f32 %v708, %v505
    %v711 = vsel %vm599, %v709, -inf
    %712 = vmax.xlane.f32.xlu0 %v711
    %v713 = vpop.xlane.xlu0 %712
    %v714 = vsel %vm599, %v710, -inf
    %715 = vmax.xlane.f32.xlu0 %v714
    %v716 = vpop.xlane.xlu0 %715
    %v717 = vsub.f32 %v709, %v713
    %v718 = vsub.f32 %v710, %v716
    %v719 = vmul.f32 %v717, 1.442695
    %v720 = vpow.pop %v719
    %v721 = vmul.f32 %v718, 1.442695
    %v722 = vpow.pop %v721
    %v723 = vsel %vm599, %v720, 0.0
    %724 = vadd.xlane.f32.xlu0 %v723
    %v725 = vpop.xlane.xlu0 %724
    %v726 = vsel %vm599, %v722, 0.0
    %727 = vadd.xlane.f32.xlu0 %v726
    %v728 = vpop.xlane.xlu0 %727
    %v729 = vrcp.pop %v725
    %v730 = vrcp.pop %v728
    %v731 = vmul.f32 %v720, %v729
    %v732 = vmul.f32 %v722, %v730
    %v733 = vmul.f32 %v496, %v245
    %v734 = vmul.f32 %v501, %v245
    %v736 = vsel %vm599, %v731, 0
    %v739 = vsel %vm599, %v732, 0
    %741 = vmatprep.subr.mxu0 0.0
    %742 = vmatpush1.msra.mxu0 %v733
    %743 = vmatprep.subr.mxu0 0.0
    %744 = vmatpush1.msra.mxu0 %v734
    %745 = vmatprep.subr.mxu0 0.0
    %746 = vmatpush1.msra.mxu0 0.0
    %747 = vmatprep.subr.mxu0 0.0
    %748 = vmatpush1.msra.mxu0 0.0
    %749 = vmatprep.subr.mxu0 0.0
    %750 = vmatpush1.msra.mxu0 0.0
    %751 = vmatprep.subr.mxu0 0.0
    %752 = vmatpush1.msra.mxu0 0.0
    %753 = vmatprep.subr.mxu0 0.0
    %754 = vmatpush1.msra.mxu0 0.0
    %755 = vmatprep.subr.mxu0 0.0
    %756 = vmatpush1.msra.mxu0 0.0
    %757 = vmatprep.subr.mxu0 0.0
    %758 = vmatpush1.msra.mxu0 0.0
    %759 = vmatprep.subr.mxu0 0.0
    %760 = vmatpush1.msra.mxu0 0.0
    %761 = vmatprep.subr.mxu0 0.0
    %762 = vmatpush1.msra.mxu0 0.0
    %763 = vmatprep.subr.mxu0 0.0
    %764 = vmatpush1.msra.mxu0 0.0
    %765 = vmatprep.subr.mxu0 0.0
    %766 = vmatpush1.msra.mxu0 0.0
    %767 = vmatprep.subr.mxu0 0.0
    %768 = vmatpush1.msra.mxu0 0.0
    %769 = vmatprep.subr.mxu0 0.0
    %770 = vmatpush1.msra.mxu0 0.0
    %771 = vmatprep.subr.mxu0 0.0
    %772 = vmatpush1.msra.mxu0 0.0
    %773 = vmatprep.subr.mxu0 0.0
    %774 = vmatpush1.msra.mxu0 0.0
    %775 = vmatprep.subr.mxu0 0.0
    %776 = vmatpush1.msra.mxu0 0.0
    %777 = vmatprep.subr.mxu0 0.0
    %778 = vmatpush1.msra.mxu0 0.0
    %779 = vmatprep.subr.mxu0 0.0
    %780 = vmatpush1.msra.mxu0 0.0
    %781 = vmatprep.subr.mxu0 0.0
    %782 = vmatpush1.msra.mxu0 0.0
    %783 = vmatprep.subr.mxu0 0.0
    %784 = vmatpush1.msra.mxu0 0.0
    %785 = vmatprep.subr.mxu0 0.0
    %786 = vmatpush1.msra.mxu0 0.0
    %787 = vmatprep.subr.mxu0 0.0
    %788 = vmatpush1.msra.mxu0 0.0
    %789 = vmatprep.subr.mxu0 0.0
    %790 = vmatpush1.msra.mxu0 0.0
    %791 = vmatprep.subr.mxu0 0.0
    %792 = vmatpush1.msra.mxu0 0.0
    %793 = vmatprep.subr.mxu0 0.0
    %794 = vmatpush1.msra.mxu0 0.0
    %795 = vmatprep.subr.mxu0 0.0
    %796 = vmatpush1.msra.mxu0 0.0
    %797 = vmatprep.subr.mxu0 0.0
    %798 = vmatpush1.msra.mxu0 0.0
    %799 = vmatprep.subr.mxu0 0.0
    %800 = vmatpush1.msra.mxu0 0.0
    %801 = vmatprep.subr.mxu0 0.0
    %802 = vmatpush1.msra.mxu0 0.0
    %803 = vmatprep.subr.mxu0 0.0
    %804 = vmatpush1.msra.mxu0 0.0
    %805 = vmatprep.mubr.f32.mxu0 0.0
    %806 = vmatmul.mubr.f32.gmra.mrb[0].mxu0 %v736
    %v807 = vpop.f32.mrb[0].mxu0
    %v808 = vadd.f32 0.0, %v807
    %v809 = vpop.f32.mrb[0].mxu0
    %810 = vmatprep.mubr.f32.mxu0 0.0
    %811 = vmatmul.mubr.f32.gmra.mrb[0].mxu0 %v739
    %v812 = vpop.f32.mrb[0].mxu0
    %v813 = vadd.f32 0.0, %v812
    %v814 = vpop.f32.mrb[0].mxu0
    %815 = vdwg.mxu0
    %v817 = vsel %vm599, %v620, 0
    %v820 = vsel %vm599, %v621, 0
    %822 = vmatprep.subr.mxu0 0.0
    %823 = vmatpush1.msra.mxu0 %v622
    %824 = vmatprep.subr.mxu0 0.0
    %825 = vmatpush1.msra.mxu0 %v623
    %826 = vmatprep.subr.mxu0 0.0
    %827 = vmatpush1.msra.mxu0 0.0
    %828 = vmatprep.subr.mxu0 0.0
    %829 = vmatpush1.msra.mxu0 0.0
    %830 = vmatprep.subr.mxu0 0.0
    %831 = vmatpush1.msra.mxu0 0.0
    %832 = vmatprep.subr.mxu0 0.0
    %833 = vmatpush1.msra.mxu0 0.0
    %834 = vmatprep.subr.mxu0 0.0
    %835 = vmatpush1.msra.mxu0 0.0
    %836 = vmatprep.subr.mxu0 0.0
    %837 = vmatpush1.msra.mxu0 0.0
    %838 = vmatprep.subr.mxu0 0.0
    %839 = vmatpush1.msra.mxu0 0.0
    %840 = vmatprep.subr.mxu0 0.0
    %841 = vmatpush1.msra.mxu0 0.0
    %842 = vmatprep.subr.mxu0 0.0
    %843 = vmatpush1.msra.mxu0 0.0
    %844 = vmatprep.subr.mxu0 0.0
    %845 = vmatpush1.msra.mxu0 0.0
    %846 = vmatprep.subr.mxu0 0.0
    %847 = vmatpush1.msra.mxu0 0.0
    %848 = vmatprep.subr.mxu0 0.0
    %849 = vmatpush1.msra.mxu0 0.0
    %850 = vmatprep.subr.mxu0 0.0
    %851 = vmatpush1.msra.mxu0 0.0
    %852 = vmatprep.subr.mxu0 0.0
    %853 = vmatpush1.msra.mxu0 0.0
    %854 = vmatprep.subr.mxu0 0.0
    %855 = vmatpush1.msra.mxu0 0.0
    %856 = vmatprep.subr.mxu0 0.0
    %857 = vmatpush1.msra.mxu0 0.0
    %858 = vmatprep.subr.mxu0 0.0
    %859 = vmatpush1.msra.mxu0 0.0
    %860 = vmatprep.subr.mxu0 0.0
    %861 = vmatpush1.msra.mxu0 0.0
    %862 = vmatprep.subr.mxu0 0.0
    %863 = vmatpush1.msra.mxu0 0.0
    %864 = vmatprep.subr.mxu0 0.0
    %865 = vmatpush1.msra.mxu0 0.0
    %866 = vmatprep.subr.mxu0 0.0
    %867 = vmatpush1.msra.mxu0 0.0
    %868 = vmatprep.subr.mxu0 0.0
    %869 = vmatpush1.msra.mxu0 0.0
    %870 = vmatprep.subr.mxu0 0.0
    %871 = vmatpush1.msra.mxu0 0.0
    %872 = vmatprep.subr.mxu0 0.0
    %873 = vmatpush1.msra.mxu0 0.0
    %874 = vmatprep.subr.mxu0 0.0
    %875 = vmatpush1.msra.mxu0 0.0
    %876 = vmatprep.subr.mxu0 0.0
    %877 = vmatpush1.msra.mxu0 0.0
    %878 = vmatprep.subr.mxu0 0.0
    %879 = vmatpush1.msra.mxu0 0.0
    %880 = vmatprep.subr.mxu0 0.0
    %881 = vmatpush1.msra.mxu0 0.0
    %882 = vmatprep.subr.mxu0 0.0
    %883 = vmatpush1.msra.mxu0 0.0
    %884 = vmatprep.subr.mxu0 0.0
    %885 = vmatpush1.msra.mxu0 0.0
    %886 = vmatprep.mubr.f32.mxu0 0.0
    %887 = vmatmul.mubr.f32.gmra.mrb[0].mxu0 %v817
    %v888 = vpop.f32.mrb[0].mxu0
    %v889 = vadd.f32 %v808, %v888
    %v890 = vpop.f32.mrb[0].mxu0
    %891 = vmatprep.mubr.f32.mxu0 0.0
    %892 = vmatmul.mubr.f32.gmra.mrb[0].mxu0 %v820
    %v893 = vpop.f32.mrb[0].mxu0
    %v894 = vadd.f32 %v813, %v893
    %v895 = vpop.f32.mrb[0].mxu0
    %896 = vdwg.mxu0
    %v897 = vld [vmem:[%s25] sm:$0xff]
    %v898 = vld [vmem:[%s27] sm:$0x1]
    %v900 = vlaneseq
    %v901 = vshrl.u32 %v900, 7
    %v902 = vsub.s32 0, %v901
    %v903 = vrot.slane %v898, %v902
    %v906 = vsel %vm256, %v889, 0
    %v909 = vsel %vm256, %v894, 0
    %911 = vmatprep.subr.mxu0 0.0
    %912 = vmatpush1.msra.mxu0 %v897
    %913 = vmatprep.subr.mxu0 0.0
    %914 = vmatpush1.msra.mxu0 0.0
    %915 = vmatprep.subr.mxu0 0.0
    %916 = vmatpush1.msra.mxu0 0.0
    %917 = vmatprep.subr.mxu0 0.0
    %918 = vmatpush1.msra.mxu0 0.0
    %919 = vmatprep.subr.mxu0 0.0
    %920 = vmatpush1.msra.mxu0 0.0
    %921 = vmatprep.subr.mxu0 0.0
    %922 = vmatpush1.msra.mxu0 0.0
    %923 = vmatprep.subr.mxu0 0.0
    %924 = vmatpush1.msra.mxu0 0.0
    %925 = vmatprep.subr.mxu0 0.0
    %926 = vmatpush1.msra.mxu0 0.0
    %927 = vmatprep.subr.mxu0 0.0
    %928 = vmatpush1.msra.mxu0 0.0
    %929 = vmatprep.subr.mxu0 0.0
    %930 = vmatpush1.msra.mxu0 0.0
    %931 = vmatprep.subr.mxu0 0.0
    %932 = vmatpush1.msra.mxu0 0.0
    %933 = vmatprep.subr.mxu0 0.0
    %934 = vmatpush1.msra.mxu0 0.0
    %935 = vmatprep.subr.mxu0 0.0
    %936 = vmatpush1.msra.mxu0 0.0
    %937 = vmatprep.subr.mxu0 0.0
    %938 = vmatpush1.msra.mxu0 0.0
    %939 = vmatprep.subr.mxu0 0.0
    %940 = vmatpush1.msra.mxu0 0.0
    %941 = vmatprep.subr.mxu0 0.0
    %942 = vmatpush1.msra.mxu0 0.0
    %943 = vmatprep.subr.mxu0 0.0
    %944 = vmatpush1.msra.mxu0 0.0
    %945 = vmatprep.subr.mxu0 0.0
    %946 = vmatpush1.msra.mxu0 0.0
    %947 = vmatprep.subr.mxu0 0.0
    %948 = vmatpush1.msra.mxu0 0.0
    %949 = vmatprep.subr.mxu0 0.0
    %950 = vmatpush1.msra.mxu0 0.0
    %951 = vmatprep.subr.mxu0 0.0
    %952 = vmatpush1.msra.mxu0 0.0
    %953 = vmatprep.subr.mxu0 0.0
    %954 = vmatpush1.msra.mxu0 0.0
    %955 = vmatprep.subr.mxu0 0.0
    %956 = vmatpush1.msra.mxu0 0.0
    %957 = vmatprep.subr.mxu0 0.0
    %958 = vmatpush1.msra.mxu0 0.0
    %959 = vmatprep.subr.mxu0 0.0
    %960 = vmatpush1.msra.mxu0 0.0
    %961 = vmatprep.subr.mxu0 0.0
    %962 = vmatpush1.msra.mxu0 0.0
    %963 = vmatprep.subr.mxu0 0.0
    %964 = vmatpush1.msra.mxu0 0.0
    %965 = vmatprep.subr.mxu0 0.0
    %966 = vmatpush1.msra.mxu0 0.0
    %967 = vmatprep.subr.mxu0 0.0
    %968 = vmatpush1.msra.mxu0 0.0
    %969 = vmatprep.subr.mxu0 0.0
    %970 = vmatpush1.msra.mxu0 0.0
    %971 = vmatprep.subr.mxu0 0.0
    %972 = vmatpush1.msra.mxu0 0.0
    %973 = vmatprep.subr.mxu0 0.0
    %974 = vmatpush1.msra.mxu0 0.0
    %975 = vmatprep.mubr.f32.mxu0 0.0
    %976 = vmatmul.mubr.f32.gmra.mrb[0].mxu0 %v906
    %v977 = vpop.f32.mrb[0].mxu0
    %v978 = vadd.f32 %v903, %v977
    %v979 = vpop.f32.mrb[0].mxu0
    %980 = vmatprep.mubr.f32.mxu0 0.0
    %981 = vmatmul.mubr.f32.gmra.mrb[0].mxu0 %v909
    %v982 = vpop.f32.mrb[0].mxu0
    %v983 = vadd.f32 %v903, %v982
    %v984 = vpop.f32.mrb[0].mxu0
    %985 = vdwg.mxu0
    %v986 = vadd.f32 %v246, %v978
    %v987 = vadd.f32 %v247, %v983
    %v988 = vld [vmem:[%s29] sm:$0x1]
    %v989 = vld [vmem:[%s31] sm:$0x1]
    %v990 = vsel %vm256, %v986, 0.0
    %991 = vadd.xlane.f32.xlu0 %v990
    %v992 = vpop.xlane.xlu0 %991
    %v993 = vsel %vm256, %v987, 0.0
    %994 = vadd.xlane.f32.xlu0 %v993
    %v995 = vpop.xlane.xlu0 %994
    %v996 = vrcp.pop 8.0
    %v997 = vmul.f32 %v992, %v996
    %v998 = vmul.f32 %v995, %v996
    %v999 = vsub.f32 %v986, %v997
    %v1000 = vsub.f32 %v987, %v998
    %v1001 = vmul.f32 %v999, %v999
    %v1002 = vmul.f32 %v1000, %v1000
    %v1003 = vsel %vm256, %v1001, 0.0
    %1004 = vadd.xlane.f32.xlu0 %v1003
    %v1005 = vpop.xlane.xlu0 %1004
    %v1006 = vsel %vm256, %v1002, 0.0
    %1007 = vadd.xlane.f32.xlu0 %v1006
    %v1008 = vpop.xlane.xlu0 %1007
    %v1009 = vmul.f32 %v1005, %v996
    %v1010 = vmul.f32 %v1008, %v996
    %v1011 = vadd.f32 %v1009, 1e-05
    %v1012 = vadd.f32 %v1010, 1e-05
    %v1013 = vrsqrt.pop %v1011
    %v1014 = vrsqrt.pop %v1012
    %v1015 = vmul.f32 %v999, %v1013
    %v1016 = vmul.f32 %v1000, %v1014
    %v1018 = vlaneseq
    %v1019 = vshrl.u32 %v1018, 7
    %v1020 = vsub.s32 0, %v1019
    %v1021 = vrot.slane %v988, %v1020
    %v1023 = vmul.f32 %v1015, %v1021
    %v1024 = vmul.f32 %v1016, %v1021
    %v1026 = vlaneseq
    %v1027 = vshrl.u32 %v1026, 7
    %v1028 = vsub.s32 0, %v1027
    %v1029 = vrot.slane %v989, %v1028
    %v1031 = vadd.f32 %v1023, %v1029
    %v1032 = vadd.f32 %v1024, %v1029
    %v1033 = vld [vmem:[%s33] sm:$0xff]
    %v1034 = vld [vmem:[%s35] sm:$0x1]
    %v1036 = vlaneseq
    %v1037 = vshrl.u32 %v1036, 7
    %v1038 = vsub.s32 0, %v1037
    %v1039 = vrot.slane %v1034, %v1038
    %v1042 = vsel %vm256, %v1031, 0
    %v1045 = vsel %vm256, %v1032, 0
    %1047 = vmatprep.subr.mxu0 0.0
    %1048 = vmatpush1.msra.mxu0 %v1033
    %1049 = vmatprep.subr.mxu0 0.0
    %1050 = vmatpush1.msra.mxu0 0.0
    %1051 = vmatprep.subr.mxu0 0.0
    %1052 = vmatpush1.msra.mxu0 0.0
    %1053 = vmatprep.subr.mxu0 0.0
    %1054 = vmatpush1.msra.mxu0 0.0
    %1055 = vmatprep.subr.mxu0 0.0
    %1056 = vmatpush1.msra.mxu0 0.0
    %1057 = vmatprep.subr.mxu0 0.0
    %1058 = vmatpush1.msra.mxu0 0.0
    %1059 = vmatprep.subr.mxu0 0.0
    %1060 = vmatpush1.msra.mxu0 0.0
    %1061 = vmatprep.subr.mxu0 0.0
    %1062 = vmatpush1.msra.mxu0 0.0
    %1063 = vmatprep.subr.mxu0 0.0
    %1064 = vmatpush1.msra.mxu0 0.0
    %1065 = vmatprep.subr.mxu0 0.0
    %1066 = vmatpush1.msra.mxu0 0.0
    %1067 = vmatprep.subr.mxu0 0.0
    %1068 = vmatpush1.msra.mxu0 0.0
    %1069 = vmatprep.subr.mxu0 0.0
    %1070 = vmatpush1.msra.mxu0 0.0
    %1071 = vmatprep.subr.mxu0 0.0
    %1072 = vmatpush1.msra.mxu0 0.0
    %1073 = vmatprep.subr.mxu0 0.0
    %1074 = vmatpush1.msra.mxu0 0.0
    %1075 = vmatprep.subr.mxu0 0.0
    %1076 = vmatpush1.msra.mxu0 0.0
    %1077 = vmatprep.subr.mxu0 0.0
    %1078 = vmatpush1.msra.mxu0 0.0
    %1079 = vmatprep.subr.mxu0 0.0
    %1080 = vmatpush1.msra.mxu0 0.0
    %1081 = vmatprep.subr.mxu0 0.0
    %1082 = vmatpush1.msra.mxu0 0.0
    %1083 = vmatprep.subr.mxu0 0.0
    %1084 = vmatpush1.msra.mxu0 0.0
    %1085 = vmatprep.subr.mxu0 0.0
    %1086 = vmatpush1.msra.mxu0 0.0
    %1087 = vmatprep.subr.mxu0 0.0
    %1088 = vmatpush1.msra.mxu0 0.0
    %1089 = vmatprep.subr.mxu0 0.0
    %1090 = vmatpush1.msra.mxu0 0.0
    %1091 = vmatprep.subr.mxu0 0.0
    %1092 = vmatpush1.msra.mxu0 0.0
    %1093 = vmatprep.subr.mxu0 0.0
    %1094 = vmatpush1.msra.mxu0 0.0
    %1095 = vmatprep.subr.mxu0 0.0
    %1096 = vmatpush1.msra.mxu0 0.0
    %1097 = vmatprep.subr.mxu0 0.0
    %1098 = vmatpush1.msra.mxu0 0.0
    %1099 = vmatprep.subr.mxu0 0.0
    %1100 = vmatpush1.msra.mxu0 0.0
    %1101 = vmatprep.subr.mxu0 0.0
    %1102 = vmatpush1.msra.mxu0 0.0
    %1103 = vmatprep.subr.mxu0 0.0
    %1104 = vmatpush1.msra.mxu0 0.0
    %1105 = vmatprep.subr.mxu0 0.0
    %1106 = vmatpush1.msra.mxu0 0.0
    %1107 = vmatprep.subr.mxu0 0.0
    %1108 = vmatpush1.msra.mxu0 0.0
    %1109 = vmatprep.subr.mxu0 0.0
    %1110 = vmatpush1.msra.mxu0 0.0
    %1111 = vmatprep.mubr.f32.mxu0 0.0
    %1112 = vmatmul.mubr.f32.gmra.mrb[0].mxu0 %v1042
    %v1113 = vpop.f32.mrb[0].mxu0
    %v1114 = vadd.f32 %v1039, %v1113
    %v1115 = vpop.f32.mrb[0].mxu0
    %1116 = vmatprep.mubr.f32.mxu0 0.0
    %1117 = vmatmul.mubr.f32.gmra.mrb[0].mxu0 %v1045
    %v1118 = vpop.f32.mrb[0].mxu0
    %v1119 = vadd.f32 %v1039, %v1118
    %v1120 = vpop.f32.mrb[0].mxu0
    %1121 = vdwg.mxu0
    %v1122 = vmax.f32 %v1114, 0.0
    %v1123 = vmax.f32 %v1119, 0.0
    %v1124 = vld [vmem:[%s37] sm:$0xff]
    %v1125 = vld [vmem:[%s37 + $0x8] sm:$0xff]
    %v1126 = vld [vmem:[%s39] sm:$0x1]
    %v1128 = vlaneseq
    %v1129 = vshrl.u32 %v1128, 7
    %v1130 = vsub.s32 0, %v1129
    %v1131 = vrot.slane %v1126, %v1130
    %v1134 = vsel %vm599, %v1122, 0
    %v1137 = vsel %vm599, %v1123, 0
    %1139 = vmatprep.subr.mxu0 0.0
    %1140 = vmatpush1.msra.mxu0 %v1124
    %1141 = vmatprep.subr.mxu0 0.0
    %1142 = vmatpush1.msra.mxu0 %v1125
    %1143 = vmatprep.subr.mxu0 0.0
    %1144 = vmatpush1.msra.mxu0 0.0
    %1145 = vmatprep.subr.mxu0 0.0
    %1146 = vmatpush1.msra.mxu0 0.0
    %1147 = vmatprep.subr.mxu0 0.0
    %1148 = vmatpush1.msra.mxu0 0.0
    %1149 = vmatprep.subr.mxu0 0.0
    %1150 = vmatpush1.msra.mxu0 0.0
    %1151 = vmatprep.subr.mxu0 0.0
    %1152 = vmatpush1.msra.mxu0 0.0
    %1153 = vmatprep.subr.mxu0 0.0
    %1154 = vmatpush1.msra.mxu0 0.0
    %1155 = vmatprep.subr.mxu0 0.0
    %1156 = vmatpush1.msra.mxu0 0.0
    %1157 = vmatprep.subr.mxu0 0.0
    %1158 = vmatpush1.msra.mxu0 0.0
    %1159 = vmatprep.subr.mxu0 0.0
    %1160 = vmatpush1.msra.mxu0 0.0
    %1161 = vmatprep.subr.mxu0 0.0
    %1162 = vmatpush1.msra.mxu0 0.0
    %1163 = vmatprep.subr.mxu0 0.0
    %1164 = vmatpush1.msra.mxu0 0.0
    %1165 = vmatprep.subr.mxu0 0.0
    %1166 = vmatpush1.msra.mxu0 0.0
    %1167 = vmatprep.subr.mxu0 0.0
    %1168 = vmatpush1.msra.mxu0 0.0
    %1169 = vmatprep.subr.mxu0 0.0
    %1170 = vmatpush1.msra.mxu0 0.0
    %1171 = vmatprep.subr.mxu0 0.0
    %1172 = vmatpush1.msra.mxu0 0.0
    %1173 = vmatprep.subr.mxu0 0.0
    %1174 = vmatpush1.msra.mxu0 0.0
    %1175 = vmatprep.subr.mxu0 0.0
    %1176 = vmatpush1.msra.mxu0 0.0
    %1177 = vmatprep.subr.mxu0 0.0
    %1178 = vmatpush1.msra.mxu0 0.0
    %1179 = vmatprep.subr.mxu0 0.0
    %1180 = vmatpush1.msra.mxu0 0.0
    %1181 = vmatprep.subr.mxu0 0.0
    %1182 = vmatpush1.msra.mxu0 0.0
    %1183 = vmatprep.subr.mxu0 0.0
    %1184 = vmatpush1.msra.mxu0 0.0
    %1185 = vmatprep.subr.mxu0 0.0
    %1186 = vmatpush1.msra.mxu0 0.0
    %1187 = vmatprep.subr.mxu0 0.0
    %1188 = vmatpush1.msra.mxu0 0.0
    %1189 = vmatprep.subr.mxu0 0.0
    %1190 = vmatpush1.msra.mxu0 0.0
    %1191 = vmatprep.subr.mxu0 0.0
    %1192 = vmatpush1.msra.mxu0 0.0
    %1193 = vmatprep.subr.mxu0 0.0
    %1194 = vmatpush1.msra.mxu0 0.0
    %1195 = vmatprep.subr.mxu0 0.0
    %1196 = vmatpush1.msra.mxu0 0.0
    %1197 = vmatprep.subr.mxu0 0.0
    %1198 = vmatpush1.msra.mxu0 0.0
    %1199 = vmatprep.subr.mxu0 0.0
    %1200 = vmatpush1.msra.mxu0 0.0
    %1201 = vmatprep.subr.mxu0 0.0
    %1202 = vmatpush1.msra.mxu0 0.0
    %1203 = vmatprep.mubr.f32.mxu0 0.0
    %1204 = vmatmul.mubr.f32.gmra.mrb[0].mxu0 %v1134
    %v1205 = vpop.f32.mrb[0].mxu0
    %v1206 = vadd.f32 %v1131, %v1205
    %v1207 = vpop.f32.mrb[0].mxu0
    %1208 = vmatprep.mubr.f32.mxu0 0.0
    %1209 = vmatmul.mubr.f32.gmra.mrb[0].mxu0 %v1137
    %v1210 = vpop.f32.mrb[0].mxu0
    %v1211 = vadd.f32 %v1131, %v1210
    %v1212 = vpop.f32.mrb[0].mxu0
    %1213 = vdwg.mxu0
    %v1214 = vadd.f32 %v1031, %v1206
    %v1215 = vadd.f32 %v1032, %v1211
    %v1216 = vld [vmem:[%s41] sm:$0x1]
    %v1217 = vld [vmem:[%s43] sm:$0x1]
    %v1218 = vsel %vm256, %v1214, 0.0
    %1219 = vadd.xlane.f32.xlu0 %v1218
    %v1220 = vpop.xlane.xlu0 %1219
    %v1221 = vsel %vm256, %v1215, 0.0
    %1222 = vadd.xlane.f32.xlu0 %v1221
    %v1223 = vpop.xlane.xlu0 %1222
    %v1224 = vmul.f32 %v1220, %v996
    %v1225 = vmul.f32 %v1223, %v996
    %v1226 = vsub.f32 %v1214, %v1224
    %v1227 = vsub.f32 %v1215, %v1225
    %v1228 = vmul.f32 %v1226, %v1226
    %v1229 = vmul.f32 %v1227, %v1227
    %v1230 = vsel %vm256, %v1228, 0.0
    %1231 = vadd.xlane.f32.xlu0 %v1230
    %v1232 = vpop.xlane.xlu0 %1231
    %v1233 = vsel %vm256, %v1229, 0.0
    %1234 = vadd.xlane.f32.xlu0 %v1233
    %v1235 = vpop.xlane.xlu0 %1234
    %v1236 = vmul.f32 %v1232, %v996
    %v1237 = vmul.f32 %v1235, %v996
    %v1238 = vadd.f32 %v1236, 1e-05
    %v1239 = vadd.f32 %v1237, 1e-05
    %v1240 = vrsqrt.pop %v1238
    %v1241 = vrsqrt.pop %v1239
    %v1242 = vmul.f32 %v1226, %v1240
    %v1243 = vmul.f32 %v1227, %v1241
    %v1245 = vlaneseq
    %v1246 = vshrl.u32 %v1245, 7
    %v1247 = vsub.s32 0, %v1246
    %v1248 = vrot.slane %v1216, %v1247
    %v1250 = vmul.f32 %v1242, %v1248
    %v1251 = vmul.f32 %v1243, %v1248
    %v1253 = vlaneseq
    %v1254 = vshrl.u32 %v1253, 7
    %v1255 = vsub.s32 0, %v1254
    %v1256 = vrot.slane %v1217, %v1255
    %v1258 = vadd.f32 %v1250, %v1256
    %v1259 = vadd.f32 %v1251, %v1256
    %v1260 = vld [vmem:[%s67] sm:$0xff]
    %v1261 = vld [vmem:[%s73] sm:$0x1]
    %v1263 = vlaneseq
    %v1264 = vshrl.u32 %v1263, 7
    %v1265 = vsub.s32 0, %v1264
    %v1266 = vrot.slane %v1261, %v1265
    %v1269 = vsel %vm256, %v1258, 0
    %v1272 = vsel %vm256, %v1259, 0
    %1274 = vmatprep.subr.mxu0 0.0
    %1275 = vmatpush1.msra.mxu0 %v1260
    %1276 = vmatprep.subr.mxu0 0.0
    %1277 = vmatpush1.msra.mxu0 0.0
    %1278 = vmatprep.subr.mxu0 0.0
    %1279 = vmatpush1.msra.mxu0 0.0
    %1280 = vmatprep.subr.mxu0 0.0
    %1281 = vmatpush1.msra.mxu0 0.0
    %1282 = vmatprep.subr.mxu0 0.0
    %1283 = vmatpush1.msra.mxu0 0.0
    %1284 = vmatprep.subr.mxu0 0.0
    %1285 = vmatpush1.msra.mxu0 0.0
    %1286 = vmatprep.subr.mxu0 0.0
    %1287 = vmatpush1.msra.mxu0 0.0
    %1288 = vmatprep.subr.mxu0 0.0
    %1289 = vmatpush1.msra.mxu0 0.0
    %1290 = vmatprep.subr.mxu0 0.0
    %1291 = vmatpush1.msra.mxu0 0.0
    %1292 = vmatprep.subr.mxu0 0.0
    %1293 = vmatpush1.msra.mxu0 0.0
    %1294 = vmatprep.subr.mxu0 0.0
    %1295 = vmatpush1.msra.mxu0 0.0
    %1296 = vmatprep.subr.mxu0 0.0
    %1297 = vmatpush1.msra.mxu0 0.0
    %1298 = vmatprep.subr.mxu0 0.0
    %1299 = vmatpush1.msra.mxu0 0.0
    %1300 = vmatprep.subr.mxu0 0.0
    %1301 = vmatpush1.msra.mxu0 0.0
    %1302 = vmatprep.subr.mxu0 0.0
    %1303 = vmatpush1.msra.mxu0 0.0
    %1304 = vmatprep.subr.mxu0 0.0
    %1305 = vmatpush1.msra.mxu0 0.0
    %1306 = vmatprep.subr.mxu0 0.0
    %1307 = vmatpush1.msra.mxu0 0.0
    %1308 = vmatprep.subr.mxu0 0.0
    %1309 = vmatpush1.msra.mxu0 0.0
    %1310 = vmatprep.subr.mxu0 0.0
    %1311 = vmatpush1.msra.mxu0 0.0
    %1312 = vmatprep.subr.mxu0 0.0
    %1313 = vmatpush1.msra.mxu0 0.0
    %1314 = vmatprep.subr.mxu0 0.0
    %1315 = vmatpush1.msra.mxu0 0.0
    %1316 = vmatprep.subr.mxu0 0.0
    %1317 = vmatpush1.msra.mxu0 0.0
    %1318 = vmatprep.subr.mxu0 0.0
    %1319 = vmatpush1.msra.mxu0 0.0
    %1320 = vmatprep.subr.mxu0 0.0
    %1321 = vmatpush1.msra.mxu0 0.0
    %1322 = vmatprep.subr.mxu0 0.0
    %1323 = vmatpush1.msra.mxu0 0.0
    %1324 = vmatprep.subr.mxu0 0.0
    %1325 = vmatpush1.msra.mxu0 0.0
    %1326 = vmatprep.subr.mxu0 0.0
    %1327 = vmatpush1.msra.mxu0 0.0
    %1328 = vmatprep.subr.mxu0 0.0
    %1329 = vmatpush1.msra.mxu0 0.0
    %1330 = vmatprep.subr.mxu0 0.0
    %1331 = vmatpush1.msra.mxu0 0.0
    %1332 = vmatprep.subr.mxu0 0.0
    %1333 = vmatpush1.msra.mxu0 0.0
    %1334 = vmatprep.subr.mxu0 0.0
    %1335 = vmatpush1.msra.mxu0 0.0
    %1336 = vmatprep.subr.mxu0 0.0
    %1337 = vmatpush1.msra.mxu0 0.0
    %1338 = vmatprep.mubr.f32.mxu0 0.0
    %1339 = vmatmul.mubr.f32.gmra.mrb[0].mxu0 %v1269
    %v1340 = vpop.f32.mrb[0].mxu0
    %v1341 = vadd.f32 %v1266, %v1340
    %v1342 = vpop.f32.mrb[0].mxu0
    %1343 = vmatprep.mubr.f32.mxu0 0.0
    %1344 = vmatmul.mubr.f32.gmra.mrb[0].mxu0 %v1272
    %v1345 = vpop.f32.mrb[0].mxu0
    %v1346 = vadd.f32 %v1266, %v1345
    %v1347 = vpop.f32.mrb[0].mxu0
    %1348 = vdwg.mxu0
    %v1349 = vld [vmem:[%s69] sm:$0xff]
    %v1350 = vld [vmem:[%s75] sm:$0x1]
    %v1352 = vlaneseq
    %v1353 = vshrl.u32 %v1352, 7
    %v1354 = vsub.s32 0, %v1353
    %v1355 = vrot.slane %v1350, %v1354
    %1357 = vmatprep.subr.mxu0 0.0
    %1358 = vmatpush1.msra.mxu0 %v1349
    %1359 = vmatprep.subr.mxu0 0.0
    %1360 = vmatpush1.msra.mxu0 0.0
    %1361 = vmatprep.subr.mxu0 0.0
    %1362 = vmatpush1.msra.mxu0 0.0
    %1363 = vmatprep.subr.mxu0 0.0
    %1364 = vmatpush1.msra.mxu0 0.0
    %1365 = vmatprep.subr.mxu0 0.0
    %1366 = vmatpush1.msra.mxu0 0.0
    %1367 = vmatprep.subr.mxu0 0.0
    %1368 = vmatpush1.msra.mxu0 0.0
    %1369 = vmatprep.subr.mxu0 0.0
    %1370 = vmatpush1.msra.mxu0 0.0
    %1371 = vmatprep.subr.mxu0 0.0
    %1372 = vmatpush1.msra.mxu0 0.0
    %1373 = vmatprep.subr.mxu0 0.0
    %1374 = vmatpush1.msra.mxu0 0.0
    %1375 = vmatprep.subr.mxu0 0.0
    %1376 = vmatpush1.msra.mxu0 0.0
    %1377 = vmatprep.subr.mxu0 0.0
    %1378 = vmatpush1.msra.mxu0 0.0
    %1379 = vmatprep.subr.mxu0 0.0
    %1380 = vmatpush1.msra.mxu0 0.0
    %1381 = vmatprep.subr.mxu0 0.0
    %1382 = vmatpush1.msra.mxu0 0.0
    %1383 = vmatprep.subr.mxu0 0.0
    %1384 = vmatpush1.msra.mxu0 0.0
    %1385 = vmatprep.subr.mxu0 0.0
    %1386 = vmatpush1.msra.mxu0 0.0
    %1387 = vmatprep.subr.mxu0 0.0
    %1388 = vmatpush1.msra.mxu0 0.0
    %1389 = vmatprep.subr.mxu0 0.0
    %1390 = vmatpush1.msra.mxu0 0.0
    %1391 = vmatprep.subr.mxu0 0.0
    %1392 = vmatpush1.msra.mxu0 0.0
    %1393 = vmatprep.subr.mxu0 0.0
    %1394 = vmatpush1.msra.mxu0 0.0
    %1395 = vmatprep.subr.mxu0 0.0
    %1396 = vmatpush1.msra.mxu0 0.0
    %1397 = vmatprep.subr.mxu0 0.0
    %1398 = vmatpush1.msra.mxu0 0.0
    %1399 = vmatprep.subr.mxu0 0.0
    %1400 = vmatpush1.msra.mxu0 0.0
    %1401 = vmatprep.subr.mxu0 0.0
    %1402 = vmatpush1.msra.mxu0 0.0
    %1403 = vmatprep.subr.mxu0 0.0
    %1404 = vmatpush1.msra.mxu0 0.0
    %1405 = vmatprep.subr.mxu0 0.0
    %1406 = vmatpush1.msra.mxu0 0.0
    %1407 = vmatprep.subr.mxu0 0.0
    %1408 = vmatpush1.msra.mxu0 0.0
    %1409 = vmatprep.subr.mxu0 0.0
    %1410 = vmatpush1.msra.mxu0 0.0
    %1411 = vmatprep.subr.mxu0 0.0
    %1412 = vmatpush1.msra.mxu0 0.0
    %1413 = vmatprep.subr.mxu0 0.0
    %1414 = vmatpush1.msra.mxu0 0.0
    %1415 = vmatprep.subr.mxu0 0.0
    %1416 = vmatpush1.msra.mxu0 0.0
    %1417 = vmatprep.subr.mxu0 0.0
    %1418 = vmatpush1.msra.mxu0 0.0
    %1419 = vmatprep.subr.mxu0 0.0
    %1420 = vmatpush1.msra.mxu0 0.0
    %1421 = vmatprep.mubr.f32.mxu0 0.0
    %1422 = vmatmul.mubr.f32.gmra.mrb[0].mxu0 %v1269
    %v1423 = vpop.f32.mrb[0].mxu0
    %v1424 = vadd.f32 %v1355, %v1423
    %v1425 = vpop.f32.mrb[0].mxu0
    %1426 = vmatprep.mubr.f32.mxu0 0.0
    %1427 = vmatmul.mubr.f32.gmra.mrb[0].mxu0 %v1272
    %v1428 = vpop.f32.mrb[0].mxu0
    %v1429 = vadd.f32 %v1355, %v1428
    %v1430 = vpop.f32.mrb[0].mxu0
    %1431 = vdwg.mxu0
    %v1432 = vld [vmem:[%s9] sm:$0xff]
    %v1433 = vld [vmem:[%s9 + $0x8] sm:$0x3]
    %v1434 = vld [vmem:[%s11] sm:$0xff]
    %v1435 = vld [vmem:[%s11 + $0x8] sm:$0x3]
    %v1436 = vld [vmem:[%s45] sm:$0xff]
    %v1437 = vld [vmem:[%s47] sm:$0xff]
    %v1438 = vld [vmem:[%s49] sm:$0xff]
    %v1439 = vld [vmem:[%s51] sm:$0x1]
    %v1440 = vld [vmem:[%s53] sm:$0x1]
    %v1441 = vld [vmem:[%s55] sm:$0x1]
    %v1442 = vld [vmem:[%s57] sm:$0xff]
    %v1443 = vld [vmem:[%s59] sm:$0x1]
    %v1444 = vld [vmem:[%s61] sm:$0x1]
    %v1445 = vld [vmem:[%s63] sm:$0x1]
    %v1446 = vld [vmem:[%s65] sm:$0xff]
    %v1447 = vld [vmem:[%s71] sm:$0x1]
    %v1448 = vld [vmem:[%s77] sm:$0xff]
    %v1449 = vld [vmem:[%s79] sm:$0x1]
    %v1450 = vld [vmem:[%s81] sm:$0x1]
    %v1451 = vld [vmem:[%s83] sm:$0x1]
    %v1452 = vld [vmem:[%s85] sm:$0xff]
    %v1453 = vld [vmem:[%s87] sm:$0x1]
    %v1454 = vld [vmem:[%s89] sm:$0xff]
    %v1455 = vld [vmem:[%s89 + $0x8] sm:$0xff]
    %v1456 = vld [vmem:[#allocation3] sm:$0x1]
    %v1457 = vld [vmem:[#allocation6] sm:$0x1]
    %v1458 = vld [vmem:[#allocation8] sm:$0x1]
    %v1459 = vld [vmem:[%s5] sm:$0xff]
    %v1460 = vld [vmem:[%s5 + $0x8] sm:$0xff]
    %v1461 = vld [vmem:[%s5 + $0x10] sm:$0xff]
    %v1462 = vld [vmem:[%s5 + $0x18] sm:$0xff]
    %v1463 = vld [vmem:[%s5 + $0x20] sm:$0xff]
    %1464 = vst.msk [vmem:[#allocation2] sm:$0xff] %vm256, 0.0
    %vm1465 = vcmask 58368
    %1466 = vst.msk [vmem:[#allocation2 + $0x8] sm:$0x3] %vm1465, 0.0
    loop: start=0, step=1, limit=5
    $region206: #{auto_reg_transformer_fwd.1} parent=1 // loop_pre_header
      _
    $region207: #{auto_reg_transformer_fwd.1} parent=1 // loop_header
      %s1468 = sphi 0, %s1472
      %p1469 = scmp.ge.s32.totalorder %s1468, 5
    $region208: #{auto_reg_transformer_fwd.1} parent=1 // loop_header_branch
      %1471 = sbr.rel (%p1469) target = $region212
    $region209: #{auto_reg_transformer_fwd.1} parent=1 // loop_body
      %v1473 = vld [vmem:[#allocation2] sm:$0xff]
      %v1474 = vld [vmem:[#allocation2 + $0x8] sm:$0x3]
      %v1476 = vlaneseq
      %v1477 = vshrl.u32 %v1476, 7
      %v1478 = vsub.s32 0, %v1477
      %v1479 = vrot.slane %v1439, %v1478
      %v1482 = vsel %vm256, %v1473, 0
      %v1485 = vsel %vm256, %v1474, 0
      %1487 = vmatprep.subr.mxu0 0.0
      %1488 = vmatpush1.msra.mxu0 %v1436
      %1489 = vmatprep.subr.mxu0 0.0
      %1490 = vmatpush1.msra.mxu0 0.0
      %1491 = vmatprep.subr.mxu0 0.0
      %1492 = vmatpush1.msra.mxu0 0.0
      %1493 = vmatprep.subr.mxu0 0.0
      %1494 = vmatpush1.msra.mxu0 0.0
      %1495 = vmatprep.subr.mxu0 0.0
      %1496 = vmatpush1.msra.mxu0 0.0
      %1497 = vmatprep.subr.mxu0 0.0
      %1498 = vmatpush1.msra.mxu0 0.0
      %1499 = vmatprep.subr.mxu0 0.0
      %1500 = vmatpush1.msra.mxu0 0.0
      %1501 = vmatprep.subr.mxu0 0.0
      %1502 = vmatpush1.msra.mxu0 0.0
      %1503 = vmatprep.subr.mxu0 0.0
      %1504 = vmatpush1.msra.mxu0 0.0
      %1505 = vmatprep.subr.mxu0 0.0
      %1506 = vmatpush1.msra.mxu0 0.0
      %1507 = vmatprep.subr.mxu0 0.0
      %1508 = vmatpush1.msra.mxu0 0.0
      %1509 = vmatprep.subr.mxu0 0.0
      %1510 = vmatpush1.msra.mxu0 0.0
      %1511 = vmatprep.subr.mxu0 0.0
      %1512 = vmatpush1.msra.mxu0 0.0
      %1513 = vmatprep.subr.mxu0 0.0
      %1514 = vmatpush1.msra.mxu0 0.0
      %1515 = vmatprep.subr.mxu0 0.0
      %1516 = vmatpush1.msra.mxu0 0.0
      %1517 = vmatprep.subr.mxu0 0.0
      %1518 = vmatpush1.msra.mxu0 0.0
      %1519 = vmatprep.subr.mxu0 0.0
      %1520 = vmatpush1.msra.mxu0 0.0
      %1521 = vmatprep.subr.mxu0 0.0
      %1522 = vmatpush1.msra.mxu0 0.0
      %1523 = vmatprep.subr.mxu0 0.0
      %1524 = vmatpush1.msra.mxu0 0.0
      %1525 = vmatprep.subr.mxu0 0.0
      %1526 = vmatpush1.msra.mxu0 0.0
      %1527 = vmatprep.subr.mxu0 0.0
      %1528 = vmatpush1.msra.mxu0 0.0
      %1529 = vmatprep.subr.mxu0 0.0
      %1530 = vmatpush1.msra.mxu0 0.0
      %1531 = vmatprep.subr.mxu0 0.0
      %1532 = vmatpush1.msra.mxu0 0.0
      %1533 = vmatprep.subr.mxu0 0.0
      %1534 = vmatpush1.msra.mxu0 0.0
      %1535 = vmatprep.subr.mxu0 0.0
      %1536 = vmatpush1.msra.mxu0 0.0
      %1537 = vmatprep.subr.mxu0 0.0
      %1538 = vmatpush1.msra.mxu0 0.0
      %1539 = vmatprep.subr.mxu0 0.0
      %1540 = vmatpush1.msra.mxu0 0.0
      %1541 = vmatprep.subr.mxu0 0.0
      %1542 = vmatpush1.msra.mxu0 0.0
      %1543 = vmatprep.subr.mxu0 0.0
      %1544 = vmatpush1.msra.mxu0 0.0
      %1545 = vmatprep.subr.mxu0 0.0
      %1546 = vmatpush1.msra.mxu0 0.0
      %1547 = vmatprep.subr.mxu0 0.0
      %1548 = vmatpush1.msra.mxu0 0.0
      %1549 = vmatprep.subr.mxu0 0.0
      %1550 = vmatpush1.msra.mxu0 0.0
      %1551 = vmatprep.mubr.f32.mxu0 0.0
      %1552 = vmatmul.mubr.f32.gmra.mrb[0].mxu0 %v1482
      %v1553 = vpop.f32.mrb[0].mxu0
      %v1554 = vadd.f32 %v1479, %v1553
      %v1555 = vpop.f32.mrb[0].mxu0
      %1556 = vmatprep.mubr.f32.mxu0 0.0
      %1557 = vmatmul.mubr.f32.gmra.mrb[0].mxu0 %v1485
      %v1558 = vpop.f32.mrb[0].mxu0
      %v1559 = vadd.f32 %v1479, %v1558
      %v1560 = vpop.f32.mrb[0].mxu0
      %1561 = vdwg.mxu0
      %v1563 = vlaneseq
      %v1564 = vshrl.u32 %v1563, 7
      %v1565 = vsub.s32 0, %v1564
      %v1566 = vrot.slane %v1440, %v1565
      %1568 = vmatprep.subr.mxu0 0.0
      %1569 = vmatpush1.msra.mxu0 %v1437
      %1570 = vmatprep.subr.mxu0 0.0
      %1571 = vmatpush1.msra.mxu0 0.0
      %1572 = vmatprep.subr.mxu0 0.0
      %1573 = vmatpush1.msra.mxu0 0.0
      %1574 = vmatprep.subr.mxu0 0.0
      %1575 = vmatpush1.msra.mxu0 0.0
      %1576 = vmatprep.subr.mxu0 0.0
      %1577 = vmatpush1.msra.mxu0 0.0
      %1578 = vmatprep.subr.mxu0 0.0
      %1579 = vmatpush1.msra.mxu0 0.0
      %1580 = vmatprep.subr.mxu0 0.0
      %1581 = vmatpush1.msra.mxu0 0.0
      %1582 = vmatprep.subr.mxu0 0.0
      %1583 = vmatpush1.msra.mxu0 0.0
      %1584 = vmatprep.subr.mxu0 0.0
      %1585 = vmatpush1.msra.mxu0 0.0
      %1586 = vmatprep.subr.mxu0 0.0
      %1587 = vmatpush1.msra.mxu0 0.0
      %1588 = vmatprep.subr.mxu0 0.0
      %1589 = vmatpush1.msra.mxu0 0.0
      %1590 = vmatprep.subr.mxu0 0.0
      %1591 = vmatpush1.msra.mxu0 0.0
      %1592 = vmatprep.subr.mxu0 0.0
      %1593 = vmatpush1.msra.mxu0 0.0
      %1594 = vmatprep.subr.mxu0 0.0
      %1595 = vmatpush1.msra.mxu0 0.0
      %1596 = vmatprep.subr.mxu0 0.0
      %1597 = vmatpush1.msra.mxu0 0.0
      %1598 = vmatprep.subr.mxu0 0.0
      %1599 = vmatpush1.msra.mxu0 0.0
      %1600 = vmatprep.subr.mxu0 0.0
      %1601 = vmatpush1.msra.mxu0 0.0
      %1602 = vmatprep.subr.mxu0 0.0
      %1603 = vmatpush1.msra.mxu0 0.0
      %1604 = vmatprep.subr.mxu0 0.0
      %1605 = vmatpush1.msra.mxu0 0.0
      %1606 = vmatprep.subr.mxu0 0.0
      %1607 = vmatpush1.msra.mxu0 0.0
      %1608 = vmatprep.subr.mxu0 0.0
      %1609 = vmatpush1.msra.mxu0 0.0
      %1610 = vmatprep.subr.mxu0 0.0
      %1611 = vmatpush1.msra.mxu0 0.0
      %1612 = vmatprep.subr.mxu0 0.0
      %1613 = vmatpush1.msra.mxu0 0.0
      %1614 = vmatprep.subr.mxu0 0.0
      %1615 = vmatpush1.msra.mxu0 0.0
      %1616 = vmatprep.subr.mxu0 0.0
      %1617 = vmatpush1.msra.mxu0 0.0
      %1618 = vmatprep.subr.mxu0 0.0
      %1619 = vmatpush1.msra.mxu0 0.0
      %1620 = vmatprep.subr.mxu0 0.0
      %1621 = vmatpush1.msra.mxu0 0.0
      %1622 = vmatprep.subr.mxu0 0.0
      %1623 = vmatpush1.msra.mxu0 0.0
      %1624 = vmatprep.subr.mxu0 0.0
      %1625 = vmatpush1.msra.mxu0 0.0
      %1626 = vmatprep.subr.mxu0 0.0
      %1627 = vmatpush1.msra.mxu0 0.0
      %1628 = vmatprep.subr.mxu0 0.0
      %1629 = vmatpush1.msra.mxu0 0.0
      %1630 = vmatprep.subr.mxu0 0.0
      %1631 = vmatpush1.msra.mxu0 0.0
      %1632 = vmatprep.mubr.f32.mxu0 0.0
      %1633 = vmatmul.mubr.f32.gmra.mrb[0].mxu0 %v1482
      %v1634 = vpop.f32.mrb[0].mxu0
      %v1635 = vadd.f32 %v1566, %v1634
      %v1636 = vpop.f32.mrb[0].mxu0
      %1637 = vmatprep.mubr.f32.mxu0 0.0
      %1638 = vmatmul.mubr.f32.gmra.mrb[0].mxu0 %v1485
      %v1639 = vpop.f32.mrb[0].mxu0
      %v1640 = vadd.f32 %v1566, %v1639
      %v1641 = vpop.f32.mrb[0].mxu0
      %1642 = vdwg.mxu0
      %v1644 = vlaneseq
      %v1645 = vshrl.u32 %v1644, 7
      %v1646 = vsub.s32 0, %v1645
      %v1647 = vrot.slane %v1441, %v1646
      %1649 = vmatprep.subr.mxu0 0.0
      %1650 = vmatpush1.msra.mxu0 %v1438
      %1651 = vmatprep.subr.mxu0 0.0
      %1652 = vmatpush1.msra.mxu0 0.0
      %1653 = vmatprep.subr.mxu0 0.0
      %1654 = vmatpush1.msra.mxu0 0.0
      %1655 = vmatprep.subr.mxu0 0.0
      %1656 = vmatpush1.msra.mxu0 0.0
      %1657 = vmatprep.subr.mxu0 0.0
      %1658 = vmatpush1.msra.mxu0 0.0
      %1659 = vmatprep.subr.mxu0 0.0
      %1660 = vmatpush1.msra.mxu0 0.0
      %1661 = vmatprep.subr.mxu0 0.0
      %1662 = vmatpush1.msra.mxu0 0.0
      %1663 = vmatprep.subr.mxu0 0.0
      %1664 = vmatpush1.msra.mxu0 0.0
      %1665 = vmatprep.subr.mxu0 0.0
      %1666 = vmatpush1.msra.mxu0 0.0
      %1667 = vmatprep.subr.mxu0 0.0
      %1668 = vmatpush1.msra.mxu0 0.0
      %1669 = vmatprep.subr.mxu0 0.0
      %1670 = vmatpush1.msra.mxu0 0.0
      %1671 = vmatprep.subr.mxu0 0.0
      %1672 = vmatpush1.msra.mxu0 0.0
      %1673 = vmatprep.subr.mxu0 0.0
      %1674 = vmatpush1.msra.mxu0 0.0
      %1675 = vmatprep.subr.mxu0 0.0
      %1676 = vmatpush1.msra.mxu0 0.0
      %1677 = vmatprep.subr.mxu0 0.0
      %1678 = vmatpush1.msra.mxu0 0.0
      %1679 = vmatprep.subr.mxu0 0.0
      %1680 = vmatpush1.msra.mxu0 0.0
      %1681 = vmatprep.subr.mxu0 0.0
      %1682 = vmatpush1.msra.mxu0 0.0
      %1683 = vmatprep.subr.mxu0 0.0
      %1684 = vmatpush1.msra.mxu0 0.0
      %1685 = vmatprep.subr.mxu0 0.0
      %1686 = vmatpush1.msra.mxu0 0.0
      %1687 = vmatprep.subr.mxu0 0.0
      %1688 = vmatpush1.msra.mxu0 0.0
      %1689 = vmatprep.subr.mxu0 0.0
      %1690 = vmatpush1.msra.mxu0 0.0
      %1691 = vmatprep.subr.mxu0 0.0
      %1692 = vmatpush1.msra.mxu0 0.0
      %1693 = vmatprep.subr.mxu0 0.0
      %1694 = vmatpush1.msra.mxu0 0.0
      %1695 = vmatprep.subr.mxu0 0.0
      %1696 = vmatpush1.msra.mxu0 0.0
      %1697 = vmatprep.subr.mxu0 0.0
      %1698 = vmatpush1.msra.mxu0 0.0
      %1699 = vmatprep.subr.mxu0 0.0
      %1700 = vmatpush1.msra.mxu0 0.0
      %1701 = vmatprep.subr.mxu0 0.0
      %1702 = vmatpush1.msra.mxu0 0.0
      %1703 = vmatprep.subr.mxu0 0.0
      %1704 = vmatpush1.msra.mxu0 0.0
      %1705 = vmatprep.subr.mxu0 0.0
      %1706 = vmatpush1.msra.mxu0 0.0
      %1707 = vmatprep.subr.mxu0 0.0
      %1708 = vmatpush1.msra.mxu0 0.0
      %1709 = vmatprep.subr.mxu0 0.0
      %1710 = vmatpush1.msra.mxu0 0.0
      %1711 = vmatprep.subr.mxu0 0.0
      %1712 = vmatpush1.msra.mxu0 0.0
      %1713 = vmatprep.mubr.f32.mxu0 0.0
      %1714 = vmatmul.mubr.f32.gmra.mrb[0].mxu0 %v1482
      %v1715 = vpop.f32.mrb[0].mxu0
      %v1716 = vadd.f32 %v1647, %v1715
      %v1717 = vpop.f32.mrb[0].mxu0
      %1718 = vmatprep.mubr.f32.mxu0 0.0
      %1719 = vmatmul.mubr.f32.gmra.mrb[0].mxu0 %v1485
      %v1720 = vpop.f32.mrb[0].mxu0
      %v1721 = vadd.f32 %v1647, %v1720
      %v1722 = vpop.f32.mrb[0].mxu0
      %1723 = vdwg.mxu0
      %v1724 = vmul.f32 %v1554, %v240
      %v1725 = vmul.f32 %v1559, %v240
      %v1727 = vsel %vm256, %v1724, 0
      %v1730 = vsel %vm256, %v1725, 0
      %v1733 = vsel %vm256, %v1635, 0
      %v1736 = vsel %vm256, %v1640, 0
      %1738 = vmatprep.subr.mxu0 0.0
      %1739 = vmatpush1.xpose.msra.mxu0 %v1733
      %1740 = vmatprep.subr.mxu0 0.0
      %1741 = vmatpush1.xpose.msra.mxu0 %v1736
      %1742 = vmatprep.subr.mxu0 0.0
      %1743 = vmatpush1.xpose.msra.mxu0 0.0
      %1744 = vmatprep.subr.mxu0 0.0
      %1745 = vmatpush1.xpose.msra.mxu0 0.0
      %1746 = vmatprep.subr.mxu0 0.0
      %1747 = vmatpush1.xpose.msra.mxu0 0.0
      %1748 = vmatprep.subr.mxu0 0.0
      %1749 = vmatpush1.xpose.msra.mxu0 0.0
      %1750 = vmatprep.subr.mxu0 0.0
      %1751 = vmatpush1.xpose.msra.mxu0 0.0
      %1752 = vmatprep.subr.mxu0 0.0
      %1753 = vmatpush1.xpose.msra.mxu0 0.0
      %1754 = vmatprep.subr.mxu0 0.0
      %1755 = vmatpush1.xpose.msra.mxu0 0.0
      %1756 = vmatprep.subr.mxu0 0.0
      %1757 = vmatpush1.xpose.msra.mxu0 0.0
      %1758 = vmatprep.subr.mxu0 0.0
      %1759 = vmatpush1.xpose.msra.mxu0 0.0
      %1760 = vmatprep.subr.mxu0 0.0
      %1761 = vmatpush1.xpose.msra.mxu0 0.0
      %1762 = vmatprep.subr.mxu0 0.0
      %1763 = vmatpush1.xpose.msra.mxu0 0.0
      %1764 = vmatprep.subr.mxu0 0.0
      %1765 = vmatpush1.xpose.msra.mxu0 0.0
      %1766 = vmatprep.subr.mxu0 0.0
      %1767 = vmatpush1.xpose.msra.mxu0 0.0
      %1768 = vmatprep.subr.mxu0 0.0
      %1769 = vmatpush1.xpose.msra.mxu0 0.0
      %1770 = vmatprep.subr.mxu0 0.0
      %1771 = vmatpush1.xpose.msra.mxu0 0.0
      %1772 = vmatprep.subr.mxu0 0.0
      %1773 = vmatpush1.xpose.msra.mxu0 0.0
      %1774 = vmatprep.subr.mxu0 0.0
      %1775 = vmatpush1.xpose.msra.mxu0 0.0
      %1776 = vmatprep.subr.mxu0 0.0
      %1777 = vmatpush1.xpose.msra.mxu0 0.0
      %1778 = vmatprep.subr.mxu0 0.0
      %1779 = vmatpush1.xpose.msra.mxu0 0.0
      %1780 = vmatprep.subr.mxu0 0.0
      %1781 = vmatpush1.xpose.msra.mxu0 0.0
      %1782 = vmatprep.subr.mxu0 0.0
      %1783 = vmatpush1.xpose.msra.mxu0 0.0
      %1784 = vmatprep.subr.mxu0 0.0
      %1785 = vmatpush1.xpose.msra.mxu0 0.0
      %1786 = vmatprep.subr.mxu0 0.0
      %1787 = vmatpush1.xpose.msra.mxu0 0.0
      %1788 = vmatprep.subr.mxu0 0.0
      %1789 = vmatpush1.xpose.msra.mxu0 0.0
      %1790 = vmatprep.subr.mxu0 0.0
      %1791 = vmatpush1.xpose.msra.mxu0 0.0
      %1792 = vmatprep.subr.mxu0 0.0
      %1793 = vmatpush1.xpose.msra.mxu0 0.0
      %1794 = vmatprep.subr.mxu0 0.0
      %1795 = vmatpush1.xpose.msra.mxu0 0.0
      %1796 = vmatprep.subr.mxu0 0.0
      %1797 = vmatpush1.xpose.msra.mxu0 0.0
      %1798 = vmatprep.subr.mxu0 0.0
      %1799 = vmatpush1.xpose.msra.mxu0 0.0
      %1800 = vmatprep.subr.mxu0 0.0
      %1801 = vmatpush1.xpose.msra.mxu0 0.0
      %1802 = vmatprep.mubr.f32.mxu0 0.0
      %1803 = vmatmul.mubr.f32.gmra.mrb[0].mxu0 %v1727
      %v1804 = vpop.f32.mrb[0].mxu0
      %v1805 = vadd.f32 0.0, %v1804
      %v1806 = vpop.f32.mrb[0].mxu0
      %1807 = vmatprep.mubr.f32.mxu0 0.0
      %1808 = vmatmul.mubr.f32.gmra.mrb[0].mxu0 %v1730
      %v1809 = vpop.f32.mrb[0].mxu0
      %v1810 = vadd.f32 0.0, %v1809
      %v1811 = vpop.f32.mrb[0].mxu0
      %1812 = vdwg.mxu0
      %v1813 = vmul.f32 %v1805, 0.5
      %v1814 = vmul.f32 %v1810, 0.5
      %v1815 = vadd.f32 %v1813, %v1432
      %v1816 = vadd.f32 %v1814, %v1433
      %vm1817 = vcmask 80896
      %v1818 = vsel %vm1817, %v1815, -inf
      %1819 = vmax.xlane.f32.xlu0 %v1818
      %v1820 = vpop.xlane.xlu0 %1819
      %vm1821 = vcmask 74752
      %v1822 = vsel %vm1821, %v1816, -inf
      %1823 = vmax.xlane.f32.xlu0 %v1822
      %v1824 = vpop.xlane.xlu0 %1823
      %v1825 = vsub.f32 %v1815, %v1820
      %v1826 = vsub.f32 %v1816, %v1824
      %v1827 = vmul.f32 %v1825, 1.442695
      %v1828 = vpow.pop %v1827
      %v1829 = vmul.f32 %v1826, 1.442695
      %v1830 = vpow.pop %v1829
      %v1831 = vsel %vm1817, %v1828, 0.0
      %1832 = vadd.xlane.f32.xlu0 %v1831
      %v1833 = vpop.xlane.xlu0 %1832
      %v1834 = vsel %vm1821, %v1830, 0.0
      %1835 = vadd.xlane.f32.xlu0 %v1834
      %v1836 = vpop.xlane.xlu0 %1835
      %v1837 = vrcp.pop %v1833
      %v1838 = vrcp.pop %v1836
      %v1839 = vmul.f32 %v1828, %v1837
      %v1840 = vmul.f32 %v1830, %v1838
      %v1841 = vmul.f32 %v1716, %v240
      %v1842 = vmul.f32 %v1721, %v240
      %v1843 = vmul.f32 %v1554, %v245
      %v1844 = vmul.f32 %v1559, %v245
      %v1846 = vsel %vm256, %v1843, 0
      %v1849 = vsel %vm256, %v1844, 0
      %1851 = vmatprep.subr.mxu0 0.0
      %1852 = vmatpush1.xpose.msra.mxu0 %v1733
      %1853 = vmatprep.subr.mxu0 0.0
      %1854 = vmatpush1.xpose.msra.mxu0 %v1736
      %1855 = vmatprep.subr.mxu0 0.0
      %1856 = vmatpush1.xpose.msra.mxu0 0.0
      %1857 = vmatprep.subr.mxu0 0.0
      %1858 = vmatpush1.xpose.msra.mxu0 0.0
      %1859 = vmatprep.subr.mxu0 0.0
      %1860 = vmatpush1.xpose.msra.mxu0 0.0
      %1861 = vmatprep.subr.mxu0 0.0
      %1862 = vmatpush1.xpose.msra.mxu0 0.0
      %1863 = vmatprep.subr.mxu0 0.0
      %1864 = vmatpush1.xpose.msra.mxu0 0.0
      %1865 = vmatprep.subr.mxu0 0.0
      %1866 = vmatpush1.xpose.msra.mxu0 0.0
      %1867 = vmatprep.subr.mxu0 0.0
      %1868 = vmatpush1.xpose.msra.mxu0 0.0
      %1869 = vmatprep.subr.mxu0 0.0
      %1870 = vmatpush1.xpose.msra.mxu0 0.0
      %1871 = vmatprep.subr.mxu0 0.0
      %1872 = vmatpush1.xpose.msra.mxu0 0.0
      %1873 = vmatprep.subr.mxu0 0.0
      %1874 = vmatpush1.xpose.msra.mxu0 0.0
      %1875 = vmatprep.subr.mxu0 0.0
      %1876 = vmatpush1.xpose.msra.mxu0 0.0
      %1877 = vmatprep.subr.mxu0 0.0
      %1878 = vmatpush1.xpose.msra.mxu0 0.0
      %1879 = vmatprep.subr.mxu0 0.0
      %1880 = vmatpush1.xpose.msra.mxu0 0.0
      %1881 = vmatprep.subr.mxu0 0.0
      %1882 = vmatpush1.xpose.msra.mxu0 0.0
      %1883 = vmatprep.subr.mxu0 0.0
      %1884 = vmatpush1.xpose.msra.mxu0 0.0
      %1885 = vmatprep.subr.mxu0 0.0
      %1886 = vmatpush1.xpose.msra.mxu0 0.0
      %1887 = vmatprep.subr.mxu0 0.0
      %1888 = vmatpush1.xpose.msra.mxu0 0.0
      %1889 = vmatprep.subr.mxu0 0.0
      %1890 = vmatpush1.xpose.msra.mxu0 0.0
      %1891 = vmatprep.subr.mxu0 0.0
      %1892 = vmatpush1.xpose.msra.mxu0 0.0
      %1893 = vmatprep.subr.mxu0 0.0
      %1894 = vmatpush1.xpose.msra.mxu0 0.0
      %1895 = vmatprep.subr.mxu0 0.0
      %1896 = vmatpush1.xpose.msra.mxu0 0.0
      %1897 = vmatprep.subr.mxu0 0.0
      %1898 = vmatpush1.xpose.msra.mxu0 0.0
      %1899 = vmatprep.subr.mxu0 0.0
      %1900 = vmatpush1.xpose.msra.mxu0 0.0
      %1901 = vmatprep.subr.mxu0 0.0
      %1902 = vmatpush1.xpose.msra.mxu0 0.0
      %1903 = vmatprep.subr.mxu0 0.0
      %1904 = vmatpush1.xpose.msra.mxu0 0.0
      %1905 = vmatprep.subr.mxu0 0.0
      %1906 = vmatpush1.xpose.msra.mxu0 0.0
      %1907 = vmatprep.subr.mxu0 0.0
      %1908 = vmatpush1.xpose.msra.mxu0 0.0
      %1909 = vmatprep.subr.mxu0 0.0
      %1910 = vmatpush1.xpose.msra.mxu0 0.0
      %1911 = vmatprep.subr.mxu0 0.0
      %1912 = vmatpush1.xpose.msra.mxu0 0.0
      %1913 = vmatprep.subr.mxu0 0.0
      %1914 = vmatpush1.xpose.msra.mxu0 0.0
      %1915 = vmatprep.mubr.f32.mxu0 0.0
      %1916 = vmatmul.mubr.f32.gmra.mrb[0].mxu0 %v1846
      %v1917 = vpop.f32.mrb[0].mxu0
      %v1918 = vadd.f32 0.0, %v1917
      %v1919 = vpop.f32.mrb[0].mxu0
      %1920 = vmatprep.mubr.f32.mxu0 0.0
      %1921 = vmatmul.mubr.f32.gmra.mrb[0].mxu0 %v1849
      %v1922 = vpop.f32.mrb[0].mxu0
      %v1923 = vadd.f32 0.0, %v1922
      %v1924 = vpop.f32.mrb[0].mxu0
      %1925 = vdwg.mxu0
      %v1926 = vmul.f32 %v1918, 0.5
      %v1927 = vmul.f32 %v1923, 0.5
      %v1928 = vadd.f32 %v1926, %v1432
      %v1929 = vadd.f32 %v1927, %v1433
      %v1930 = vsel %vm1817, %v1928, -inf
      %1931 = vmax.xlane.f32.xlu0 %v1930
      %v1932 = vpop.xlane.xlu0 %1931
      %v1933 = vsel %vm1821, %v1929, -inf
      %1934 = vmax.xlane.f32.xlu0 %v1933
      %v1935 = vpop.xlane.xlu0 %1934
      %v1936 = vsub.f32 %v1928, %v1932
      %v1937 = vsub.f32 %v1929, %v1935
      %v1938 = vmul.f32 %v1936, 1.442695
      %v1939 = vpow.pop %v1938
      %v1940 = vmul.f32 %v1937, 1.442695
      %v1941 = vpow.pop %v1940
      %v1942 = vsel %vm1817, %v1939, 0.0
      %1943 = vadd.xlane.f32.xlu0 %v1942
      %v1944 = vpop.xlane.xlu0 %1943
      %v1945 = vsel %vm1821, %v1941, 0.0
      %1946 = vadd.xlane.f32.xlu0 %v1945
      %v1947 = vpop.xlane.xlu0 %1946
      %v1948 = vrcp.pop %v1944
      %v1949 = vrcp.pop %v1947
      %v1950 = vmul.f32 %v1939, %v1948
      %v1951 = vmul.f32 %v1941, %v1949
      %v1952 = vmul.f32 %v1716, %v245
      %v1953 = vmul.f32 %v1721, %v245
      %v1955 = vsel %vm1817, %v1950, 0
      %v1958 = vsel %vm1817, %v1951, 0
      %vm1960 = vcmask 1041408
      %v1962 = vsel %vm1960, %v1953, 0
      %1964 = vmatprep.subr.mxu0 0.0
      %1965 = vmatpush1.msra.mxu0 %v1952
      %1966 = vmatprep.subr.mxu0 0.0
      %1967 = vmatpush1.msra.mxu0 %v1962
      %1968 = vmatprep.subr.mxu0 0.0
      %1969 = vmatpush1.msra.mxu0 0.0
      %1970 = vmatprep.subr.mxu0 0.0
      %1971 = vmatpush1.msra.mxu0 0.0
      %1972 = vmatprep.subr.mxu0 0.0
      %1973 = vmatpush1.msra.mxu0 0.0
      %1974 = vmatprep.subr.mxu0 0.0
      %1975 = vmatpush1.msra.mxu0 0.0
      %1976 = vmatprep.subr.mxu0 0.0
      %1977 = vmatpush1.msra.mxu0 0.0
      %1978 = vmatprep.subr.mxu0 0.0
      %1979 = vmatpush1.msra.mxu0 0.0
      %1980 = vmatprep.subr.mxu0 0.0
      %1981 = vmatpush1.msra.mxu0 0.0
      %1982 = vmatprep.subr.mxu0 0.0
      %1983 = vmatpush1.msra.mxu0 0.0
      %1984 = vmatprep.subr.mxu0 0.0
      %1985 = vmatpush1.msra.mxu0 0.0
      %1986 = vmatprep.subr.mxu0 0.0
      %1987 = vmatpush1.msra.mxu0 0.0
      %1988 = vmatprep.subr.mxu0 0.0
      %1989 = vmatpush1.msra.mxu0 0.0
      %1990 = vmatprep.subr.mxu0 0.0
      %1991 = vmatpush1.msra.mxu0 0.0
      %1992 = vmatprep.subr.mxu0 0.0
      %1993 = vmatpush1.msra.mxu0 0.0
      %1994 = vmatprep.subr.mxu0 0.0
      %1995 = vmatpush1.msra.mxu0 0.0
      %1996 = vmatprep.subr.mxu0 0.0
      %1997 = vmatpush1.msra.mxu0 0.0
      %1998 = vmatprep.subr.mxu0 0.0
      %1999 = vmatpush1.msra.mxu0 0.0
      %2000 = vmatprep.subr.mxu0 0.0
      %2001 = vmatpush1.msra.mxu0 0.0
      %2002 = vmatprep.subr.mxu0 0.0
      %2003 = vmatpush1.msra.mxu0 0.0
      %2004 = vmatprep.subr.mxu0 0.0
      %2005 = vmatpush1.msra.mxu0 0.0
      %2006 = vmatprep.subr.mxu0 0.0
      %2007 = vmatpush1.msra.mxu0 0.0
      %2008 = vmatprep.subr.mxu0 0.0
      %2009 = vmatpush1.msra.mxu0 0.0
      %2010 = vmatprep.subr.mxu0 0.0
      %2011 = vmatpush1.msra.mxu0 0.0
      %2012 = vmatprep.subr.mxu0 0.0
      %2013 = vmatpush1.msra.mxu0 0.0
      %2014 = vmatprep.subr.mxu0 0.0
      %2015 = vmatpush1.msra.mxu0 0.0
      %2016 = vmatprep.subr.mxu0 0.0
      %2017 = vmatpush1.msra.mxu0 0.0
      %2018 = vmatprep.subr.mxu0 0.0
      %2019 = vmatpush1.msra.mxu0 0.0
      %2020 = vmatprep.subr.mxu0 0.0
      %2021 = vmatpush1.msra.mxu0 0.0
      %2022 = vmatprep.subr.mxu0 0.0
      %2023 = vmatpush1.msra.mxu0 0.0
      %2024 = vmatprep.subr.mxu0 0.0
      %2025 = vmatpush1.msra.mxu0 0.0
      %2026 = vmatprep.subr.mxu0 0.0
      %2027 = vmatpush1.msra.mxu0 0.0
      %2028 = vmatprep.mubr.f32.mxu0 0.0
      %2029 = vmatmul.mubr.f32.gmra.mrb[0].mxu0 %v1955
      %v2030 = vpop.f32.mrb[0].mxu0
      %v2031 = vadd.f32 0.0, %v2030
      %v2032 = vpop.f32.mrb[0].mxu0
      %2033 = vmatprep.mubr.f32.mxu0 0.0
      %2034 = vmatmul.mubr.f32.gmra.mrb[0].mxu0 %v1958
      %v2035 = vpop.f32.mrb[0].mxu0
      %v2036 = vadd.f32 0.0, %v2035
      %v2037 = vpop.f32.mrb[0].mxu0
      %2038 = vdwg.mxu0
      %v2040 = vsel %vm1817, %v1839, 0
      %v2043 = vsel %vm1817, %v1840, 0
      %v2046 = vsel %vm1960, %v1842, 0
      %2048 = vmatprep.subr.mxu0 0.0
      %2049 = vmatpush1.msra.mxu0 %v1841
      %2050 = vmatprep.subr.mxu0 0.0
      %2051 = vmatpush1.msra.mxu0 %v2046
      %2052 = vmatprep.subr.mxu0 0.0
      %2053 = vmatpush1.msra.mxu0 0.0
      %2054 = vmatprep.subr.mxu0 0.0
      %2055 = vmatpush1.msra.mxu0 0.0
      %2056 = vmatprep.subr.mxu0 0.0
      %2057 = vmatpush1.msra.mxu0 0.0
      %2058 = vmatprep.subr.mxu0 0.0
      %2059 = vmatpush1.msra.mxu0 0.0
      %2060 = vmatprep.subr.mxu0 0.0
      %2061 = vmatpush1.msra.mxu0 0.0
      %2062 = vmatprep.subr.mxu0 0.0
      %2063 = vmatpush1.msra.mxu0 0.0
      %2064 = vmatprep.subr.mxu0 0.0
      %2065 = vmatpush1.msra.mxu0 0.0
      %2066 = vmatprep.subr.mxu0 0.0
      %2067 = vmatpush1.msra.mxu0 0.0
      %2068 = vmatprep.subr.mxu0 0.0
      %2069 = vmatpush1.msra.mxu0 0.0
      %2070 = vmatprep.subr.mxu0 0.0
      %2071 = vmatpush1.msra.mxu0 0.0
      %2072 = vmatprep.subr.mxu0 0.0
      %2073 = vmatpush1.msra.mxu0 0.0
      %2074 = vmatprep.subr.mxu0 0.0
      %2075 = vmatpush1.msra.mxu0 0.0
      %2076 = vmatprep.subr.mxu0 0.0
      %2077 = vmatpush1.msra.mxu0 0.0
      %2078 = vmatprep.subr.mxu0 0.0
      %2079 = vmatpush1.msra.mxu0 0.0
      %2080 = vmatprep.subr.mxu0 0.0
      %2081 = vmatpush1.msra.mxu0 0.0
      %2082 = vmatprep.subr.mxu0 0.0
      %2083 = vmatpush1.msra.mxu0 0.0
      %2084 = vmatprep.subr.mxu0 0.0
      %2085 = vmatpush1.msra.mxu0 0.0
      %2086 = vmatprep.subr.mxu0 0.0
      %2087 = vmatpush1.msra.mxu0 0.0
      %2088 = vmatprep.subr.mxu0 0.0
      %2089 = vmatpush1.msra.mxu0 0.0
      %2090 = vmatprep.subr.mxu0 0.0
      %2091 = vmatpush1.msra.mxu0 0.0
      %2092 = vmatprep.subr.mxu0 0.0
      %2093 = vmatpush1.msra.mxu0 0.0
      %2094 = vmatprep.subr.mxu0 0.0
      %2095 = vmatpush1.msra.mxu0 0.0
      %2096 = vmatprep.subr.mxu0 0.0
      %2097 = vmatpush1.msra.mxu0 0.0
      %2098 = vmatprep.subr.mxu0 0.0
      %2099 = vmatpush1.msra.mxu0 0.0
      %2100 = vmatprep.subr.mxu0 0.0
      %2101 = vmatpush1.msra.mxu0 0.0
      %2102 = vmatprep.subr.mxu0 0.0
      %2103 = vmatpush1.msra.mxu0 0.0
      %2104 = vmatprep.subr.mxu0 0.0
      %2105 = vmatpush1.msra.mxu0 0.0
      %2106 = vmatprep.subr.mxu0 0.0
      %2107 = vmatpush1.msra.mxu0 0.0
      %2108 = vmatprep.subr.mxu0 0.0
      %2109 = vmatpush1.msra.mxu0 0.0
      %2110 = vmatprep.subr.mxu0 0.0
      %2111 = vmatpush1.msra.mxu0 0.0
      %2112 = vmatprep.mubr.f32.mxu0 0.0
      %2113 = vmatmul.mubr.f32.gmra.mrb[0].mxu0 %v2040
      %v2114 = vpop.f32.mrb[0].mxu0
      %v2115 = vadd.f32 %v2031, %v2114
      %v2116 = vpop.f32.mrb[0].mxu0
      %2117 = vmatprep.mubr.f32.mxu0 0.0
      %2118 = vmatmul.mubr.f32.gmra.mrb[0].mxu0 %v2043
      %v2119 = vpop.f32.mrb[0].mxu0
      %v2120 = vadd.f32 %v2036, %v2119
      %v2121 = vpop.f32.mrb[0].mxu0
      %2122 = vdwg.mxu0
      %v2124 = vlaneseq
      %v2125 = vshrl.u32 %v2124, 7
      %v2126 = vsub.s32 0, %v2125
      %v2127 = vrot.slane %v1443, %v2126
      %v2130 = vsel %vm256, %v2115, 0
      %v2133 = vsel %vm256, %v2120, 0
      %2135 = vmatprep.subr.mxu0 0.0
      %2136 = vmatpush1.msra.mxu0 %v1442
      %2137 = vmatprep.subr.mxu0 0.0
      %2138 = vmatpush1.msra.mxu0 0.0
      %2139 = vmatprep.subr.mxu0 0.0
      %2140 = vmatpush1.msra.mxu0 0.0
      %2141 = vmatprep.subr.mxu0 0.0
      %2142 = vmatpush1.msra.mxu0 0.0
      %2143 = vmatprep.subr.mxu0 0.0
      %2144 = vmatpush1.msra.mxu0 0.0
      %2145 = vmatprep.subr.mxu0 0.0
      %2146 = vmatpush1.msra.mxu0 0.0
      %2147 = vmatprep.subr.mxu0 0.0
      %2148 = vmatpush1.msra.mxu0 0.0
      %2149 = vmatprep.subr.mxu0 0.0
      %2150 = vmatpush1.msra.mxu0 0.0
      %2151 = vmatprep.subr.mxu0 0.0
      %2152 = vmatpush1.msra.mxu0 0.0
      %2153 = vmatprep.subr.mxu0 0.0
      %2154 = vmatpush1.msra.mxu0 0.0
      %2155 = vmatprep.subr.mxu0 0.0
      %2156 = vmatpush1.msra.mxu0 0.0
      %2157 = vmatprep.subr.mxu0 0.0
      %2158 = vmatpush1.msra.mxu0 0.0
      %2159 = vmatprep.subr.mxu0 0.0
      %2160 = vmatpush1.msra.mxu0 0.0
      %2161 = vmatprep.subr.mxu0 0.0
      %2162 = vmatpush1.msra.mxu0 0.0
      %2163 = vmatprep.subr.mxu0 0.0
      %2164 = vmatpush1.msra.mxu0 0.0
      %2165 = vmatprep.subr.mxu0 0.0
      %2166 = vmatpush1.msra.mxu0 0.0
      %2167 = vmatprep.subr.mxu0 0.0
      %2168 = vmatpush1.msra.mxu0 0.0
      %2169 = vmatprep.subr.mxu0 0.0
      %2170 = vmatpush1.msra.mxu0 0.0
      %2171 = vmatprep.subr.mxu0 0.0
      %2172 = vmatpush1.msra.mxu0 0.0
      %2173 = vmatprep.subr.mxu0 0.0
      %2174 = vmatpush1.msra.mxu0 0.0
      %2175 = vmatprep.subr.mxu0 0.0
      %2176 = vmatpush1.msra.mxu0 0.0
      %2177 = vmatprep.subr.mxu0 0.0
      %2178 = vmatpush1.msra.mxu0 0.0
      %2179 = vmatprep.subr.mxu0 0.0
      %2180 = vmatpush1.msra.mxu0 0.0
      %2181 = vmatprep.subr.mxu0 0.0
      %2182 = vmatpush1.msra.mxu0 0.0
      %2183 = vmatprep.subr.mxu0 0.0
      %2184 = vmatpush1.msra.mxu0 0.0
      %2185 = vmatprep.subr.mxu0 0.0
      %2186 = vmatpush1.msra.mxu0 0.0
      %2187 = vmatprep.subr.mxu0 0.0
      %2188 = vmatpush1.msra.mxu0 0.0
      %2189 = vmatprep.subr.mxu0 0.0
      %2190 = vmatpush1.msra.mxu0 0.0
      %2191 = vmatprep.subr.mxu0 0.0
      %2192 = vmatpush1.msra.mxu0 0.0
      %2193 = vmatprep.subr.mxu0 0.0
      %2194 = vmatpush1.msra.mxu0 0.0
      %2195 = vmatprep.subr.mxu0 0.0
      %2196 = vmatpush1.msra.mxu0 0.0
      %2197 = vmatprep.subr.mxu0 0.0
      %2198 = vmatpush1.msra.mxu0 0.0
      %2199 = vmatprep.mubr.f32.mxu0 0.0
      %2200 = vmatmul.mubr.f32.gmra.mrb[0].mxu0 %v2130
      %v2201 = vpop.f32.mrb[0].mxu0
      %v2202 = vadd.f32 %v2127, %v2201
      %v2203 = vpop.f32.mrb[0].mxu0
      %2204 = vmatprep.mubr.f32.mxu0 0.0
      %2205 = vmatmul.mubr.f32.gmra.mrb[0].mxu0 %v2133
      %v2206 = vpop.f32.mrb[0].mxu0
      %v2207 = vadd.f32 %v2127, %v2206
      %v2208 = vpop.f32.mrb[0].mxu0
      %2209 = vdwg.mxu0
      %v2210 = vadd.f32 %v1473, %v2202
      %v2211 = vadd.f32 %v1474, %v2207
      %v2212 = vsel %vm256, %v2210, 0.0
      %2213 = vadd.xlane.f32.xlu0 %v2212
      %v2214 = vpop.xlane.xlu0 %2213
      %v2215 = vsel %vm1465, %v2211, 0.0
      %2216 = vadd.xlane.f32.xlu0 %v2215
      %v2217 = vpop.xlane.xlu0 %2216
      %v2218 = vmul.f32 %v2214, %v996
      %v2219 = vmul.f32 %v2217, %v996
      %v2220 = vsub.f32 %v2210, %v2218
      %v2221 = vsub.f32 %v2211, %v2219
      %v2222 = vmul.f32 %v2220, %v2220
      %v2223 = vmul.f32 %v2221, %v2221
      %v2224 = vsel %vm256, %v2222, 0.0
      %2225 = vadd.xlane.f32.xlu0 %v2224
      %v2226 = vpop.xlane.xlu0 %2225
      %v2227 = vsel %vm1465, %v2223, 0.0
      %2228 = vadd.xlane.f32.xlu0 %v2227
      %v2229 = vpop.xlane.xlu0 %2228
      %v2230 = vmul.f32 %v2226, %v996
      %v2231 = vmul.f32 %v2229, %v996
      %v2232 = vadd.f32 %v2230, 1e-05
      %v2233 = vadd.f32 %v2231, 1e-05
      %v2234 = vrsqrt.pop %v2232
      %v2235 = vrsqrt.pop %v2233
      %v2236 = vmul.f32 %v2220, %v2234
      %v2237 = vmul.f32 %v2221, %v2235
      %v2239 = vlaneseq
      %v2240 = vshrl.u32 %v2239, 7
      %v2241 = vsub.s32 0, %v2240
      %v2242 = vrot.slane %v1444, %v2241
      %v2244 = vmul.f32 %v2236, %v2242
      %v2245 = vmul.f32 %v2237, %v2242
      %v2247 = vlaneseq
      %v2248 = vshrl.u32 %v2247, 7
      %v2249 = vsub.s32 0, %v2248
      %v2250 = vrot.slane %v1445, %v2249
      %v2252 = vadd.f32 %v2244, %v2250
      %v2253 = vadd.f32 %v2245, %v2250
      %v2255 = vlaneseq
      %v2256 = vshrl.u32 %v2255, 7
      %v2257 = vsub.s32 0, %v2256
      %v2258 = vrot.slane %v1447, %v2257
      %v2261 = vsel %vm256, %v2252, 0
      %v2264 = vsel %vm256, %v2253, 0
      %2266 = vmatprep.subr.mxu0 0.0
      %2267 = vmatpush1.msra.mxu0 %v1446
      %2268 = vmatprep.subr.mxu0 0.0
      %2269 = vmatpush1.msra.mxu0 0.0
      %2270 = vmatprep.subr.mxu0 0.0
      %2271 = vmatpush1.msra.mxu0 0.0
      %2272 = vmatprep.subr.mxu0 0.0
      %2273 = vmatpush1.msra.mxu0 0.0
      %2274 = vmatprep.subr.mxu0 0.0
      %2275 = vmatpush1.msra.mxu0 0.0
      %2276 = vmatprep.subr.mxu0 0.0
      %2277 = vmatpush1.msra.mxu0 0.0
      %2278 = vmatprep.subr.mxu0 0.0
      %2279 = vmatpush1.msra.mxu0 0.0
      %2280 = vmatprep.subr.mxu0 0.0
      %2281 = vmatpush1.msra.mxu0 0.0
      %2282 = vmatprep.subr.mxu0 0.0
      %2283 = vmatpush1.msra.mxu0 0.0
      %2284 = vmatprep.subr.mxu0 0.0
      %2285 = vmatpush1.msra.mxu0 0.0
      %2286 = vmatprep.subr.mxu0 0.0
      %2287 = vmatpush1.msra.mxu0 0.0
      %2288 = vmatprep.subr.mxu0 0.0
      %2289 = vmatpush1.msra.mxu0 0.0
      %2290 = vmatprep.subr.mxu0 0.0
      %2291 = vmatpush1.msra.mxu0 0.0
      %2292 = vmatprep.subr.mxu0 0.0
      %2293 = vmatpush1.msra.mxu0 0.0
      %2294 = vmatprep.subr.mxu0 0.0
      %2295 = vmatpush1.msra.mxu0 0.0
      %2296 = vmatprep.subr.mxu0 0.0
      %2297 = vmatpush1.msra.mxu0 0.0
      %2298 = vmatprep.subr.mxu0 0.0
      %2299 = vmatpush1.msra.mxu0 0.0
      %2300 = vmatprep.subr.mxu0 0.0
      %2301 = vmatpush1.msra.mxu0 0.0
      %2302 = vmatprep.subr.mxu0 0.0
      %2303 = vmatpush1.msra.mxu0 0.0
      %2304 = vmatprep.subr.mxu0 0.0
      %2305 = vmatpush1.msra.mxu0 0.0
      %2306 = vmatprep.subr.mxu0 0.0
      %2307 = vmatpush1.msra.mxu0 0.0
      %2308 = vmatprep.subr.mxu0 0.0
      %2309 = vmatpush1.msra.mxu0 0.0
      %2310 = vmatprep.subr.mxu0 0.0
      %2311 = vmatpush1.msra.mxu0 0.0
      %2312 = vmatprep.subr.mxu0 0.0
      %2313 = vmatpush1.msra.mxu0 0.0
      %2314 = vmatprep.subr.mxu0 0.0
      %2315 = vmatpush1.msra.mxu0 0.0
      %2316 = vmatprep.subr.mxu0 0.0
      %2317 = vmatpush1.msra.mxu0 0.0
      %2318 = vmatprep.subr.mxu0 0.0
      %2319 = vmatpush1.msra.mxu0 0.0
      %2320 = vmatprep.subr.mxu0 0.0
      %2321 = vmatpush1.msra.mxu0 0.0
      %2322 = vmatprep.subr.mxu0 0.0
      %2323 = vmatpush1.msra.mxu0 0.0
      %2324 = vmatprep.subr.mxu0 0.0
      %2325 = vmatpush1.msra.mxu0 0.0
      %2326 = vmatprep.subr.mxu0 0.0
      %2327 = vmatpush1.msra.mxu0 0.0
      %2328 = vmatprep.subr.mxu0 0.0
      %2329 = vmatpush1.msra.mxu0 0.0
      %2330 = vmatprep.mubr.f32.mxu0 0.0
      %2331 = vmatmul.mubr.f32.gmra.mrb[0].mxu0 %v2261
      %v2332 = vpop.f32.mrb[0].mxu0
      %v2333 = vadd.f32 %v2258, %v2332
      %v2334 = vpop.f32.mrb[0].mxu0
      %2335 = vmatprep.mubr.f32.mxu0 0.0
      %2336 = vmatmul.mubr.f32.gmra.mrb[0].mxu0 %v2264
      %v2337 = vpop.f32.mrb[0].mxu0
      %v2338 = vadd.f32 %v2258, %v2337
      %v2339 = vpop.f32.mrb[0].mxu0
      %2340 = vdwg.mxu0
      %v2341 = vmul.f32 %v2333, %v240
      %v2342 = vmul.f32 %v2338, %v240
      %v2344 = vsel %vm256, %v2341, 0
      %v2347 = vsel %vm256, %v2342, 0
      %v2350 = vsel %vm256, %v1341, 0
      %v2353 = vsel %vm256, %v1346, 0
      %2355 = vmatprep.subr.mxu0 0.0
      %2356 = vmatpush1.xpose.msra.mxu0 %v2350
      %2357 = vmatprep.subr.mxu0 0.0
      %2358 = vmatpush1.xpose.msra.mxu0 %v2353
      %2359 = vmatprep.subr.mxu0 0.0
      %2360 = vmatpush1.xpose.msra.mxu0 0.0
      %2361 = vmatprep.subr.mxu0 0.0
      %2362 = vmatpush1.xpose.msra.mxu0 0.0
      %2363 = vmatprep.subr.mxu0 0.0
      %2364 = vmatpush1.xpose.msra.mxu0 0.0
      %2365 = vmatprep.subr.mxu0 0.0
      %2366 = vmatpush1.xpose.msra.mxu0 0.0
      %2367 = vmatprep.subr.mxu0 0.0
      %2368 = vmatpush1.xpose.msra.mxu0 0.0
      %2369 = vmatprep.subr.mxu0 0.0
      %2370 = vmatpush1.xpose.msra.mxu0 0.0
      %2371 = vmatprep.subr.mxu0 0.0
      %2372 = vmatpush1.xpose.msra.mxu0 0.0
      %2373 = vmatprep.subr.mxu0 0.0
      %2374 = vmatpush1.xpose.msra.mxu0 0.0
      %2375 = vmatprep.subr.mxu0 0.0
      %2376 = vmatpush1.xpose.msra.mxu0 0.0
      %2377 = vmatprep.subr.mxu0 0.0
      %2378 = vmatpush1.xpose.msra.mxu0 0.0
      %2379 = vmatprep.subr.mxu0 0.0
      %2380 = vmatpush1.xpose.msra.mxu0 0.0
      %2381 = vmatprep.subr.mxu0 0.0
      %2382 = vmatpush1.xpose.msra.mxu0 0.0
      %2383 = vmatprep.subr.mxu0 0.0
      %2384 = vmatpush1.xpose.msra.mxu0 0.0
      %2385 = vmatprep.subr.mxu0 0.0
      %2386 = vmatpush1.xpose.msra.mxu0 0.0
      %2387 = vmatprep.subr.mxu0 0.0
      %2388 = vmatpush1.xpose.msra.mxu0 0.0
      %2389 = vmatprep.subr.mxu0 0.0
      %2390 = vmatpush1.xpose.msra.mxu0 0.0
      %2391 = vmatprep.subr.mxu0 0.0
      %2392 = vmatpush1.xpose.msra.mxu0 0.0
      %2393 = vmatprep.subr.mxu0 0.0
      %2394 = vmatpush1.xpose.msra.mxu0 0.0
      %2395 = vmatprep.subr.mxu0 0.0
      %2396 = vmatpush1.xpose.msra.mxu0 0.0
      %2397 = vmatprep.subr.mxu0 0.0
      %2398 = vmatpush1.xpose.msra.mxu0 0.0
      %2399 = vmatprep.subr.mxu0 0.0
      %2400 = vmatpush1.xpose.msra.mxu0 0.0
      %2401 = vmatprep.subr.mxu0 0.0
      %2402 = vmatpush1.xpose.msra.mxu0 0.0
      %2403 = vmatprep.subr.mxu0 0.0
      %2404 = vmatpush1.xpose.msra.mxu0 0.0
      %2405 = vmatprep.subr.mxu0 0.0
      %2406 = vmatpush1.xpose.msra.mxu0 0.0
      %2407 = vmatprep.subr.mxu0 0.0
      %2408 = vmatpush1.xpose.msra.mxu0 0.0
      %2409 = vmatprep.subr.mxu0 0.0
      %2410 = vmatpush1.xpose.msra.mxu0 0.0
      %2411 = vmatprep.subr.mxu0 0.0
      %2412 = vmatpush1.xpose.msra.mxu0 0.0
      %2413 = vmatprep.subr.mxu0 0.0
      %2414 = vmatpush1.xpose.msra.mxu0 0.0
      %2415 = vmatprep.subr.mxu0 0.0
      %2416 = vmatpush1.xpose.msra.mxu0 0.0
      %2417 = vmatprep.subr.mxu0 0.0
      %2418 = vmatpush1.xpose.msra.mxu0 0.0
      %2419 = vmatprep.mubr.f32.mxu0 0.0
      %2420 = vmatmul.mubr.f32.gmra.mrb[0].mxu0 %v2344
      %v2421 = vpop.f32.mrb[0].mxu0
      %v2422 = vadd.f32 0.0, %v2421
      %v2423 = vpop.f32.mrb[0].mxu0
      %2424 = vmatprep.mubr.f32.mxu0 0.0
      %2425 = vmatmul.mubr.f32.gmra.mrb[0].mxu0 %v2347
      %v2426 = vpop.f32.mrb[0].mxu0
      %v2427 = vadd.f32 0.0, %v2426
      %v2428 = vpop.f32.mrb[0].mxu0
      %2429 = vdwg.mxu0
      %v2430 = vmul.f32 %v2422, 0.5
      %v2431 = vmul.f32 %v2427, 0.5
      %v2432 = vadd.f32 %v2430, %v1434
      %v2433 = vadd.f32 %v2431, %v1435
      %v2434 = vsel %vm599, %v2432, -inf
      %2435 = vmax.xlane.f32.xlu0 %v2434
      %v2436 = vpop.xlane.xlu0 %2435
      %vm2437 = vcmask 123904
      %v2438 = vsel %vm2437, %v2433, -inf
      %2439 = vmax.xlane.f32.xlu0 %v2438
      %v2440 = vpop.xlane.xlu0 %2439
      %v2441 = vsub.f32 %v2432, %v2436
      %v2442 = vsub.f32 %v2433, %v2440
      %v2443 = vmul.f32 %v2441, 1.442695
      %v2444 = vpow.pop %v2443
      %v2445 = vmul.f32 %v2442, 1.442695
      %v2446 = vpow.pop %v2445
      %v2447 = vsel %vm599, %v2444, 0.0
      %2448 = vadd.xlane.f32.xlu0 %v2447
      %v2449 = vpop.xlane.xlu0 %2448
      %v2450 = vsel %vm2437, %v2446, 0.0
      %2451 = vadd.xlane.f32.xlu0 %v2450
      %v2452 = vpop.xlane.xlu0 %2451
      %v2453 = vrcp.pop %v2449
      %v2454 = vrcp.pop %v2452
      %v2455 = vmul.f32 %v2444, %v2453
      %v2456 = vmul.f32 %v2446, %v2454
      %v2457 = vmul.f32 %v1424, %v240
      %v2458 = vmul.f32 %v1429, %v240
      %v2459 = vmul.f32 %v2333, %v245
      %v2460 = vmul.f32 %v2338, %v245
      %v2462 = vsel %vm256, %v2459, 0
      %v2465 = vsel %vm256, %v2460, 0
      %2467 = vmatprep.subr.mxu0 0.0
      %2468 = vmatpush1.xpose.msra.mxu0 %v2350
      %2469 = vmatprep.subr.mxu0 0.0
      %2470 = vmatpush1.xpose.msra.mxu0 %v2353
      %2471 = vmatprep.subr.mxu0 0.0
      %2472 = vmatpush1.xpose.msra.mxu0 0.0
      %2473 = vmatprep.subr.mxu0 0.0
      %2474 = vmatpush1.xpose.msra.mxu0 0.0
      %2475 = vmatprep.subr.mxu0 0.0
      %2476 = vmatpush1.xpose.msra.mxu0 0.0
      %2477 = vmatprep.subr.mxu0 0.0
      %2478 = vmatpush1.xpose.msra.mxu0 0.0
      %2479 = vmatprep.subr.mxu0 0.0
      %2480 = vmatpush1.xpose.msra.mxu0 0.0
      %2481 = vmatprep.subr.mxu0 0.0
      %2482 = vmatpush1.xpose.msra.mxu0 0.0
      %2483 = vmatprep.subr.mxu0 0.0
      %2484 = vmatpush1.xpose.msra.mxu0 0.0
      %2485 = vmatprep.subr.mxu0 0.0
      %2486 = vmatpush1.xpose.msra.mxu0 0.0
      %2487 = vmatprep.subr.mxu0 0.0
      %2488 = vmatpush1.xpose.msra.mxu0 0.0
      %2489 = vmatprep.subr.mxu0 0.0
      %2490 = vmatpush1.xpose.msra.mxu0 0.0
      %2491 = vmatprep.subr.mxu0 0.0
      %2492 = vmatpush1.xpose.msra.mxu0 0.0
      %2493 = vmatprep.subr.mxu0 0.0
      %2494 = vmatpush1.xpose.msra.mxu0 0.0
      %2495 = vmatprep.subr.mxu0 0.0
      %2496 = vmatpush1.xpose.msra.mxu0 0.0
      %2497 = vmatprep.subr.mxu0 0.0
      %2498 = vmatpush1.xpose.msra.mxu0 0.0
      %2499 = vmatprep.subr.mxu0 0.0
      %2500 = vmatpush1.xpose.msra.mxu0 0.0
      %2501 = vmatprep.subr.mxu0 0.0
      %2502 = vmatpush1.xpose.msra.mxu0 0.0
      %2503 = vmatprep.subr.mxu0 0.0
      %2504 = vmatpush1.xpose.msra.mxu0 0.0
      %2505 = vmatprep.subr.mxu0 0.0
      %2506 = vmatpush1.xpose.msra.mxu0 0.0
      %2507 = vmatprep.subr.mxu0 0.0
      %2508 = vmatpush1.xpose.msra.mxu0 0.0
      %2509 = vmatprep.subr.mxu0 0.0
      %2510 = vmatpush1.xpose.msra.mxu0 0.0
      %2511 = vmatprep.subr.mxu0 0.0
      %2512 = vmatpush1.xpose.msra.mxu0 0.0
      %2513 = vmatprep.subr.mxu0 0.0
      %2514 = vmatpush1.xpose.msra.mxu0 0.0
      %2515 = vmatprep.subr.mxu0 0.0
      %2516 = vmatpush1.xpose.msra.mxu0 0.0
      %2517 = vmatprep.subr.mxu0 0.0
      %2518 = vmatpush1.xpose.msra.mxu0 0.0
      %2519 = vmatprep.subr.mxu0 0.0
      %2520 = vmatpush1.xpose.msra.mxu0 0.0
      %2521 = vmatprep.subr.mxu0 0.0
      %2522 = vmatpush1.xpose.msra.mxu0 0.0
      %2523 = vmatprep.subr.mxu0 0.0
      %2524 = vmatpush1.xpose.msra.mxu0 0.0
      %2525 = vmatprep.subr.mxu0 0.0
      %2526 = vmatpush1.xpose.msra.mxu0 0.0
      %2527 = vmatprep.subr.mxu0 0.0
      %2528 = vmatpush1.xpose.msra.mxu0 0.0
      %2529 = vmatprep.subr.mxu0 0.0
      %2530 = vmatpush1.xpose.msra.mxu0 0.0
      %2531 = vmatprep.mubr.f32.mxu0 0.0
      %2532 = vmatmul.mubr.f32.gmra.mrb[0].mxu0 %v2462
      %v2533 = vpop.f32.mrb[0].mxu0
      %v2534 = vadd.f32 0.0, %v2533
      %v2535 = vpop.f32.mrb[0].mxu0
      %2536 = vmatprep.mubr.f32.mxu0 0.0
      %2537 = vmatmul.mubr.f32.gmra.mrb[0].mxu0 %v2465
      %v2538 = vpop.f32.mrb[0].mxu0
      %v2539 = vadd.f32 0.0, %v2538
      %v2540 = vpop.f32.mrb[0].mxu0
      %2541 = vdwg.mxu0
      %v2542 = vmul.f32 %v2534, 0.5
      %v2543 = vmul.f32 %v2539, 0.5
      %v2544 = vadd.f32 %v2542, %v1434
      %v2545 = vadd.f32 %v2543, %v1435
      %v2546 = vsel %vm599, %v2544, -inf
      %2547 = vmax.xlane.f32.xlu0 %v2546
      %v2548 = vpop.xlane.xlu0 %2547
      %v2549 = vsel %vm2437, %v2545, -inf
      %2550 = vmax.xlane.f32.xlu0 %v2549
      %v2551 = vpop.xlane.xlu0 %2550
      %v2552 = vsub.f32 %v2544, %v2548
      %v2553 = vsub.f32 %v2545, %v2551
      %v2554 = vmul.f32 %v2552, 1.442695
      %v2555 = vpow.pop %v2554
      %v2556 = vmul.f32 %v2553, 1.442695
      %v2557 = vpow.pop %v2556
      %v2558 = vsel %vm599, %v2555, 0.0
      %2559 = vadd.xlane.f32.xlu0 %v2558
      %v2560 = vpop.xlane.xlu0 %2559
      %v2561 = vsel %vm2437, %v2557, 0.0
      %2562 = vadd.xlane.f32.xlu0 %v2561
      %v2563 = vpop.xlane.xlu0 %2562
      %v2564 = vrcp.pop %v2560
      %v2565 = vrcp.pop %v2563
      %v2566 = vmul.f32 %v2555, %v2564
      %v2567 = vmul.f32 %v2557, %v2565
      %v2568 = vmul.f32 %v1424, %v245
      %v2569 = vmul.f32 %v1429, %v245
      %v2571 = vsel %vm599, %v2566, 0
      %v2574 = vsel %vm599, %v2567, 0
      %2576 = vmatprep.subr.mxu0 0.0
      %2577 = vmatpush1.msra.mxu0 %v2568
      %2578 = vmatprep.subr.mxu0 0.0
      %2579 = vmatpush1.msra.mxu0 %v2569
      %2580 = vmatprep.subr.mxu0 0.0
      %2581 = vmatpush1.msra.mxu0 0.0
      %2582 = vmatprep.subr.mxu0 0.0
      %2583 = vmatpush1.msra.mxu0 0.0
      %2584 = vmatprep.subr.mxu0 0.0
      %2585 = vmatpush1.msra.mxu0 0.0
      %2586 = vmatprep.subr.mxu0 0.0
      %2587 = vmatpush1.msra.mxu0 0.0
      %2588 = vmatprep.subr.mxu0 0.0
      %2589 = vmatpush1.msra.mxu0 0.0
      %2590 = vmatprep.subr.mxu0 0.0
      %2591 = vmatpush1.msra.mxu0 0.0
      %2592 = vmatprep.subr.mxu0 0.0
      %2593 = vmatpush1.msra.mxu0 0.0
      %2594 = vmatprep.subr.mxu0 0.0
      %2595 = vmatpush1.msra.mxu0 0.0
      %2596 = vmatprep.subr.mxu0 0.0
      %2597 = vmatpush1.msra.mxu0 0.0
      %2598 = vmatprep.subr.mxu0 0.0
      %2599 = vmatpush1.msra.mxu0 0.0
      %2600 = vmatprep.subr.mxu0 0.0
      %2601 = vmatpush1.msra.mxu0 0.0
      %2602 = vmatprep.subr.mxu0 0.0
      %2603 = vmatpush1.msra.mxu0 0.0
      %2604 = vmatprep.subr.mxu0 0.0
      %2605 = vmatpush1.msra.mxu0 0.0
      %2606 = vmatprep.subr.mxu0 0.0
      %2607 = vmatpush1.msra.mxu0 0.0
      %2608 = vmatprep.subr.mxu0 0.0
      %2609 = vmatpush1.msra.mxu0 0.0
      %2610 = vmatprep.subr.mxu0 0.0
      %2611 = vmatpush1.msra.mxu0 0.0
      %2612 = vmatprep.subr.mxu0 0.0
      %2613 = vmatpush1.msra.mxu0 0.0
      %2614 = vmatprep.subr.mxu0 0.0
      %2615 = vmatpush1.msra.mxu0 0.0
      %2616 = vmatprep.subr.mxu0 0.0
      %2617 = vmatpush1.msra.mxu0 0.0
      %2618 = vmatprep.subr.mxu0 0.0
      %2619 = vmatpush1.msra.mxu0 0.0
      %2620 = vmatprep.subr.mxu0 0.0
      %2621 = vmatpush1.msra.mxu0 0.0
      %2622 = vmatprep.subr.mxu0 0.0
      %2623 = vmatpush1.msra.mxu0 0.0
      %2624 = vmatprep.subr.mxu0 0.0
      %2625 = vmatpush1.msra.mxu0 0.0
      %2626 = vmatprep.subr.mxu0 0.0
      %2627 = vmatpush1.msra.mxu0 0.0
      %2628 = vmatprep.subr.mxu0 0.0
      %2629 = vmatpush1.msra.mxu0 0.0
      %2630 = vmatprep.subr.mxu0 0.0
      %2631 = vmatpush1.msra.mxu0 0.0
      %2632 = vmatprep.subr.mxu0 0.0
      %2633 = vmatpush1.msra.mxu0 0.0
      %2634 = vmatprep.subr.mxu0 0.0
      %2635 = vmatpush1.msra.mxu0 0.0
      %2636 = vmatprep.subr.mxu0 0.0
      %2637 = vmatpush1.msra.mxu0 0.0
      %2638 = vmatprep.subr.mxu0 0.0
      %2639 = vmatpush1.msra.mxu0 0.0
      %2640 = vmatprep.mubr.f32.mxu0 0.0
      %2641 = vmatmul.mubr.f32.gmra.mrb[0].mxu0 %v2571
      %v2642 = vpop.f32.mrb[0].mxu0
      %v2643 = vadd.f32 0.0, %v2642
      %v2644 = vpop.f32.mrb[0].mxu0
      %2645 = vmatprep.mubr.f32.mxu0 0.0
      %2646 = vmatmul.mubr.f32.gmra.mrb[0].mxu0 %v2574
      %v2647 = vpop.f32.mrb[0].mxu0
      %v2648 = vadd.f32 0.0, %v2647
      %v2649 = vpop.f32.mrb[0].mxu0
      %2650 = vdwg.mxu0
      %v2652 = vsel %vm599, %v2455, 0
      %v2655 = vsel %vm599, %v2456, 0
      %2657 = vmatprep.subr.mxu0 0.0
      %2658 = vmatpush1.msra.mxu0 %v2457
      %2659 = vmatprep.subr.mxu0 0.0
      %2660 = vmatpush1.msra.mxu0 %v2458
      %2661 = vmatprep.subr.mxu0 0.0
      %2662 = vmatpush1.msra.mxu0 0.0
      %2663 = vmatprep.subr.mxu0 0.0
      %2664 = vmatpush1.msra.mxu0 0.0
      %2665 = vmatprep.subr.mxu0 0.0
      %2666 = vmatpush1.msra.mxu0 0.0
      %2667 = vmatprep.subr.mxu0 0.0
      %2668 = vmatpush1.msra.mxu0 0.0
      %2669 = vmatprep.subr.mxu0 0.0
      %2670 = vmatpush1.msra.mxu0 0.0
      %2671 = vmatprep.subr.mxu0 0.0
      %2672 = vmatpush1.msra.mxu0 0.0
      %2673 = vmatprep.subr.mxu0 0.0
      %2674 = vmatpush1.msra.mxu0 0.0
      %2675 = vmatprep.subr.mxu0 0.0
      %2676 = vmatpush1.msra.mxu0 0.0
      %2677 = vmatprep.subr.mxu0 0.0
      %2678 = vmatpush1.msra.mxu0 0.0
      %2679 = vmatprep.subr.mxu0 0.0
      %2680 = vmatpush1.msra.mxu0 0.0
      %2681 = vmatprep.subr.mxu0 0.0
      %2682 = vmatpush1.msra.mxu0 0.0
      %2683 = vmatprep.subr.mxu0 0.0
      %2684 = vmatpush1.msra.mxu0 0.0
      %2685 = vmatprep.subr.mxu0 0.0
      %2686 = vmatpush1.msra.mxu0 0.0
      %2687 = vmatprep.subr.mxu0 0.0
      %2688 = vmatpush1.msra.mxu0 0.0
      %2689 = vmatprep.subr.mxu0 0.0
      %2690 = vmatpush1.msra.mxu0 0.0
      %2691 = vmatprep.subr.mxu0 0.0
      %2692 = vmatpush1.msra.mxu0 0.0
      %2693 = vmatprep.subr.mxu0 0.0
      %2694 = vmatpush1.msra.mxu0 0.0
      %2695 = vmatprep.subr.mxu0 0.0
      %2696 = vmatpush1.msra.mxu0 0.0
      %2697 = vmatprep.subr.mxu0 0.0
      %2698 = vmatpush1.msra.mxu0 0.0
      %2699 = vmatprep.subr.mxu0 0.0
      %2700 = vmatpush1.msra.mxu0 0.0
      %2701 = vmatprep.subr.mxu0 0.0
      %2702 = vmatpush1.msra.mxu0 0.0
      %2703 = vmatprep.subr.mxu0 0.0
      %2704 = vmatpush1.msra.mxu0 0.0
      %2705 = vmatprep.subr.mxu0 0.0
      %2706 = vmatpush1.msra.mxu0 0.0
      %2707 = vmatprep.subr.mxu0 0.0
      %2708 = vmatpush1.msra.mxu0 0.0
      %2709 = vmatprep.subr.mxu0 0.0
      %2710 = vmatpush1.msra.mxu0 0.0
      %2711 = vmatprep.subr.mxu0 0.0
      %2712 = vmatpush1.msra.mxu0 0.0
      %2713 = vmatprep.subr.mxu0 0.0
      %2714 = vmatpush1.msra.mxu0 0.0
      %2715 = vmatprep.subr.mxu0 0.0
      %2716 = vmatpush1.msra.mxu0 0.0
      %2717 = vmatprep.subr.mxu0 0.0
      %2718 = vmatpush1.msra.mxu0 0.0
      %2719 = vmatprep.subr.mxu0 0.0
      %2720 = vmatpush1.msra.mxu0 0.0
      %2721 = vmatprep.mubr.f32.mxu0 0.0
      %2722 = vmatmul.mubr.f32.gmra.mrb[0].mxu0 %v2652
      %v2723 = vpop.f32.mrb[0].mxu0
      %v2724 = vadd.f32 %v2643, %v2723
      %v2725 = vpop.f32.mrb[0].mxu0
      %2726 = vmatprep.mubr.f32.mxu0 0.0
      %2727 = vmatmul.mubr.f32.gmra.mrb[0].mxu0 %v2655
      %v2728 = vpop.f32.mrb[0].mxu0
      %v2729 = vadd.f32 %v2648, %v2728
      %v2730 = vpop.f32.mrb[0].mxu0
      %2731 = vdwg.mxu0
      %v2733 = vlaneseq
      %v2734 = vshrl.u32 %v2733, 7
      %v2735 = vsub.s32 0, %v2734
      %v2736 = vrot.slane %v1449, %v2735
      %v2739 = vsel %vm256, %v2724, 0
      %v2742 = vsel %vm256, %v2729, 0
      %2744 = vmatprep.subr.mxu0 0.0
      %2745 = vmatpush1.msra.mxu0 %v1448
      %2746 = vmatprep.subr.mxu0 0.0
      %2747 = vmatpush1.msra.mxu0 0.0
      %2748 = vmatprep.subr.mxu0 0.0
      %2749 = vmatpush1.msra.mxu0 0.0
      %2750 = vmatprep.subr.mxu0 0.0
      %2751 = vmatpush1.msra.mxu0 0.0
      %2752 = vmatprep.subr.mxu0 0.0
      %2753 = vmatpush1.msra.mxu0 0.0
      %2754 = vmatprep.subr.mxu0 0.0
      %2755 = vmatpush1.msra.mxu0 0.0
      %2756 = vmatprep.subr.mxu0 0.0
      %2757 = vmatpush1.msra.mxu0 0.0
      %2758 = vmatprep.subr.mxu0 0.0
      %2759 = vmatpush1.msra.mxu0 0.0
      %2760 = vmatprep.subr.mxu0 0.0
      %2761 = vmatpush1.msra.mxu0 0.0
      %2762 = vmatprep.subr.mxu0 0.0
      %2763 = vmatpush1.msra.mxu0 0.0
      %2764 = vmatprep.subr.mxu0 0.0
      %2765 = vmatpush1.msra.mxu0 0.0
      %2766 = vmatprep.subr.mxu0 0.0
      %2767 = vmatpush1.msra.mxu0 0.0
      %2768 = vmatprep.subr.mxu0 0.0
      %2769 = vmatpush1.msra.mxu0 0.0
      %2770 = vmatprep.subr.mxu0 0.0
      %2771 = vmatpush1.msra.mxu0 0.0
      %2772 = vmatprep.subr.mxu0 0.0
      %2773 = vmatpush1.msra.mxu0 0.0
      %2774 = vmatprep.subr.mxu0 0.0
      %2775 = vmatpush1.msra.mxu0 0.0
      %2776 = vmatprep.subr.mxu0 0.0
      %2777 = vmatpush1.msra.mxu0 0.0
      %2778 = vmatprep.subr.mxu0 0.0
      %2779 = vmatpush1.msra.mxu0 0.0
      %2780 = vmatprep.subr.mxu0 0.0
      %2781 = vmatpush1.msra.mxu0 0.0
      %2782 = vmatprep.subr.mxu0 0.0
      %2783 = vmatpush1.msra.mxu0 0.0
      %2784 = vmatprep.subr.mxu0 0.0
      %2785 = vmatpush1.msra.mxu0 0.0
      %2786 = vmatprep.subr.mxu0 0.0
      %2787 = vmatpush1.msra.mxu0 0.0
      %2788 = vmatprep.subr.mxu0 0.0
      %2789 = vmatpush1.msra.mxu0 0.0
      %2790 = vmatprep.subr.mxu0 0.0
      %2791 = vmatpush1.msra.mxu0 0.0
      %2792 = vmatprep.subr.mxu0 0.0
      %2793 = vmatpush1.msra.mxu0 0.0
      %2794 = vmatprep.subr.mxu0 0.0
      %2795 = vmatpush1.msra.mxu0 0.0
      %2796 = vmatprep.subr.mxu0 0.0
      %2797 = vmatpush1.msra.mxu0 0.0
      %2798 = vmatprep.subr.mxu0 0.0
      %2799 = vmatpush1.msra.mxu0 0.0
      %2800 = vmatprep.subr.mxu0 0.0
      %2801 = vmatpush1.msra.mxu0 0.0
      %2802 = vmatprep.subr.mxu0 0.0
      %2803 = vmatpush1.msra.mxu0 0.0
      %2804 = vmatprep.subr.mxu0 0.0
      %2805 = vmatpush1.msra.mxu0 0.0
      %2806 = vmatprep.subr.mxu0 0.0
      %2807 = vmatpush1.msra.mxu0 0.0
      %2808 = vmatprep.mubr.f32.mxu0 0.0
      %2809 = vmatmul.mubr.f32.gmra.mrb[0].mxu0 %v2739
      %v2810 = vpop.f32.mrb[0].mxu0
      %v2811 = vadd.f32 %v2736, %v2810
      %v2812 = vpop.f32.mrb[0].mxu0
      %2813 = vmatprep.mubr.f32.mxu0 0.0
      %2814 = vmatmul.mubr.f32.gmra.mrb[0].mxu0 %v2742
      %v2815 = vpop.f32.mrb[0].mxu0
      %v2816 = vadd.f32 %v2736, %v2815
      %v2817 = vpop.f32.mrb[0].mxu0
      %2818 = vdwg.mxu0
      %v2819 = vadd.f32 %v2252, %v2811
      %v2820 = vadd.f32 %v2253, %v2816
      %v2821 = vsel %vm256, %v2819, 0.0
      %2822 = vadd.xlane.f32.xlu0 %v2821
      %v2823 = vpop.xlane.xlu0 %2822
      %v2824 = vsel %vm1465, %v2820, 0.0
      %2825 = vadd.xlane.f32.xlu0 %v2824
      %v2826 = vpop.xlane.xlu0 %2825
      %v2827 = vmul.f32 %v2823, %v996
      %v2828 = vmul.f32 %v2826, %v996
      %v2829 = vsub.f32 %v2819, %v2827
      %v2830 = vsub.f32 %v2820, %v2828
      %v2831 = vmul.f32 %v2829, %v2829
      %v2832 = vmul.f32 %v2830, %v2830
      %v2833 = vsel %vm256, %v2831, 0.0
      %2834 = vadd.xlane.f32.xlu0 %v2833
      %v2835 = vpop.xlane.xlu0 %2834
      %v2836 = vsel %vm1465, %v2832, 0.0
      %2837 = vadd.xlane.f32.xlu0 %v2836
      %v2838 = vpop.xlane.xlu0 %2837
      %v2839 = vmul.f32 %v2835, %v996
      %v2840 = vmul.f32 %v2838, %v996
      %v2841 = vadd.f32 %v2839, 1e-05
      %v2842 = vadd.f32 %v2840, 1e-05
      %v2843 = vrsqrt.pop %v2841
      %v2844 = vrsqrt.pop %v2842
      %v2845 = vmul.f32 %v2829, %v2843
      %v2846 = vmul.f32 %v2830, %v2844
      %v2848 = vlaneseq
      %v2849 = vshrl.u32 %v2848, 7
      %v2850 = vsub.s32 0, %v2849
      %v2851 = vrot.slane %v1450, %v2850
      %v2853 = vmul.f32 %v2845, %v2851
      %v2854 = vmul.f32 %v2846, %v2851
      %v2856 = vlaneseq
      %v2857 = vshrl.u32 %v2856, 7
      %v2858 = vsub.s32 0, %v2857
      %v2859 = vrot.slane %v1451, %v2858
      %v2861 = vadd.f32 %v2853, %v2859
      %v2862 = vadd.f32 %v2854, %v2859
      %v2864 = vlaneseq
      %v2865 = vshrl.u32 %v2864, 7
      %v2866 = vsub.s32 0, %v2865
      %v2867 = vrot.slane %v1453, %v2866
      %v2870 = vsel %vm256, %v2861, 0
      %v2873 = vsel %vm256, %v2862, 0
      %2875 = vmatprep.subr.mxu0 0.0
      %2876 = vmatpush1.msra.mxu0 %v1452
      %2877 = vmatprep.subr.mxu0 0.0
      %2878 = vmatpush1.msra.mxu0 0.0
      %2879 = vmatprep.subr.mxu0 0.0
      %2880 = vmatpush1.msra.mxu0 0.0
      %2881 = vmatprep.subr.mxu0 0.0
      %2882 = vmatpush1.msra.mxu0 0.0
      %2883 = vmatprep.subr.mxu0 0.0
      %2884 = vmatpush1.msra.mxu0 0.0
      %2885 = vmatprep.subr.mxu0 0.0
      %2886 = vmatpush1.msra.mxu0 0.0
      %2887 = vmatprep.subr.mxu0 0.0
      %2888 = vmatpush1.msra.mxu0 0.0
      %2889 = vmatprep.subr.mxu0 0.0
      %2890 = vmatpush1.msra.mxu0 0.0
      %2891 = vmatprep.subr.mxu0 0.0
      %2892 = vmatpush1.msra.mxu0 0.0
      %2893 = vmatprep.subr.mxu0 0.0
      %2894 = vmatpush1.msra.mxu0 0.0
      %2895 = vmatprep.subr.mxu0 0.0
      %2896 = vmatpush1.msra.mxu0 0.0
      %2897 = vmatprep.subr.mxu0 0.0
      %2898 = vmatpush1.msra.mxu0 0.0
      %2899 = vmatprep.subr.mxu0 0.0
      %2900 = vmatpush1.msra.mxu0 0.0
      %2901 = vmatprep.subr.mxu0 0.0
      %2902 = vmatpush1.msra.mxu0 0.0
      %2903 = vmatprep.subr.mxu0 0.0
      %2904 = vmatpush1.msra.mxu0 0.0
      %2905 = vmatprep.subr.mxu0 0.0
      %2906 = vmatpush1.msra.mxu0 0.0
      %2907 = vmatprep.subr.mxu0 0.0
      %2908 = vmatpush1.msra.mxu0 0.0
      %2909 = vmatprep.subr.mxu0 0.0
      %2910 = vmatpush1.msra.mxu0 0.0
      %2911 = vmatprep.subr.mxu0 0.0
      %2912 = vmatpush1.msra.mxu0 0.0
      %2913 = vmatprep.subr.mxu0 0.0
      %2914 = vmatpush1.msra.mxu0 0.0
      %2915 = vmatprep.subr.mxu0 0.0
      %2916 = vmatpush1.msra.mxu0 0.0
      %2917 = vmatprep.subr.mxu0 0.0
      %2918 = vmatpush1.msra.mxu0 0.0
      %2919 = vmatprep.subr.mxu0 0.0
      %2920 = vmatpush1.msra.mxu0 0.0
      %2921 = vmatprep.subr.mxu0 0.0
      %2922 = vmatpush1.msra.mxu0 0.0
      %2923 = vmatprep.subr.mxu0 0.0
      %2924 = vmatpush1.msra.mxu0 0.0
      %2925 = vmatprep.subr.mxu0 0.0
      %2926 = vmatpush1.msra.mxu0 0.0
      %2927 = vmatprep.subr.mxu0 0.0
      %2928 = vmatpush1.msra.mxu0 0.0
      %2929 = vmatprep.subr.mxu0 0.0
      %2930 = vmatpush1.msra.mxu0 0.0
      %2931 = vmatprep.subr.mxu0 0.0
      %2932 = vmatpush1.msra.mxu0 0.0
      %2933 = vmatprep.subr.mxu0 0.0
      %2934 = vmatpush1.msra.mxu0 0.0
      %2935 = vmatprep.subr.mxu0 0.0
      %2936 = vmatpush1.msra.mxu0 0.0
      %2937 = vmatprep.subr.mxu0 0.0
      %2938 = vmatpush1.msra.mxu0 0.0
      %2939 = vmatprep.mubr.f32.mxu0 0.0
      %2940 = vmatmul.mubr.f32.gmra.mrb[0].mxu0 %v2870
      %v2941 = vpop.f32.mrb[0].mxu0
      %v2942 = vadd.f32 %v2867, %v2941
      %v2943 = vpop.f32.mrb[0].mxu0
      %2944 = vmatprep.mubr.f32.mxu0 0.0
      %2945 = vmatmul.mubr.f32.gmra.mrb[0].mxu0 %v2873
      %v2946 = vpop.f32.mrb[0].mxu0
      %v2947 = vadd.f32 %v2867, %v2946
      %v2948 = vpop.f32.mrb[0].mxu0
      %2949 = vdwg.mxu0
      %v2950 = vmax.f32 %v2942, 0.0
      %v2951 = vmax.f32 %v2947, 0.0
      %v2953 = vlaneseq
      %v2954 = vshrl.u32 %v2953, 7
      %v2955 = vsub.s32 0, %v2954
      %v2956 = vrot.slane %v1456, %v2955
      %v2959 = vsel %vm599, %v2950, 0
      %v2962 = vsel %vm599, %v2951, 0
      %2964 = vmatprep.subr.mxu0 0.0
      %2965 = vmatpush1.msra.mxu0 %v1454
      %2966 = vmatprep.subr.mxu0 0.0
      %2967 = vmatpush1.msra.mxu0 %v1455
      %2968 = vmatprep.subr.mxu0 0.0
      %2969 = vmatpush1.msra.mxu0 0.0
      %2970 = vmatprep.subr.mxu0 0.0
      %2971 = vmatpush1.msra.mxu0 0.0
      %2972 = vmatprep.subr.mxu0 0.0
      %2973 = vmatpush1.msra.mxu0 0.0
      %2974 = vmatprep.subr.mxu0 0.0
      %2975 = vmatpush1.msra.mxu0 0.0
      %2976 = vmatprep.subr.mxu0 0.0
      %2977 = vmatpush1.msra.mxu0 0.0
      %2978 = vmatprep.subr.mxu0 0.0
      %2979 = vmatpush1.msra.mxu0 0.0
      %2980 = vmatprep.subr.mxu0 0.0
      %2981 = vmatpush1.msra.mxu0 0.0
      %2982 = vmatprep.subr.mxu0 0.0
      %2983 = vmatpush1.msra.mxu0 0.0
      %2984 = vmatprep.subr.mxu0 0.0
      %2985 = vmatpush1.msra.mxu0 0.0
      %2986 = vmatprep.subr.mxu0 0.0
      %2987 = vmatpush1.msra.mxu0 0.0
      %2988 = vmatprep.subr.mxu0 0.0
      %2989 = vmatpush1.msra.mxu0 0.0
      %2990 = vmatprep.subr.mxu0 0.0
      %2991 = vmatpush1.msra.mxu0 0.0
      %2992 = vmatprep.subr.mxu0 0.0
      %2993 = vmatpush1.msra.mxu0 0.0
      %2994 = vmatprep.subr.mxu0 0.0
      %2995 = vmatpush1.msra.mxu0 0.0
      %2996 = vmatprep.subr.mxu0 0.0
      %2997 = vmatpush1.msra.mxu0 0.0
      %2998 = vmatprep.subr.mxu0 0.0
      %2999 = vmatpush1.msra.mxu0 0.0
      %3000 = vmatprep.subr.mxu0 0.0
      %3001 = vmatpush1.msra.mxu0 0.0
      %3002 = vmatprep.subr.mxu0 0.0
      %3003 = vmatpush1.msra.mxu0 0.0
      %3004 = vmatprep.subr.mxu0 0.0
      %3005 = vmatpush1.msra.mxu0 0.0
      %3006 = vmatprep.subr.mxu0 0.0
      %3007 = vmatpush1.msra.mxu0 0.0
      %3008 = vmatprep.subr.mxu0 0.0
      %3009 = vmatpush1.msra.mxu0 0.0
      %3010 = vmatprep.subr.mxu0 0.0
      %3011 = vmatpush1.msra.mxu0 0.0
      %3012 = vmatprep.subr.mxu0 0.0
      %3013 = vmatpush1.msra.mxu0 0.0
      %3014 = vmatprep.subr.mxu0 0.0
      %3015 = vmatpush1.msra.mxu0 0.0
      %3016 = vmatprep.subr.mxu0 0.0
      %3017 = vmatpush1.msra.mxu0 0.0
      %3018 = vmatprep.subr.mxu0 0.0
      %3019 = vmatpush1.msra.mxu0 0.0
      %3020 = vmatprep.subr.mxu0 0.0
      %3021 = vmatpush1.msra.mxu0 0.0
      %3022 = vmatprep.subr.mxu0 0.0
      %3023 = vmatpush1.msra.mxu0 0.0
      %3024 = vmatprep.subr.mxu0 0.0
      %3025 = vmatpush1.msra.mxu0 0.0
      %3026 = vmatprep.subr.mxu0 0.0
      %3027 = vmatpush1.msra.mxu0 0.0
      %3028 = vmatprep.mubr.f32.mxu0 0.0
      %3029 = vmatmul.mubr.f32.gmra.mrb[0].mxu0 %v2959
      %v3030 = vpop.f32.mrb[0].mxu0
      %v3031 = vadd.f32 %v2956, %v3030
      %v3032 = vpop.f32.mrb[0].mxu0
      %3033 = vmatprep.mubr.f32.mxu0 0.0
      %3034 = vmatmul.mubr.f32.gmra.mrb[0].mxu0 %v2962
      %v3035 = vpop.f32.mrb[0].mxu0
      %v3036 = vadd.f32 %v2956, %v3035
      %v3037 = vpop.f32.mrb[0].mxu0
      %3038 = vdwg.mxu0
      %v3039 = vadd.f32 %v2861, %v3031
      %v3040 = vadd.f32 %v2862, %v3036
      %v3041 = vsel %vm256, %v3039, 0.0
      %3042 = vadd.xlane.f32.xlu0 %v3041
      %v3043 = vpop.xlane.xlu0 %3042
      %v3044 = vsel %vm1465, %v3040, 0.0
      %3045 = vadd.xlane.f32.xlu0 %v3044
      %v3046 = vpop.xlane.xlu0 %3045
      %v3047 = vmul.f32 %v3043, %v996
      %v3048 = vmul.f32 %v3046, %v996
      %v3049 = vsub.f32 %v3039, %v3047
      %v3050 = vsub.f32 %v3040, %v3048
      %v3051 = vmul.f32 %v3049, %v3049
      %v3052 = vmul.f32 %v3050, %v3050
      %v3053 = vsel %vm256, %v3051, 0.0
      %3054 = vadd.xlane.f32.xlu0 %v3053
      %v3055 = vpop.xlane.xlu0 %3054
      %v3056 = vsel %vm1465, %v3052, 0.0
      %3057 = vadd.xlane.f32.xlu0 %v3056
      %v3058 = vpop.xlane.xlu0 %3057
      %v3059 = vmul.f32 %v3055, %v996
      %v3060 = vmul.f32 %v3058, %v996
      %v3061 = vadd.f32 %v3059, 1e-05
      %v3062 = vadd.f32 %v3060, 1e-05
      %v3063 = vrsqrt.pop %v3061
      %v3064 = vrsqrt.pop %v3062
      %v3065 = vmul.f32 %v3049, %v3063
      %v3066 = vmul.f32 %v3050, %v3064
      %v3068 = vlaneseq
      %v3069 = vshrl.u32 %v3068, 7
      %v3070 = vsub.s32 0, %v3069
      %v3071 = vrot.slane %v1457, %v3070
      %v3073 = vmul.f32 %v3065, %v3071
      %v3074 = vmul.f32 %v3066, %v3071
      %v3076 = vlaneseq
      %v3077 = vshrl.u32 %v3076, 7
      %v3078 = vsub.s32 0, %v3077
      %v3079 = vrot.slane %v1458, %v3078
      %v3081 = vadd.f32 %v3073, %v3079
      %v3082 = vadd.f32 %v3074, %v3079
      %v3084 = vrot.slane %v3081, 2
      %v3085 = vsel %vm256, %v3084, 0
      %3087 = vmatprep.subr.mxu0 0.0
      %3088 = vmatpush1.msra.mxu0 %v1460
      %3089 = vmatprep.subr.mxu0 0.0
      %3090 = vmatpush1.msra.mxu0 0.0
      %3091 = vmatprep.subr.mxu0 0.0
      %3092 = vmatpush1.msra.mxu0 0.0
      %3093 = vmatprep.subr.mxu0 0.0
      %3094 = vmatpush1.msra.mxu0 0.0
      %3095 = vmatprep.subr.mxu0 0.0
      %3096 = vmatpush1.msra.mxu0 0.0
      %3097 = vmatprep.subr.mxu0 0.0
      %3098 = vmatpush1.msra.mxu0 0.0
      %3099 = vmatprep.subr.mxu0 0.0
      %3100 = vmatpush1.msra.mxu0 0.0
      %3101 = vmatprep.subr.mxu0 0.0
      %3102 = vmatpush1.msra.mxu0 0.0
      %3103 = vmatprep.subr.mxu0 0.0
      %3104 = vmatpush1.msra.mxu0 0.0
      %3105 = vmatprep.subr.mxu0 0.0
      %3106 = vmatpush1.msra.mxu0 0.0
      %3107 = vmatprep.subr.mxu0 0.0
      %3108 = vmatpush1.msra.mxu0 0.0
      %3109 = vmatprep.subr.mxu0 0.0
      %3110 = vmatpush1.msra.mxu0 0.0
      %3111 = vmatprep.subr.mxu0 0.0
      %3112 = vmatpush1.msra.mxu0 0.0
      %3113 = vmatprep.subr.mxu0 0.0
      %3114 = vmatpush1.msra.mxu0 0.0
      %3115 = vmatprep.subr.mxu0 0.0
      %3116 = vmatpush1.msra.mxu0 0.0
      %3117 = vmatprep.subr.mxu0 0.0
      %3118 = vmatpush1.msra.mxu0 0.0
      %3119 = vmatprep.subr.mxu0 0.0
      %3120 = vmatpush1.msra.mxu0 0.0
      %3121 = vmatprep.subr.mxu0 0.0
      %3122 = vmatpush1.msra.mxu0 0.0
      %3123 = vmatprep.subr.mxu0 0.0
      %3124 = vmatpush1.msra.mxu0 0.0
      %3125 = vmatprep.subr.mxu0 0.0
      %3126 = vmatpush1.msra.mxu0 0.0
      %3127 = vmatprep.subr.mxu0 0.0
      %3128 = vmatpush1.msra.mxu0 0.0
      %3129 = vmatprep.subr.mxu0 0.0
      %3130 = vmatpush1.msra.mxu0 0.0
      %3131 = vmatprep.subr.mxu0 0.0
      %3132 = vmatpush1.msra.mxu0 0.0
      %3133 = vmatprep.subr.mxu0 0.0
      %3134 = vmatpush1.msra.mxu0 0.0
      %3135 = vmatprep.subr.mxu0 0.0
      %3136 = vmatpush1.msra.mxu0 0.0
      %3137 = vmatprep.subr.mxu0 0.0
      %3138 = vmatpush1.msra.mxu0 0.0
      %3139 = vmatprep.subr.mxu0 0.0
      %3140 = vmatpush1.msra.mxu0 0.0
      %3141 = vmatprep.subr.mxu0 0.0
      %3142 = vmatpush1.msra.mxu0 0.0
      %3143 = vmatprep.subr.mxu0 0.0
      %3144 = vmatpush1.msra.mxu0 0.0
      %3145 = vmatprep.subr.mxu0 0.0
      %3146 = vmatpush1.msra.mxu0 0.0
      %3147 = vmatprep.subr.mxu0 0.0
      %3148 = vmatpush1.msra.mxu0 0.0
      %3149 = vmatprep.subr.mxu0 0.0
      %3150 = vmatpush1.msra.mxu0 0.0
      %3151 = vmatprep.mubr.f32.mxu0 0.0
      %3152 = vmatmul.mubr.f32.gmra.mrb[0].mxu0 %v3085
      %v3153 = vpop.f32.mrb[0].mxu0
      %v3154 = vadd.f32 0.0, %v3153
      %v3155 = vpop.f32.mrb[0].mxu0
      %3156 = vdwg.mxu0
      %v3157 = vsel %vm256, %v3081, 0
      %3159 = vmatprep.subr.mxu0 0.0
      %3160 = vmatpush1.msra.mxu0 %v1459
      %3161 = vmatprep.subr.mxu0 0.0
      %3162 = vmatpush1.msra.mxu0 0.0
      %3163 = vmatprep.subr.mxu0 0.0
      %3164 = vmatpush1.msra.mxu0 0.0
      %3165 = vmatprep.subr.mxu0 0.0
      %3166 = vmatpush1.msra.mxu0 0.0
      %3167 = vmatprep.subr.mxu0 0.0
      %3168 = vmatpush1.msra.mxu0 0.0
      %3169 = vmatprep.subr.mxu0 0.0
      %3170 = vmatpush1.msra.mxu0 0.0
      %3171 = vmatprep.subr.mxu0 0.0
      %3172 = vmatpush1.msra.mxu0 0.0
      %3173 = vmatprep.subr.mxu0 0.0
      %3174 = vmatpush1.msra.mxu0 0.0
      %3175 = vmatprep.subr.mxu0 0.0
      %3176 = vmatpush1.msra.mxu0 0.0
      %3177 = vmatprep.subr.mxu0 0.0
      %3178 = vmatpush1.msra.mxu0 0.0
      %3179 = vmatprep.subr.mxu0 0.0
      %3180 = vmatpush1.msra.mxu0 0.0
      %3181 = vmatprep.subr.mxu0 0.0
      %3182 = vmatpush1.msra.mxu0 0.0
      %3183 = vmatprep.subr.mxu0 0.0
      %3184 = vmatpush1.msra.mxu0 0.0
      %3185 = vmatprep.subr.mxu0 0.0
      %3186 = vmatpush1.msra.mxu0 0.0
      %3187 = vmatprep.subr.mxu0 0.0
      %3188 = vmatpush1.msra.mxu0 0.0
      %3189 = vmatprep.subr.mxu0 0.0
      %3190 = vmatpush1.msra.mxu0 0.0
      %3191 = vmatprep.subr.mxu0 0.0
      %3192 = vmatpush1.msra.mxu0 0.0
      %3193 = vmatprep.subr.mxu0 0.0
      %3194 = vmatpush1.msra.mxu0 0.0
      %3195 = vmatprep.subr.mxu0 0.0
      %3196 = vmatpush1.msra.mxu0 0.0
      %3197 = vmatprep.subr.mxu0 0.0
      %3198 = vmatpush1.msra.mxu0 0.0
      %3199 = vmatprep.subr.mxu0 0.0
      %3200 = vmatpush1.msra.mxu0 0.0
      %3201 = vmatprep.subr.mxu0 0.0
      %3202 = vmatpush1.msra.mxu0 0.0
      %3203 = vmatprep.subr.mxu0 0.0
      %3204 = vmatpush1.msra.mxu0 0.0
      %3205 = vmatprep.subr.mxu0 0.0
      %3206 = vmatpush1.msra.mxu0 0.0
      %3207 = vmatprep.subr.mxu0 0.0
      %3208 = vmatpush1.msra.mxu0 0.0
      %3209 = vmatprep.subr.mxu0 0.0
      %3210 = vmatpush1.msra.mxu0 0.0
      %3211 = vmatprep.subr.mxu0 0.0
      %3212 = vmatpush1.msra.mxu0 0.0
      %3213 = vmatprep.subr.mxu0 0.0
      %3214 = vmatpush1.msra.mxu0 0.0
      %3215 = vmatprep.subr.mxu0 0.0
      %3216 = vmatpush1.msra.mxu0 0.0
      %3217 = vmatprep.subr.mxu0 0.0
      %3218 = vmatpush1.msra.mxu0 0.0
      %3219 = vmatprep.subr.mxu0 0.0
      %3220 = vmatpush1.msra.mxu0 0.0
      %3221 = vmatprep.subr.mxu0 0.0
      %3222 = vmatpush1.msra.mxu0 0.0
      %3223 = vmatprep.mubr.f32.mxu0 0.0
      %3224 = vmatmul.mubr.f32.gmra.mrb[0].mxu0 %v3157
      %v3225 = vpop.f32.mrb[0].mxu0
      %v3226 = vadd.f32 %v3154, %v3225
      %v3227 = vpop.f32.mrb[0].mxu0
      %3228 = vdwg.mxu0
      %v3229 = vrot.slane %v3081, 4
      %v3230 = vsel %vm256, %v3229, 0
      %3232 = vmatprep.subr.mxu0 0.0
      %3233 = vmatpush1.msra.mxu0 %v1461
      %3234 = vmatprep.subr.mxu0 0.0
      %3235 = vmatpush1.msra.mxu0 0.0
      %3236 = vmatprep.subr.mxu0 0.0
      %3237 = vmatpush1.msra.mxu0 0.0
      %3238 = vmatprep.subr.mxu0 0.0
      %3239 = vmatpush1.msra.mxu0 0.0
      %3240 = vmatprep.subr.mxu0 0.0
      %3241 = vmatpush1.msra.mxu0 0.0
      %3242 = vmatprep.subr.mxu0 0.0
      %3243 = vmatpush1.msra.mxu0 0.0
      %3244 = vmatprep.subr.mxu0 0.0
      %3245 = vmatpush1.msra.mxu0 0.0
      %3246 = vmatprep.subr.mxu0 0.0
      %3247 = vmatpush1.msra.mxu0 0.0
      %3248 = vmatprep.subr.mxu0 0.0
      %3249 = vmatpush1.msra.mxu0 0.0
      %3250 = vmatprep.subr.mxu0 0.0
      %3251 = vmatpush1.msra.mxu0 0.0
      %3252 = vmatprep.subr.mxu0 0.0
      %3253 = vmatpush1.msra.mxu0 0.0
      %3254 = vmatprep.subr.mxu0 0.0
      %3255 = vmatpush1.msra.mxu0 0.0
      %3256 = vmatprep.subr.mxu0 0.0
      %3257 = vmatpush1.msra.mxu0 0.0
      %3258 = vmatprep.subr.mxu0 0.0
      %3259 = vmatpush1.msra.mxu0 0.0
      %3260 = vmatprep.subr.mxu0 0.0
      %3261 = vmatpush1.msra.mxu0 0.0
      %3262 = vmatprep.subr.mxu0 0.0
      %3263 = vmatpush1.msra.mxu0 0.0
      %3264 = vmatprep.subr.mxu0 0.0
      %3265 = vmatpush1.msra.mxu0 0.0
      %3266 = vmatprep.subr.mxu0 0.0
      %3267 = vmatpush1.msra.mxu0 0.0
      %3268 = vmatprep.subr.mxu0 0.0
      %3269 = vmatpush1.msra.mxu0 0.0
      %3270 = vmatprep.subr.mxu0 0.0
      %3271 = vmatpush1.msra.mxu0 0.0
      %3272 = vmatprep.subr.mxu0 0.0
      %3273 = vmatpush1.msra.mxu0 0.0
      %3274 = vmatprep.subr.mxu0 0.0
      %3275 = vmatpush1.msra.mxu0 0.0
      %3276 = vmatprep.subr.mxu0 0.0
      %3277 = vmatpush1.msra.mxu0 0.0
      %3278 = vmatprep.subr.mxu0 0.0
      %3279 = vmatpush1.msra.mxu0 0.0
      %3280 = vmatprep.subr.mxu0 0.0
      %3281 = vmatpush1.msra.mxu0 0.0
      %3282 = vmatprep.subr.mxu0 0.0
      %3283 = vmatpush1.msra.mxu0 0.0
      %3284 = vmatprep.subr.mxu0 0.0
      %3285 = vmatpush1.msra.mxu0 0.0
      %3286 = vmatprep.subr.mxu0 0.0
      %3287 = vmatpush1.msra.mxu0 0.0
      %3288 = vmatprep.subr.mxu0 0.0
      %3289 = vmatpush1.msra.mxu0 0.0
      %3290 = vmatprep.subr.mxu0 0.0
      %3291 = vmatpush1.msra.mxu0 0.0
      %3292 = vmatprep.subr.mxu0 0.0
      %3293 = vmatpush1.msra.mxu0 0.0
      %3294 = vmatprep.subr.mxu0 0.0
      %3295 = vmatpush1.msra.mxu0 0.0
      %3296 = vmatprep.mubr.f32.mxu0 0.0
      %3297 = vmatmul.mubr.f32.gmra.mrb[0].mxu0 %v3230
      %v3298 = vpop.f32.mrb[0].mxu0
      %v3299 = vadd.f32 0.0, %v3298
      %v3300 = vpop.f32.mrb[0].mxu0
      %3301 = vdwg.mxu0
      %v3302 = vadd.f32 %v3226, %v3299
      %v3303 = vrot.slane %v3081, 6
      %v3304 = vsel %vm256, %v3303, 0
      %3306 = vmatprep.subr.mxu0 0.0
      %3307 = vmatpush1.msra.mxu0 %v1462
      %3308 = vmatprep.subr.mxu0 0.0
      %3309 = vmatpush1.msra.mxu0 0.0
      %3310 = vmatprep.subr.mxu0 0.0
      %3311 = vmatpush1.msra.mxu0 0.0
      %3312 = vmatprep.subr.mxu0 0.0
      %3313 = vmatpush1.msra.mxu0 0.0
      %3314 = vmatprep.subr.mxu0 0.0
      %3315 = vmatpush1.msra.mxu0 0.0
      %3316 = vmatprep.subr.mxu0 0.0
      %3317 = vmatpush1.msra.mxu0 0.0
      %3318 = vmatprep.subr.mxu0 0.0
      %3319 = vmatpush1.msra.mxu0 0.0
      %3320 = vmatprep.subr.mxu0 0.0
      %3321 = vmatpush1.msra.mxu0 0.0
      %3322 = vmatprep.subr.mxu0 0.0
      %3323 = vmatpush1.msra.mxu0 0.0
      %3324 = vmatprep.subr.mxu0 0.0
      %3325 = vmatpush1.msra.mxu0 0.0
      %3326 = vmatprep.subr.mxu0 0.0
      %3327 = vmatpush1.msra.mxu0 0.0
      %3328 = vmatprep.subr.mxu0 0.0
      %3329 = vmatpush1.msra.mxu0 0.0
      %3330 = vmatprep.subr.mxu0 0.0
      %3331 = vmatpush1.msra.mxu0 0.0
      %3332 = vmatprep.subr.mxu0 0.0
      %3333 = vmatpush1.msra.mxu0 0.0
      %3334 = vmatprep.subr.mxu0 0.0
      %3335 = vmatpush1.msra.mxu0 0.0
      %3336 = vmatprep.subr.mxu0 0.0
      %3337 = vmatpush1.msra.mxu0 0.0
      %3338 = vmatprep.subr.mxu0 0.0
      %3339 = vmatpush1.msra.mxu0 0.0
      %3340 = vmatprep.subr.mxu0 0.0
      %3341 = vmatpush1.msra.mxu0 0.0
      %3342 = vmatprep.subr.mxu0 0.0
      %3343 = vmatpush1.msra.mxu0 0.0
      %3344 = vmatprep.subr.mxu0 0.0
      %3345 = vmatpush1.msra.mxu0 0.0
      %3346 = vmatprep.subr.mxu0 0.0
      %3347 = vmatpush1.msra.mxu0 0.0
      %3348 = vmatprep.subr.mxu0 0.0
      %3349 = vmatpush1.msra.mxu0 0.0
      %3350 = vmatprep.subr.mxu0 0.0
      %3351 = vmatpush1.msra.mxu0 0.0
      %3352 = vmatprep.subr.mxu0 0.0
      %3353 = vmatpush1.msra.mxu0 0.0
      %3354 = vmatprep.subr.mxu0 0.0
      %3355 = vmatpush1.msra.mxu0 0.0
      %3356 = vmatprep.subr.mxu0 0.0
      %3357 = vmatpush1.msra.mxu0 0.0
      %3358 = vmatprep.subr.mxu0 0.0
      %3359 = vmatpush1.msra.mxu0 0.0
      %3360 = vmatprep.subr.mxu0 0.0
      %3361 = vmatpush1.msra.mxu0 0.0
      %3362 = vmatprep.subr.mxu0 0.0
      %3363 = vmatpush1.msra.mxu0 0.0
      %3364 = vmatprep.subr.mxu0 0.0
      %3365 = vmatpush1.msra.mxu0 0.0
      %3366 = vmatprep.subr.mxu0 0.0
      %3367 = vmatpush1.msra.mxu0 0.0
      %3368 = vmatprep.subr.mxu0 0.0
      %3369 = vmatpush1.msra.mxu0 0.0
      %3370 = vmatprep.mubr.f32.mxu0 0.0
      %3371 = vmatmul.mubr.f32.gmra.mrb[0].mxu0 %v3304
      %v3372 = vpop.f32.mrb[0].mxu0
      %v3373 = vadd.f32 0.0, %v3372
      %v3374 = vpop.f32.mrb[0].mxu0
      %3375 = vdwg.mxu0
      %v3376 = vadd.f32 %v3302, %v3373
      %v3378 = vsel %vm256, %v3082, 0
      %3380 = vmatprep.subr.mxu0 0.0
      %3381 = vmatpush1.msra.mxu0 %v1463
      %3382 = vmatprep.subr.mxu0 0.0
      %3383 = vmatpush1.msra.mxu0 0.0
      %3384 = vmatprep.subr.mxu0 0.0
      %3385 = vmatpush1.msra.mxu0 0.0
      %3386 = vmatprep.subr.mxu0 0.0
      %3387 = vmatpush1.msra.mxu0 0.0
      %3388 = vmatprep.subr.mxu0 0.0
      %3389 = vmatpush1.msra.mxu0 0.0
      %3390 = vmatprep.subr.mxu0 0.0
      %3391 = vmatpush1.msra.mxu0 0.0
      %3392 = vmatprep.subr.mxu0 0.0
      %3393 = vmatpush1.msra.mxu0 0.0
      %3394 = vmatprep.subr.mxu0 0.0
      %3395 = vmatpush1.msra.mxu0 0.0
      %3396 = vmatprep.subr.mxu0 0.0
      %3397 = vmatpush1.msra.mxu0 0.0
      %3398 = vmatprep.subr.mxu0 0.0
      %3399 = vmatpush1.msra.mxu0 0.0
      %3400 = vmatprep.subr.mxu0 0.0
      %3401 = vmatpush1.msra.mxu0 0.0
      %3402 = vmatprep.subr.mxu0 0.0
      %3403 = vmatpush1.msra.mxu0 0.0
      %3404 = vmatprep.subr.mxu0 0.0
      %3405 = vmatpush1.msra.mxu0 0.0
      %3406 = vmatprep.subr.mxu0 0.0
      %3407 = vmatpush1.msra.mxu0 0.0
      %3408 = vmatprep.subr.mxu0 0.0
      %3409 = vmatpush1.msra.mxu0 0.0
      %3410 = vmatprep.subr.mxu0 0.0
      %3411 = vmatpush1.msra.mxu0 0.0
      %3412 = vmatprep.subr.mxu0 0.0
      %3413 = vmatpush1.msra.mxu0 0.0
      %3414 = vmatprep.subr.mxu0 0.0
      %3415 = vmatpush1.msra.mxu0 0.0
      %3416 = vmatprep.subr.mxu0 0.0
      %3417 = vmatpush1.msra.mxu0 0.0
      %3418 = vmatprep.subr.mxu0 0.0
      %3419 = vmatpush1.msra.mxu0 0.0
      %3420 = vmatprep.subr.mxu0 0.0
      %3421 = vmatpush1.msra.mxu0 0.0
      %3422 = vmatprep.subr.mxu0 0.0
      %3423 = vmatpush1.msra.mxu0 0.0
      %3424 = vmatprep.subr.mxu0 0.0
      %3425 = vmatpush1.msra.mxu0 0.0
      %3426 = vmatprep.subr.mxu0 0.0
      %3427 = vmatpush1.msra.mxu0 0.0
      %3428 = vmatprep.subr.mxu0 0.0
      %3429 = vmatpush1.msra.mxu0 0.0
      %3430 = vmatprep.subr.mxu0 0.0
      %3431 = vmatpush1.msra.mxu0 0.0
      %3432 = vmatprep.subr.mxu0 0.0
      %3433 = vmatpush1.msra.mxu0 0.0
      %3434 = vmatprep.subr.mxu0 0.0
      %3435 = vmatpush1.msra.mxu0 0.0
      %3436 = vmatprep.subr.mxu0 0.0
      %3437 = vmatpush1.msra.mxu0 0.0
      %3438 = vmatprep.subr.mxu0 0.0
      %3439 = vmatpush1.msra.mxu0 0.0
      %3440 = vmatprep.subr.mxu0 0.0
      %3441 = vmatpush1.msra.mxu0 0.0
      %3442 = vmatprep.subr.mxu0 0.0
      %3443 = vmatpush1.msra.mxu0 0.0
      %3444 = vmatprep.mubr.f32.mxu0 0.0
      %3445 = vmatmul.mubr.f32.gmra.mrb[0].mxu0 %v3378
      %v3446 = vpop.f32.mrb[0].mxu0
      %v3447 = vadd.f32 0.0, %v3446
      %v3448 = vpop.f32.mrb[0].mxu0
      %3449 = vdwg.mxu0
      %v3450 = vadd.f32 %v3376, %v3447
      %s3451 = smul.u32 %s1468, 2
      %s3452 = scalar_lea.vmem [#allocation9], %s3451
      %vm3453 = vcmask 66560
      %3454 = vst.msk [vmem:[%s3452] sm:$0x3] %vm3453, %v3450
      %v3455 = vsel %vm3453, %v3450, -inf
      %3456 = vmax.xlane.f32.xlu0 %v3455
      %v3457 = vpop.xlane.xlu0 %3456
      %v3458 = vcvt.s32.f32 %v235
      %vm3459 = vcmp.ge.f32.partialorder %v3450, %v3457
      %v3460 = vsel %vm3459, %v3458, 10.0
      %v3461 = vsel %vm3453, %v3460, inf
      %3462 = vmin.xlane.f32.xlu0 %v3461
      %v3463 = vpop.xlane.xlu0 %3462
      %vm3464 = vcmp.eq.f32.partialorder %v3458, %v3463
      %v3465 = vsel %vm3464, 1, 0
      %v3466 = vcvt.s32.f32 %v3465
      %v3467 = vld [vmem:[%s3] sm:$0xff]
      %v3468 = vld [vmem:[%s3 + $0x8] sm:$0x1]
      %vm3469 = vcmask 72704
      %v3471 = vsel %vm3469, %v3466, 0
      %vm3473 = vcmask 1040384
      %v3475 = vsel %vm3473, %v3468, 0
      %3477 = vmatprep.subr.mxu0 0.0
      %3478 = vmatpush1.msra.mxu0 %v3467
      %3479 = vmatprep.subr.mxu0 0.0
      %3480 = vmatpush1.msra.mxu0 %v3475
      %3481 = vmatprep.subr.mxu0 0.0
      %3482 = vmatpush1.msra.mxu0 0.0
      %3483 = vmatprep.subr.mxu0 0.0
      %3484 = vmatpush1.msra.mxu0 0.0
      %3485 = vmatprep.subr.mxu0 0.0
      %3486 = vmatpush1.msra.mxu0 0.0
      %3487 = vmatprep.subr.mxu0 0.0
      %3488 = vmatpush1.msra.mxu0 0.0
      %3489 = vmatprep.subr.mxu0 0.0
      %3490 = vmatpush1.msra.mxu0 0.0
      %3491 = vmatprep.subr.mxu0 0.0
      %3492 = vmatpush1.msra.mxu0 0.0
      %3493 = vmatprep.subr.mxu0 0.0
      %3494 = vmatpush1.msra.mxu0 0.0
      %3495 = vmatprep.subr.mxu0 0.0
      %3496 = vmatpush1.msra.mxu0 0.0
      %3497 = vmatprep.subr.mxu0 0.0
      %3498 = vmatpush1.msra.mxu0 0.0
      %3499 = vmatprep.subr.mxu0 0.0
      %3500 = vmatpush1.msra.mxu0 0.0
      %3501 = vmatprep.subr.mxu0 0.0
      %3502 = vmatpush1.msra.mxu0 0.0
      %3503 = vmatprep.subr.mxu0 0.0
      %3504 = vmatpush1.msra.mxu0 0.0
      %3505 = vmatprep.subr.mxu0 0.0
      %3506 = vmatpush1.msra.mxu0 0.0
      %3507 = vmatprep.subr.mxu0 0.0
      %3508 = vmatpush1.msra.mxu0 0.0
      %3509 = vmatprep.subr.mxu0 0.0
      %3510 = vmatpush1.msra.mxu0 0.0
      %3511 = vmatprep.subr.mxu0 0.0
      %3512 = vmatpush1.msra.mxu0 0.0
      %3513 = vmatprep.subr.mxu0 0.0
      %3514 = vmatpush1.msra.mxu0 0.0
      %3515 = vmatprep.subr.mxu0 0.0
      %3516 = vmatpush1.msra.mxu0 0.0
      %3517 = vmatprep.subr.mxu0 0.0
      %3518 = vmatpush1.msra.mxu0 0.0
      %3519 = vmatprep.subr.mxu0 0.0
      %3520 = vmatpush1.msra.mxu0 0.0
      %3521 = vmatprep.subr.mxu0 0.0
      %3522 = vmatpush1.msra.mxu0 0.0
      %3523 = vmatprep.subr.mxu0 0.0
      %3524 = vmatpush1.msra.mxu0 0.0
      %3525 = vmatprep.subr.mxu0 0.0
      %3526 = vmatpush1.msra.mxu0 0.0
      %3527 = vmatprep.subr.mxu0 0.0
      %3528 = vmatpush1.msra.mxu0 0.0
      %3529 = vmatprep.subr.mxu0 0.0
      %3530 = vmatpush1.msra.mxu0 0.0
      %3531 = vmatprep.subr.mxu0 0.0
      %3532 = vmatpush1.msra.mxu0 0.0
      %3533 = vmatprep.subr.mxu0 0.0
      %3534 = vmatpush1.msra.mxu0 0.0
      %3535 = vmatprep.subr.mxu0 0.0
      %3536 = vmatpush1.msra.mxu0 0.0
      %3537 = vmatprep.subr.mxu0 0.0
      %3538 = vmatpush1.msra.mxu0 0.0
      %3539 = vmatprep.subr.mxu0 0.0
      %3540 = vmatpush1.msra.mxu0 0.0
      %3541 = vmatprep.mubr.f32.mxu0 0.0
      %3542 = vmatmul.mubr.f32.gmra.mrb[0].mxu0 %v3471
      %v3543 = vpop.f32.mrb[0].mxu0
      %v3544 = vadd.f32 0.0, %v3543
      %v3545 = vpop.f32.mrb[0].mxu0
      %3546 = vdwg.mxu0
      %s3547 = scalar_lea.vmem [#allocation2], %s3451
      %vm3548 = vcmask 57344
      %3549 = vst.msk [vmem:[%s3547] sm:$0x1] %vm3548, %v3544
      %s3550 = scalar_lea.vmem %s3, 16
      %v3551 = vld [vmem:[%s3550] sm:$0xff]
      %v3552 = vld [vmem:[%s3550 + $0x8] sm:$0x1]
      %v3553 = vrot.slane %v3466, 1
      %v3554 = vsel %vm3469, %v3553, 0
      %v3557 = vsel %vm3473, %v3552, 0
      %3559 = vmatprep.subr.mxu0 0.0
      %3560 = vmatpush1.msra.mxu0 %v3551
      %3561 = vmatprep.subr.mxu0 0.0
      %3562 = vmatpush1.msra.mxu0 %v3557
      %3563 = vmatprep.subr.mxu0 0.0
      %3564 = vmatpush1.msra.mxu0 0.0
      %3565 = vmatprep.subr.mxu0 0.0
      %3566 = vmatpush1.msra.mxu0 0.0
      %3567 = vmatprep.subr.mxu0 0.0
      %3568 = vmatpush1.msra.mxu0 0.0
      %3569 = vmatprep.subr.mxu0 0.0
      %3570 = vmatpush1.msra.mxu0 0.0
      %3571 = vmatprep.subr.mxu0 0.0
      %3572 = vmatpush1.msra.mxu0 0.0
      %3573 = vmatprep.subr.mxu0 0.0
      %3574 = vmatpush1.msra.mxu0 0.0
      %3575 = vmatprep.subr.mxu0 0.0
      %3576 = vmatpush1.msra.mxu0 0.0
      %3577 = vmatprep.subr.mxu0 0.0
      %3578 = vmatpush1.msra.mxu0 0.0
      %3579 = vmatprep.subr.mxu0 0.0
      %3580 = vmatpush1.msra.mxu0 0.0
      %3581 = vmatprep.subr.mxu0 0.0
      %3582 = vmatpush1.msra.mxu0 0.0
      %3583 = vmatprep.subr.mxu0 0.0
      %3584 = vmatpush1.msra.mxu0 0.0
      %3585 = vmatprep.subr.mxu0 0.0
      %3586 = vmatpush1.msra.mxu0 0.0
      %3587 = vmatprep.subr.mxu0 0.0
      %3588 = vmatpush1.msra.mxu0 0.0
      %3589 = vmatprep.subr.mxu0 0.0
      %3590 = vmatpush1.msra.mxu0 0.0
      %3591 = vmatprep.subr.mxu0 0.0
      %3592 = vmatpush1.msra.mxu0 0.0
      %3593 = vmatprep.subr.mxu0 0.0
      %3594 = vmatpush1.msra.mxu0 0.0
      %3595 = vmatprep.subr.mxu0 0.0
      %3596 = vmatpush1.msra.mxu0 0.0
      %3597 = vmatprep.subr.mxu0 0.0
      %3598 = vmatpush1.msra.mxu0 0.0
      %3599 = vmatprep.subr.mxu0 0.0
      %3600 = vmatpush1.msra.mxu0 0.0
      %3601 = vmatprep.subr.mxu0 0.0
      %3602 = vmatpush1.msra.mxu0 0.0
      %3603 = vmatprep.subr.mxu0 0.0
      %3604 = vmatpush1.msra.mxu0 0.0
      %3605 = vmatprep.subr.mxu0 0.0
      %3606 = vmatpush1.msra.mxu0 0.0
      %3607 = vmatprep.subr.mxu0 0.0
      %3608 = vmatpush1.msra.mxu0 0.0
      %3609 = vmatprep.subr.mxu0 0.0
      %3610 = vmatpush1.msra.mxu0 0.0
      %3611 = vmatprep.subr.mxu0 0.0
      %3612 = vmatpush1.msra.mxu0 0.0
      %3613 = vmatprep.subr.mxu0 0.0
      %3614 = vmatpush1.msra.mxu0 0.0
      %3615 = vmatprep.subr.mxu0 0.0
      %3616 = vmatpush1.msra.mxu0 0.0
      %3617 = vmatprep.subr.mxu0 0.0
      %3618 = vmatpush1.msra.mxu0 0.0
      %3619 = vmatprep.subr.mxu0 0.0
      %3620 = vmatpush1.msra.mxu0 0.0
      %3621 = vmatprep.subr.mxu0 0.0
      %3622 = vmatpush1.msra.mxu0 0.0
      %3623 = vmatprep.mubr.f32.mxu0 0.0
      %3624 = vmatmul.mubr.f32.gmra.mrb[0].mxu0 %v3554
      %v3625 = vpop.f32.mrb[0].mxu0
      %v3626 = vadd.f32 0.0, %v3625
      %v3627 = vpop.f32.mrb[0].mxu0
      %3628 = vdwg.mxu0
      %s3629 = sadd.s32 %s3451, 1
      %s3630 = scalar_lea.vmem [#allocation2], %s3629
      %3631 = vst.msk [vmem:[%s3630] sm:$0x1] %vm3548, %v3626
    $region210: #{auto_reg_transformer_fwd.1} parent=1 // loop_footer
      %s1472 = sadd.s32 1, %s1468
    $region211: #{auto_reg_transformer_fwd.1} parent=1 // loop_footer_branch
      %1467 = sbr.rel target = $region207
    $region212: #{auto_reg_transformer_fwd.1} parent=1 // loop_exit
      _
    // Predicated region
    $region213: #{auto_reg_transformer_fwd.1} parent=1 // pred_check
      _
    $region214: #{auto_reg_transformer_fwd.1} parent=1 // pred_check_branch
      %3633 = sbr.rel (0) target = $region216
    $region215: #{auto_reg_transformer_fwd.1} parent=1 // pred_region
      %s3635 = ssub.s32 160, 160
      %3636 = vsyncadd [#allocation5], %s3635
      %s3637 = sshll.u32 [#allocation9], 4
      %s3638 = int_to_ptr.vmem [resolvable:$true] %s3637
      %3643 = dma.vmem_to_hbm [thread:$0]  %s3638, 160, %s97, [#allocation5], 32, 32, 2
    $region216: #{auto_reg_transformer_fwd.1} parent=1 // pred_fallthru
      _
    // Predicated region
    $region217: #{auto_reg_transformer_fwd.1} parent=1 // pred_check
      _
    $region218: #{auto_reg_transformer_fwd.1} parent=1 // pred_check_branch
      %3645 = sbr.rel (0) target = $region220
    $region219: #{auto_reg_transformer_fwd.1} parent=1 // pred_region
      %3646 = dma.done [#allocation5], 160
    $region220: #{auto_reg_transformer_fwd.1} parent=1 // pred_fallthru
      _
    %3647 = vsyncpa [#allocation4], 1
    %3648 = vsyncpa [#allocation7], 1
    %3649 = vsyncpa [#allocation5], 1

</llo_original>
